<compile_context>
chip_gen: v7x
topology: tpu7x:2x2x1
jax: 0.10.0
libtpu: 0.0.40
codegen_flags: <defaults>
</compile_context>

<pallas_src>
import jax
import jax.numpy as jnp
import numpy as np
from jax.experimental import pallas as pl
from jax.experimental.pallas import tpu as pltpu

# ---- model / problem sizes (small, consistent with the module) ----
E = 32          # data_embed_dim
H = 4           # num_heads
DH = E // H     # head dim
NBLK = 2        # n_blocks
B = 2           # batch
S = 8           # sequence length
BS = B * S
LN_EPS = 1e-5

# 128-aligned column offsets inside the packed parameter slabs
OFF_QKV = 0      # w_qkv (E, 3E)  / b_qkv (3E,)   [scale folded into q part]
OFF_OUT = 128    # w_out (E, E)   / b_out (E,)
OFF_W1 = 256     # w1    (E, 2E)  / b1    (2E,)
OFF_W2 = 384     # w2    (2E, E)  / b2    (E,)
SLAB_W = 512


def _layernorm(x, gamma, beta):
    mu = jnp.mean(x, axis=-1, keepdims=True)
    var = jnp.mean((x - mu) ** 2, axis=-1, keepdims=True)
    return (x - mu) * jax.lax.rsqrt(var + LN_EPS) * gamma + beta


def _chain_kernel(x_ref, w_ref, f_ref, o_ref):
    """Single invocation: all batch elements through the FULL n-block chain."""
    bf16 = jnp.bfloat16
    f32 = jnp.float32

    x = x_ref[...].astype(f32)                       # (B*S, E) residual stream

    # shared LayerNorm params (rows NBLK..NBLK+3 of the f32 slab)
    an_g = f_ref[NBLK + 0:NBLK + 1, 0:E]             # (1, E)
    an_b = f_ref[NBLK + 1:NBLK + 2, 0:E]
    fn_g = f_ref[NBLK + 2:NBLK + 3, 0:E]
    fn_b = f_ref[NBLK + 3:NBLK + 4, 0:E]

    for blk in range(NBLK):                           # static unroll over blocks
        # -- per-block parameters, static slices out of the two slabs --
        w_qkv = w_ref[blk, 0:E, OFF_QKV:OFF_QKV + 3 * E]   # (E, 3E)  bf16, (in,out)
        w_out = w_ref[blk, 0:E, OFF_OUT:OFF_OUT + E]       # (E, E)
        w1 = w_ref[blk, 0:E, OFF_W1:OFF_W1 + 2 * E]        # (E, 2E)
        w2 = w_ref[blk, 0:2 * E, OFF_W2:OFF_W2 + E]        # (2E, E)
        b_qkv = f_ref[blk:blk + 1, OFF_QKV:OFF_QKV + 3 * E]  # (1, 3E) f32 row bias
        b_out = f_ref[blk:blk + 1, OFF_OUT:OFF_OUT + E]      # (1, E)
        b1 = f_ref[blk:blk + 1, OFF_W1:OFF_W1 + 2 * E]       # (1, 2E)
        b2 = f_ref[blk:blk + 1, OFF_W2:OFF_W2 + E]           # (1, E)

        # ---------- pre-norm + multi-head self-attention ----------
        xn = _layernorm(x, an_g, an_b)                         # (BS, E) f32
        # activation-major qkv projection: (BS, E) @ (E, 3E) -> (BS, 3E)
        # (lane-dense output, row bias; softmax scale already folded into q)
        qkv = jnp.dot(xn.astype(bf16), w_qkv,
                      preferred_element_type=f32) + b_qkv      # (BS, 3E)

        attn_rows = []
        for b in range(B):                                     # static unroll (B=2)
            # aligned row slice -> one 2D transpose -> free leading split
            t = qkv[b * S:(b + 1) * S, :].T.reshape(3, H, DH, S)
            q_hsd = jnp.swapaxes(t[0], 1, 2)                   # (H, S, DH)
            k_hdt = t[1]                                       # (H, DH, S)
            v_hdt = t[2]                                       # (H, DH, S)

            s_ = jnp.einsum('hsd,hdt->hst',
                            q_hsd.astype(bf16), k_hdt.astype(bf16),
                            preferred_element_type=f32)        # (H, S, S)
            s_ = s_ - jnp.max(s_, axis=-1, keepdims=True)
            p = jnp.exp(s_)
            p = p * pl.reciprocal(jnp.sum(p, axis=-1, keepdims=True), approx=True)
            oT = jnp.einsum('hdt,hst->hds',
                            v_hdt.astype(bf16), p.astype(bf16),
                            preferred_element_type=f32)        # (H, DH, S)
            attn_rows.append(oT.reshape(E, S).T)               # (S, E)
        attn = jnp.concatenate(attn_rows, axis=0)              # (BS, E)

        attn = jnp.dot(attn.astype(bf16), w_out,
                       preferred_element_type=f32) + b_out
        x = x + attn

        # ---------- pre-norm + feed-forward (Linear-ReLU-Linear) ----------
        xn2 = _layernorm(x, fn_g, fn_b)
        h1 = jnp.dot(xn2.astype(bf16), w1,
                     preferred_element_type=f32) + b1           # (BS, 2E)
        h1 = jnp.maximum(h1, 0.0)                               # activation = ReLU
        y = jnp.dot(h1.astype(bf16), w2,
                    preferred_element_type=f32) + b2            # (BS, E)
        x = x + y

    o_ref[...] = x.astype(o_ref.dtype)


def pack_params(in_w, in_b, out_w, out_b, l1_w, l1_b, l2_w, l2_b,
                an_g, an_b, fn_g, fn_b):
    """One-time parameter packing (done at init, NOT per forward call).

    Produces two slabs:
      wslab : (NBLK, 2E, SLAB_W) bf16 — all matmul weights, activation-major
              (in, out) layout, each at a 128-aligned column offset.
      fslab : (NBLK + 4, SLAB_W) f32  — per-block row biases at the same
              offsets; rows NBLK..NBLK+3 hold the shared LayerNorm params.
    The 1/sqrt(DH) softmax scale is folded into the q columns of w_qkv/b_qkv.
    """
    f32 = jnp.float32
    bf16 = jnp.bfloat16
    scale = 1.0 / float(np.sqrt(DH))

    # torch (out, in) -> activation-major (in, out)
    w_qkv = jnp.swapaxes(in_w, 1, 2).astype(f32)       # (NBLK, E, 3E)
    w_out = jnp.swapaxes(out_w, 1, 2).astype(f32)      # (NBLK, E, E)
    w1 = jnp.swapaxes(l1_w, 1, 2).astype(f32)          # (NBLK, E, 2E)
    w2 = jnp.swapaxes(l2_w, 1, 2).astype(f32)          # (NBLK, 2E, E)

    # fold the softmax scale into the q third of the qkv projection
    col_scale = jnp.concatenate([jnp.full((E,), scale, f32),
                                 jnp.ones((2 * E,), f32)])       # (3E,)
    w_qkv = w_qkv * col_scale[None, None, :]
    b_qkv = in_b.astype(f32) * col_scale[None, :]                # (NBLK, 3E)

    wslab = jnp.zeros((NBLK, 2 * E, SLAB_W), bf16)
    wslab = wslab.at[:, 0:E, OFF_QKV:OFF_QKV + 3 * E].set(w_qkv.astype(bf16))
    wslab = wslab.at[:, 0:E, OFF_OUT:OFF_OUT + E].set(w_out.astype(bf16))
    wslab = wslab.at[:, 0:E, OFF_W1:OFF_W1 + 2 * E].set(w1.astype(bf16))
    wslab = wslab.at[:, 0:2 * E, OFF_W2:OFF_W2 + E].set(w2.astype(bf16))

    fslab = jnp.zeros((NBLK + 4, SLAB_W), f32)
    fslab = fslab.at[0:NBLK, OFF_QKV:OFF_QKV + 3 * E].set(b_qkv)
    fslab = fslab.at[0:NBLK, OFF_OUT:OFF_OUT + E].set(out_b.astype(f32))
    fslab = fslab.at[0:NBLK, OFF_W1:OFF_W1 + 2 * E].set(l1_b.astype(f32))
    fslab = fslab.at[0:NBLK, OFF_W2:OFF_W2 + E].set(l2_b.astype(f32))
    fslab = fslab.at[NBLK + 0, 0:E].set(an_g.astype(f32))
    fslab = fslab.at[NBLK + 1, 0:E].set(an_b.astype(f32))
    fslab = fslab.at[NBLK + 2, 0:E].set(fn_g.astype(f32))
    fslab = fslab.at[NBLK + 3, 0:E].set(fn_b.astype(f32))
    return wslab, fslab


def self_attn_chain(x, wslab, fslab):
    """x: (B, S, E) float32; (wslab, fslab) = pack_params(...)."""
    x_flat = x.reshape(BS, E)                  # free row-major reshape in XLA
    vmem = pl.BlockSpec(memory_space=pltpu.MemorySpace.VMEM)
    out = pl.pallas_call(
        _chain_kernel,
        out_shape=jax.ShapeDtypeStruct((BS, E), x.dtype),
        in_specs=[vmem, vmem, vmem],           # 3 whole-array DMAs, no grid
        out_specs=pl.BlockSpec(memory_space=pltpu.MemorySpace.VMEM),
    )(x_flat, wslab, fslab)
    return out.reshape(B, S, E)


# -------------------- pure-JAX reference (PyTorch semantics) --------------------
def reference(x, in_w, in_b, out_w, out_b, l1_w, l1_b, l2_w, l2_b,
              an_g, an_b, fn_g, fn_b):
    def ln(t, g, b):
        mu = t.mean(-1, keepdims=True)
        var = ((t - mu) ** 2).mean(-1, keepdims=True)
        return (t - mu) / jnp.sqrt(var + LN_EPS) * g + b

    for blk in range(NBLK):
        xn = ln(x, an_g, an_b)
        qkv = xn @ in_w[blk].T + in_b[blk]
        q, k, v = jnp.split(qkv, 3, axis=-1)
        qh = q.reshape(B, S, H, DH).transpose(0, 2, 1, 3)
        kh = k.reshape(B, S, H, DH).transpose(0, 2, 1, 3)
        vh = v.reshape(B, S, H, DH).transpose(0, 2, 1, 3)
        scores = (qh / np.sqrt(DH)) @ jnp.swapaxes(kh, -1, -2)
        p = jax.nn.softmax(scores, axis=-1)
        a = (p @ vh).transpose(0, 2, 1, 3).reshape(B, S, E)
        a = a @ out_w[blk].T + out_b[blk]
        x = x + a
        xn2 = ln(x, fn_g, fn_b)
        h1 = jax.nn.relu(xn2 @ l1_w[blk].T + l1_b[blk])
        x = x + (h1 @ l2_w[blk].T + l2_b[blk])
    return x


if __name__ == "__main__":
    key = jax.random.PRNGKey(0)
    keys = jax.random.split(key, 10)
    x = jax.random.normal(keys[0], (B, S, E), jnp.float32)

    def init(k, shape, fan_in):
        bound = 1.0 / np.sqrt(fan_in)
        return jax.random.uniform(k, shape, jnp.float32, -bound, bound)

    # torch Linear / MultiheadAttention convention: weight is (out, in)
    in_w = init(keys[1], (NBLK, 3 * E, E), E)
    in_b = init(keys[2], (NBLK, 3 * E), E)
    out_w = init(keys[3], (NBLK, E, E), E)
    out_b = init(keys[4], (NBLK, E), E)
    l1_w = init(keys[5], (NBLK, 2 * E, E), E)
    l1_b = init(keys[6], (NBLK, 2 * E), E)
    l2_w = init(keys[7], (NBLK, E, 2 * E), 2 * E)
    l2_b = init(keys[8], (NBLK, E), 2 * E)
    an_g = jnp.ones((E,), jnp.float32)
    an_b = jnp.zeros((E,), jnp.float32)
    fn_g = jnp.ones((E,), jnp.float32)
    fn_b = jnp.zeros((E,), jnp.float32)

    # one-time packing (hoisted out of the forward path)
    wslab, fslab = pack_params(in_w, in_b, out_w, out_b, l1_w, l1_b,
                               l2_w, l2_b, an_g, an_b, fn_g, fn_b)

    out = self_attn_chain(x, wslab, fslab)
    out = jax.block_until_ready(out)

    ref = reference(x, in_w, in_b, out_w, out_b, l1_w, l1_b, l2_w, l2_b,
                    an_g, an_b, fn_g, fn_b)

    assert out.shape == (B, S, E)
    np.testing.assert_allclose(np.asarray(out), np.asarray(ref),
                               atol=5e-2, rtol=5e-2)
    print("KERNEL_OK")
</pallas_src>

<mosaic_0001>
module attributes {stable_mosaic.version = 11 : i64} {
  func.func @_chain_kernel(%arg0: memref<16x32xf32, #tpu.memory_space<vmem>>, %arg1: memref<2x64x512xbf16, #tpu.memory_space<vmem>>, %arg2: memref<6x512xf32, #tpu.memory_space<vmem>>, %arg3: memref<16x32xf32, #tpu.memory_space<vmem>>) attributes {dimension_semantics = [], scalar_prefetch = 0 : i64, scratch_operands = 0 : i64, tpu.core_type = #tpu.core_type<tc>} {
    %c0 = arith.constant 0 : index
    %c0_0 = arith.constant 0 : index
    %0 = vector.load %arg0[%c0, %c0_0] : memref<16x32xf32, #tpu.memory_space<vmem>>, vector<16x32xf32>
    %c2 = arith.constant 2 : index
    %c0_1 = arith.constant 0 : index
    %1 = vector.load %arg2[%c2, %c0_1] : memref<6x512xf32, #tpu.memory_space<vmem>>, vector<1x32xf32>
    %c3 = arith.constant 3 : index
    %c0_2 = arith.constant 0 : index
    %2 = vector.load %arg2[%c3, %c0_2] : memref<6x512xf32, #tpu.memory_space<vmem>>, vector<1x32xf32>
    %c4 = arith.constant 4 : index
    %c0_3 = arith.constant 0 : index
    %3 = vector.load %arg2[%c4, %c0_3] : memref<6x512xf32, #tpu.memory_space<vmem>>, vector<1x32xf32>
    %c5 = arith.constant 5 : index
    %c0_4 = arith.constant 0 : index
    %4 = vector.load %arg2[%c5, %c0_4] : memref<6x512xf32, #tpu.memory_space<vmem>>, vector<1x32xf32>
    %c0_5 = arith.constant 0 : index
    %c0_6 = arith.constant 0 : index
    %c0_7 = arith.constant 0 : index
    %5 = vector.load %arg1[%c0_5, %c0_6, %c0_7] : memref<2x64x512xbf16, #tpu.memory_space<vmem>>, vector<1x32x96xbf16>
    %6 = vector.shape_cast %5 : vector<1x32x96xbf16> to vector<32x96xbf16>
    %c0_8 = arith.constant 0 : index
    %c0_9 = arith.constant 0 : index
    %c128 = arith.constant 128 : index
    %7 = vector.load %arg1[%c0_8, %c0_9, %c128] : memref<2x64x512xbf16, #tpu.memory_space<vmem>>, vector<1x32x32xbf16>
    %8 = vector.shape_cast %7 : vector<1x32x32xbf16> to vector<32x32xbf16>
    %c0_10 = arith.constant 0 : index
    %c0_11 = arith.constant 0 : index
    %c256 = arith.constant 256 : index
    %9 = vector.load %arg1[%c0_10, %c0_11, %c256] : memref<2x64x512xbf16, #tpu.memory_space<vmem>>, vector<1x32x64xbf16>
    %10 = vector.shape_cast %9 : vector<1x32x64xbf16> to vector<32x64xbf16>
    %c0_12 = arith.constant 0 : index
    %c0_13 = arith.constant 0 : index
    %c384 = arith.constant 384 : index
    %11 = vector.load %arg1[%c0_12, %c0_13, %c384] : memref<2x64x512xbf16, #tpu.memory_space<vmem>>, vector<1x64x32xbf16>
    %12 = vector.shape_cast %11 : vector<1x64x32xbf16> to vector<64x32xbf16>
    %c0_14 = arith.constant 0 : index
    %c0_15 = arith.constant 0 : index
    %13 = vector.load %arg2[%c0_14, %c0_15] : memref<6x512xf32, #tpu.memory_space<vmem>>, vector<1x96xf32>
    %c0_16 = arith.constant 0 : index
    %c128_17 = arith.constant 128 : index
    %14 = vector.load %arg2[%c0_16, %c128_17] : memref<6x512xf32, #tpu.memory_space<vmem>>, vector<1x32xf32>
    %c0_18 = arith.constant 0 : index
    %c256_19 = arith.constant 256 : index
    %15 = vector.load %arg2[%c0_18, %c256_19] : memref<6x512xf32, #tpu.memory_space<vmem>>, vector<1x64xf32>
    %c0_20 = arith.constant 0 : index
    %c384_21 = arith.constant 384 : index
    %16 = vector.load %arg2[%c0_20, %c384_21] : memref<6x512xf32, #tpu.memory_space<vmem>>, vector<1x32xf32>
    %cst = arith.constant dense<0.000000e+00> : vector<16xf32>
    %17 = vector.multi_reduction <add>, %0, %cst [1] : vector<16x32xf32> to vector<16xf32>
    %18 = vector.shape_cast %17 : vector<16xf32> to vector<16x1xf32>
    %cst_22 = arith.constant 3.200000e+01 : f32
    %19 = vector.broadcast %cst_22 : f32 to vector<16x1xf32>
    %20 = arith.divf %18, %19 : vector<16x1xf32>
    %21 = vector.broadcast %20 : vector<16x1xf32> to vector<16x32xf32>
    %22 = arith.subf %0, %21 : vector<16x32xf32>
    %23 = arith.mulf %22, %22 : vector<16x32xf32>
    %cst_23 = arith.constant dense<0.000000e+00> : vector<16xf32>
    %24 = vector.multi_reduction <add>, %23, %cst_23 [1] : vector<16x32xf32> to vector<16xf32>
    %25 = vector.shape_cast %24 : vector<16xf32> to vector<16x1xf32>
    %cst_24 = arith.constant 3.200000e+01 : f32
    %26 = vector.broadcast %cst_24 : f32 to vector<16x1xf32>
    %27 = arith.divf %25, %26 : vector<16x1xf32>
    %28 = vector.broadcast %20 : vector<16x1xf32> to vector<16x32xf32>
    %29 = arith.subf %0, %28 : vector<16x32xf32>
    %cst_25 = arith.constant 9.99999974E-6 : f32
    %30 = vector.broadcast %cst_25 : f32 to vector<16x1xf32>
    %31 = arith.addf %27, %30 : vector<16x1xf32>
    %32 = math.rsqrt %31 : vector<16x1xf32>
    %33 = vector.broadcast %32 : vector<16x1xf32> to vector<16x32xf32>
    %34 = arith.mulf %29, %33 : vector<16x32xf32>
    %35 = vector.broadcast %1 : vector<1x32xf32> to vector<16x32xf32>
    %36 = arith.mulf %34, %35 : vector<16x32xf32>
    %37 = vector.broadcast %2 : vector<1x32xf32> to vector<16x32xf32>
    %38 = arith.addf %36, %37 : vector<16x32xf32>
    %39 = arith.truncf %38 : vector<16x32xf32> to vector<16x32xbf16>
    %cst_26 = arith.constant dense<0.000000e+00> : vector<16x96xf32>
    %40 = tpu.matmul %39, %6, %cst_26 {dimension_numbers = #tpu.dot_dimension_numbers<[1], [0], [0], [1], [0, 0, 1, 1], [], []>} : vector<16x32xbf16>, vector<32x96xbf16>, vector<16x96xf32> -> vector<16x96xf32>
    %41 = vector.broadcast %13 : vector<1x96xf32> to vector<16x96xf32>
    %42 = arith.addf %40, %41 : vector<16x96xf32>
    %43 = vector.extract_strided_slice %42 {offsets = [0, 0], sizes = [8, 96], strides = [1, 1]} : vector<16x96xf32> to vector<8x96xf32>
    %44 = tpu.transpose %43, [1, 0] : vector<8x96xf32> -> vector<96x8xf32>
    %45 = vector.shape_cast %44 : vector<96x8xf32> to vector<3x4x8x8xf32>
    %46 = vector.extract_strided_slice %45 {offsets = [0, 0, 0, 0], sizes = [1, 4, 8, 8], strides = [1, 1, 1, 1]} : vector<3x4x8x8xf32> to vector<1x4x8x8xf32>
    %47 = vector.shape_cast %46 : vector<1x4x8x8xf32> to vector<4x8x8xf32>
    %48 = tpu.transpose %47, [0, 2, 1] : vector<4x8x8xf32> -> vector<4x8x8xf32>
    %49 = vector.extract_strided_slice %45 {offsets = [1, 0, 0, 0], sizes = [1, 4, 8, 8], strides = [1, 1, 1, 1]} : vector<3x4x8x8xf32> to vector<1x4x8x8xf32>
    %50 = vector.shape_cast %49 : vector<1x4x8x8xf32> to vector<4x8x8xf32>
    %51 = vector.extract_strided_slice %45 {offsets = [2, 0, 0, 0], sizes = [1, 4, 8, 8], strides = [1, 1, 1, 1]} : vector<3x4x8x8xf32> to vector<1x4x8x8xf32>
    %52 = vector.shape_cast %51 : vector<1x4x8x8xf32> to vector<4x8x8xf32>
    %53 = arith.truncf %48 : vector<4x8x8xf32> to vector<4x8x8xbf16>
    %54 = arith.truncf %50 : vector<4x8x8xf32> to vector<4x8x8xbf16>
    "tpu.trace_start"() <{level = 10 : i32, message = "hsd,hdt->hst"}> : () -> ()
    %cst_27 = arith.constant dense<0.000000e+00> : vector<4x8x8xf32>
    %55 = tpu.matmul %53, %54, %cst_27 {dimension_numbers = #tpu.dot_dimension_numbers<[2], [1], [1], [2], [0, 0, 0, 1, 1, 2], [0], [0]>} : vector<4x8x8xbf16>, vector<4x8x8xbf16>, vector<4x8x8xf32> -> vector<4x8x8xf32>
    "tpu.trace_stop"() : () -> ()
    %cst_28 = arith.constant dense<0xFF800000> : vector<4x8xf32>
    %56 = vector.multi_reduction <maximumf>, %55, %cst_28 [2] : vector<4x8x8xf32> to vector<4x8xf32>
    %57 = vector.shape_cast %56 : vector<4x8xf32> to vector<4x8x1xf32>
    %58 = vector.broadcast %57 : vector<4x8x1xf32> to vector<4x8x8xf32>
    %59 = arith.subf %55, %58 : vector<4x8x8xf32>
    %60 = math.exp %59 : vector<4x8x8xf32>
    %cst_29 = arith.constant dense<0.000000e+00> : vector<4x8xf32>
    %61 = vector.multi_reduction <add>, %60, %cst_29 [2] : vector<4x8x8xf32> to vector<4x8xf32>
    %62 = vector.shape_cast %61 : vector<4x8xf32> to vector<4x8x1xf32>
    %63 = tpu.reciprocal %62 {approx = true} : vector<4x8x1xf32> -> vector<4x8x1xf32>
    %64 = vector.broadcast %63 : vector<4x8x1xf32> to vector<4x8x8xf32>
    %65 = arith.mulf %60, %64 : vector<4x8x8xf32>
    %66 = arith.truncf %52 : vector<4x8x8xf32> to vector<4x8x8xbf16>
    %67 = arith.truncf %65 : vector<4x8x8xf32> to vector<4x8x8xbf16>
    "tpu.trace_start"() <{level = 10 : i32, message = "hdt,hst->hds"}> : () -> ()
    %cst_30 = arith.constant dense<0.000000e+00> : vector<4x8x8xf32>
    %68 = tpu.matmul %66, %67, %cst_30 {dimension_numbers = #tpu.dot_dimension_numbers<[2], [2], [1], [1], [0, 0, 0, 1, 1, 1], [0], [0]>} : vector<4x8x8xbf16>, vector<4x8x8xbf16>, vector<4x8x8xf32> -> vector<4x8x8xf32>
    "tpu.trace_stop"() : () -> ()
    %69 = vector.shape_cast %68 : vector<4x8x8xf32> to vector<32x8xf32>
    %70 = tpu.transpose %69, [1, 0] : vector<32x8xf32> -> vector<8x32xf32>
    %71 = vector.extract_strided_slice %42 {offsets = [8, 0], sizes = [8, 96], strides = [1, 1]} : vector<16x96xf32> to vector<8x96xf32>
    %72 = tpu.transpose %71, [1, 0] : vector<8x96xf32> -> vector<96x8xf32>
    %73 = vector.shape_cast %72 : vector<96x8xf32> to vector<3x4x8x8xf32>
    %74 = vector.extract_strided_slice %73 {offsets = [0, 0, 0, 0], sizes = [1, 4, 8, 8], strides = [1, 1, 1, 1]} : vector<3x4x8x8xf32> to vector<1x4x8x8xf32>
    %75 = vector.shape_cast %74 : vector<1x4x8x8xf32> to vector<4x8x8xf32>
    %76 = tpu.transpose %75, [0, 2, 1] : vector<4x8x8xf32> -> vector<4x8x8xf32>
    %77 = vector.extract_strided_slice %73 {offsets = [1, 0, 0, 0], sizes = [1, 4, 8, 8], strides = [1, 1, 1, 1]} : vector<3x4x8x8xf32> to vector<1x4x8x8xf32>
    %78 = vector.shape_cast %77 : vector<1x4x8x8xf32> to vector<4x8x8xf32>
    %79 = vector.extract_strided_slice %73 {offsets = [2, 0, 0, 0], sizes = [1, 4, 8, 8], strides = [1, 1, 1, 1]} : vector<3x4x8x8xf32> to vector<1x4x8x8xf32>
    %80 = vector.shape_cast %79 : vector<1x4x8x8xf32> to vector<4x8x8xf32>
    %81 = arith.truncf %76 : vector<4x8x8xf32> to vector<4x8x8xbf16>
    %82 = arith.truncf %78 : vector<4x8x8xf32> to vector<4x8x8xbf16>
    "tpu.trace_start"() <{level = 10 : i32, message = "hsd,hdt->hst"}> : () -> ()
    %cst_31 = arith.constant dense<0.000000e+00> : vector<4x8x8xf32>
    %83 = tpu.matmul %81, %82, %cst_31 {dimension_numbers = #tpu.dot_dimension_numbers<[2], [1], [1], [2], [0, 0, 0, 1, 1, 2], [0], [0]>} : vector<4x8x8xbf16>, vector<4x8x8xbf16>, vector<4x8x8xf32> -> vector<4x8x8xf32>
    "tpu.trace_stop"() : () -> ()
    %cst_32 = arith.constant dense<0xFF800000> : vector<4x8xf32>
    %84 = vector.multi_reduction <maximumf>, %83, %cst_32 [2] : vector<4x8x8xf32> to vector<4x8xf32>
    %85 = vector.shape_cast %84 : vector<4x8xf32> to vector<4x8x1xf32>
    %86 = vector.broadcast %85 : vector<4x8x1xf32> to vector<4x8x8xf32>
    %87 = arith.subf %83, %86 : vector<4x8x8xf32>
    %88 = math.exp %87 : vector<4x8x8xf32>
    %cst_33 = arith.constant dense<0.000000e+00> : vector<4x8xf32>
    %89 = vector.multi_reduction <add>, %88, %cst_33 [2] : vector<4x8x8xf32> to vector<4x8xf32>
    %90 = vector.shape_cast %89 : vector<4x8xf32> to vector<4x8x1xf32>
    %91 = tpu.reciprocal %90 {approx = true} : vector<4x8x1xf32> -> vector<4x8x1xf32>
    %92 = vector.broadcast %91 : vector<4x8x1xf32> to vector<4x8x8xf32>
    %93 = arith.mulf %88, %92 : vector<4x8x8xf32>
    %94 = arith.truncf %80 : vector<4x8x8xf32> to vector<4x8x8xbf16>
    %95 = arith.truncf %93 : vector<4x8x8xf32> to vector<4x8x8xbf16>
    "tpu.trace_start"() <{level = 10 : i32, message = "hdt,hst->hds"}> : () -> ()
    %cst_34 = arith.constant dense<0.000000e+00> : vector<4x8x8xf32>
    %96 = tpu.matmul %94, %95, %cst_34 {dimension_numbers = #tpu.dot_dimension_numbers<[2], [2], [1], [1], [0, 0, 0, 1, 1, 1], [0], [0]>} : vector<4x8x8xbf16>, vector<4x8x8xbf16>, vector<4x8x8xf32> -> vector<4x8x8xf32>
    "tpu.trace_stop"() : () -> ()
    %97 = vector.shape_cast %96 : vector<4x8x8xf32> to vector<32x8xf32>
    %98 = tpu.transpose %97, [1, 0] : vector<32x8xf32> -> vector<8x32xf32>
    %99 = tpu.concatenate %70, %98 in 0 : vector<8x32xf32>, vector<8x32xf32> -> vector<16x32xf32>
    %100 = arith.truncf %99 : vector<16x32xf32> to vector<16x32xbf16>
    %cst_35 = arith.constant dense<0.000000e+00> : vector<16x32xf32>
    %101 = tpu.matmul %100, %8, %cst_35 {dimension_numbers = #tpu.dot_dimension_numbers<[1], [0], [0], [1], [0, 0, 1, 1], [], []>} : vector<16x32xbf16>, vector<32x32xbf16>, vector<16x32xf32> -> vector<16x32xf32>
    %102 = vector.broadcast %14 : vector<1x32xf32> to vector<16x32xf32>
    %103 = arith.addf %101, %102 : vector<16x32xf32>
    %104 = arith.addf %0, %103 : vector<16x32xf32>
    %cst_36 = arith.constant dense<0.000000e+00> : vector<16xf32>
    %105 = vector.multi_reduction <add>, %104, %cst_36 [1] : vector<16x32xf32> to vector<16xf32>
    %106 = vector.shape_cast %105 : vector<16xf32> to vector<16x1xf32>
    %cst_37 = arith.constant 3.200000e+01 : f32
    %107 = vector.broadcast %cst_37 : f32 to vector<16x1xf32>
    %108 = arith.divf %106, %107 : vector<16x1xf32>
    %109 = vector.broadcast %108 : vector<16x1xf32> to vector<16x32xf32>
    %110 = arith.subf %104, %109 : vector<16x32xf32>
    %111 = arith.mulf %110, %110 : vector<16x32xf32>
    %cst_38 = arith.constant dense<0.000000e+00> : vector<16xf32>
    %112 = vector.multi_reduction <add>, %111, %cst_38 [1] : vector<16x32xf32> to vector<16xf32>
    %113 = vector.shape_cast %112 : vector<16xf32> to vector<16x1xf32>
    %cst_39 = arith.constant 3.200000e+01 : f32
    %114 = vector.broadcast %cst_39 : f32 to vector<16x1xf32>
    %115 = arith.divf %113, %114 : vector<16x1xf32>
    %116 = vector.broadcast %108 : vector<16x1xf32> to vector<16x32xf32>
    %117 = arith.subf %104, %116 : vector<16x32xf32>
    %cst_40 = arith.constant 9.99999974E-6 : f32
    %118 = vector.broadcast %cst_40 : f32 to vector<16x1xf32>
    %119 = arith.addf %115, %118 : vector<16x1xf32>
    %120 = math.rsqrt %119 : vector<16x1xf32>
    %121 = vector.broadcast %120 : vector<16x1xf32> to vector<16x32xf32>
    %122 = arith.mulf %117, %121 : vector<16x32xf32>
    %123 = vector.broadcast %3 : vector<1x32xf32> to vector<16x32xf32>
    %124 = arith.mulf %122, %123 : vector<16x32xf32>
    %125 = vector.broadcast %4 : vector<1x32xf32> to vector<16x32xf32>
    %126 = arith.addf %124, %125 : vector<16x32xf32>
    %127 = arith.truncf %126 : vector<16x32xf32> to vector<16x32xbf16>
    %cst_41 = arith.constant dense<0.000000e+00> : vector<16x64xf32>
    %128 = tpu.matmul %127, %10, %cst_41 {dimension_numbers = #tpu.dot_dimension_numbers<[1], [0], [0], [1], [0, 0, 1, 1], [], []>} : vector<16x32xbf16>, vector<32x64xbf16>, vector<16x64xf32> -> vector<16x64xf32>
    %129 = vector.broadcast %15 : vector<1x64xf32> to vector<16x64xf32>
    %130 = arith.addf %128, %129 : vector<16x64xf32>
    %cst_42 = arith.constant 0.000000e+00 : f32
    %131 = vector.broadcast %cst_42 : f32 to vector<16x64xf32>
    %132 = arith.maximumf %130, %131 : vector<16x64xf32>
    %133 = arith.truncf %132 : vector<16x64xf32> to vector<16x64xbf16>
    %cst_43 = arith.constant dense<0.000000e+00> : vector<16x32xf32>
    %134 = tpu.matmul %133, %12, %cst_43 {dimension_numbers = #tpu.dot_dimension_numbers<[1], [0], [0], [1], [0, 0, 1, 1], [], []>} : vector<16x64xbf16>, vector<64x32xbf16>, vector<16x32xf32> -> vector<16x32xf32>
    %135 = vector.broadcast %16 : vector<1x32xf32> to vector<16x32xf32>
    %136 = arith.addf %134, %135 : vector<16x32xf32>
    %137 = arith.addf %104, %136 : vector<16x32xf32>
    %c1 = arith.constant 1 : index
    %c0_44 = arith.constant 0 : index
    %c0_45 = arith.constant 0 : index
    %138 = vector.load %arg1[%c1, %c0_44, %c0_45] : memref<2x64x512xbf16, #tpu.memory_space<vmem>>, vector<1x32x96xbf16>
    %139 = vector.shape_cast %138 : vector<1x32x96xbf16> to vector<32x96xbf16>
    %c1_46 = arith.constant 1 : index
    %c0_47 = arith.constant 0 : index
    %c128_48 = arith.constant 128 : index
    %140 = vector.load %arg1[%c1_46, %c0_47, %c128_48] : memref<2x64x512xbf16, #tpu.memory_space<vmem>>, vector<1x32x32xbf16>
    %141 = vector.shape_cast %140 : vector<1x32x32xbf16> to vector<32x32xbf16>
    %c1_49 = arith.constant 1 : index
    %c0_50 = arith.constant 0 : index
    %c256_51 = arith.constant 256 : index
    %142 = vector.load %arg1[%c1_49, %c0_50, %c256_51] : memref<2x64x512xbf16, #tpu.memory_space<vmem>>, vector<1x32x64xbf16>
    %143 = vector.shape_cast %142 : vector<1x32x64xbf16> to vector<32x64xbf16>
    %c1_52 = arith.constant 1 : index
    %c0_53 = arith.constant 0 : index
    %c384_54 = arith.constant 384 : index
    %144 = vector.load %arg1[%c1_52, %c0_53, %c384_54] : memref<2x64x512xbf16, #tpu.memory_space<vmem>>, vector<1x64x32xbf16>
    %145 = vector.shape_cast %144 : vector<1x64x32xbf16> to vector<64x32xbf16>
    %c1_55 = arith.constant 1 : index
    %c0_56 = arith.constant 0 : index
    %146 = vector.load %arg2[%c1_55, %c0_56] : memref<6x512xf32, #tpu.memory_space<vmem>>, vector<1x96xf32>
    %c1_57 = arith.constant 1 : index
    %c128_58 = arith.constant 128 : index
    %147 = vector.load %arg2[%c1_57, %c128_58] : memref<6x512xf32, #tpu.memory_space<vmem>>, vector<1x32xf32>
    %c1_59 = arith.constant 1 : index
    %c256_60 = arith.constant 256 : index
    %148 = vector.load %arg2[%c1_59, %c256_60] : memref<6x512xf32, #tpu.memory_space<vmem>>, vector<1x64xf32>
    %c1_61 = arith.constant 1 : index
    %c384_62 = arith.constant 384 : index
    %149 = vector.load %arg2[%c1_61, %c384_62] : memref<6x512xf32, #tpu.memory_space<vmem>>, vector<1x32xf32>
    %cst_63 = arith.constant dense<0.000000e+00> : vector<16xf32>
    %150 = vector.multi_reduction <add>, %137, %cst_63 [1] : vector<16x32xf32> to vector<16xf32>
    %151 = vector.shape_cast %150 : vector<16xf32> to vector<16x1xf32>
    %cst_64 = arith.constant 3.200000e+01 : f32
    %152 = vector.broadcast %cst_64 : f32 to vector<16x1xf32>
    %153 = arith.divf %151, %152 : vector<16x1xf32>
    %154 = vector.broadcast %153 : vector<16x1xf32> to vector<16x32xf32>
    %155 = arith.subf %137, %154 : vector<16x32xf32>
    %156 = arith.mulf %155, %155 : vector<16x32xf32>
    %cst_65 = arith.constant dense<0.000000e+00> : vector<16xf32>
    %157 = vector.multi_reduction <add>, %156, %cst_65 [1] : vector<16x32xf32> to vector<16xf32>
    %158 = vector.shape_cast %157 : vector<16xf32> to vector<16x1xf32>
    %cst_66 = arith.constant 3.200000e+01 : f32
    %159 = vector.broadcast %cst_66 : f32 to vector<16x1xf32>
    %160 = arith.divf %158, %159 : vector<16x1xf32>
    %161 = vector.broadcast %153 : vector<16x1xf32> to vector<16x32xf32>
    %162 = arith.subf %137, %161 : vector<16x32xf32>
    %cst_67 = arith.constant 9.99999974E-6 : f32
    %163 = vector.broadcast %cst_67 : f32 to vector<16x1xf32>
    %164 = arith.addf %160, %163 : vector<16x1xf32>
    %165 = math.rsqrt %164 : vector<16x1xf32>
    %166 = vector.broadcast %165 : vector<16x1xf32> to vector<16x32xf32>
    %167 = arith.mulf %162, %166 : vector<16x32xf32>
    %168 = vector.broadcast %1 : vector<1x32xf32> to vector<16x32xf32>
    %169 = arith.mulf %167, %168 : vector<16x32xf32>
    %170 = vector.broadcast %2 : vector<1x32xf32> to vector<16x32xf32>
    %171 = arith.addf %169, %170 : vector<16x32xf32>
    %172 = arith.truncf %171 : vector<16x32xf32> to vector<16x32xbf16>
    %cst_68 = arith.constant dense<0.000000e+00> : vector<16x96xf32>
    %173 = tpu.matmul %172, %139, %cst_68 {dimension_numbers = #tpu.dot_dimension_numbers<[1], [0], [0], [1], [0, 0, 1, 1], [], []>} : vector<16x32xbf16>, vector<32x96xbf16>, vector<16x96xf32> -> vector<16x96xf32>
    %174 = vector.broadcast %146 : vector<1x96xf32> to vector<16x96xf32>
    %175 = arith.addf %173, %174 : vector<16x96xf32>
    %176 = vector.extract_strided_slice %175 {offsets = [0, 0], sizes = [8, 96], strides = [1, 1]} : vector<16x96xf32> to vector<8x96xf32>
    %177 = tpu.transpose %176, [1, 0] : vector<8x96xf32> -> vector<96x8xf32>
    %178 = vector.shape_cast %177 : vector<96x8xf32> to vector<3x4x8x8xf32>
    %179 = vector.extract_strided_slice %178 {offsets = [0, 0, 0, 0], sizes = [1, 4, 8, 8], strides = [1, 1, 1, 1]} : vector<3x4x8x8xf32> to vector<1x4x8x8xf32>
    %180 = vector.shape_cast %179 : vector<1x4x8x8xf32> to vector<4x8x8xf32>
    %181 = tpu.transpose %180, [0, 2, 1] : vector<4x8x8xf32> -> vector<4x8x8xf32>
    %182 = vector.extract_strided_slice %178 {offsets = [1, 0, 0, 0], sizes = [1, 4, 8, 8], strides = [1, 1, 1, 1]} : vector<3x4x8x8xf32> to vector<1x4x8x8xf32>
    %183 = vector.shape_cast %182 : vector<1x4x8x8xf32> to vector<4x8x8xf32>
    %184 = vector.extract_strided_slice %178 {offsets = [2, 0, 0, 0], sizes = [1, 4, 8, 8], strides = [1, 1, 1, 1]} : vector<3x4x8x8xf32> to vector<1x4x8x8xf32>
    %185 = vector.shape_cast %184 : vector<1x4x8x8xf32> to vector<4x8x8xf32>
    %186 = arith.truncf %181 : vector<4x8x8xf32> to vector<4x8x8xbf16>
    %187 = arith.truncf %183 : vector<4x8x8xf32> to vector<4x8x8xbf16>
    "tpu.trace_start"() <{level = 10 : i32, message = "hsd,hdt->hst"}> : () -> ()
    %cst_69 = arith.constant dense<0.000000e+00> : vector<4x8x8xf32>
    %188 = tpu.matmul %186, %187, %cst_69 {dimension_numbers = #tpu.dot_dimension_numbers<[2], [1], [1], [2], [0, 0, 0, 1, 1, 2], [0], [0]>} : vector<4x8x8xbf16>, vector<4x8x8xbf16>, vector<4x8x8xf32> -> vector<4x8x8xf32>
    "tpu.trace_stop"() : () -> ()
    %cst_70 = arith.constant dense<0xFF800000> : vector<4x8xf32>
    %189 = vector.multi_reduction <maximumf>, %188, %cst_70 [2] : vector<4x8x8xf32> to vector<4x8xf32>
    %190 = vector.shape_cast %189 : vector<4x8xf32> to vector<4x8x1xf32>
    %191 = vector.broadcast %190 : vector<4x8x1xf32> to vector<4x8x8xf32>
    %192 = arith.subf %188, %191 : vector<4x8x8xf32>
    %193 = math.exp %192 : vector<4x8x8xf32>
    %cst_71 = arith.constant dense<0.000000e+00> : vector<4x8xf32>
    %194 = vector.multi_reduction <add>, %193, %cst_71 [2] : vector<4x8x8xf32> to vector<4x8xf32>
    %195 = vector.shape_cast %194 : vector<4x8xf32> to vector<4x8x1xf32>
    %196 = tpu.reciprocal %195 {approx = true} : vector<4x8x1xf32> -> vector<4x8x1xf32>
    %197 = vector.broadcast %196 : vector<4x8x1xf32> to vector<4x8x8xf32>
    %198 = arith.mulf %193, %197 : vector<4x8x8xf32>
    %199 = arith.truncf %185 : vector<4x8x8xf32> to vector<4x8x8xbf16>
    %200 = arith.truncf %198 : vector<4x8x8xf32> to vector<4x8x8xbf16>
    "tpu.trace_start"() <{level = 10 : i32, message = "hdt,hst->hds"}> : () -> ()
    %cst_72 = arith.constant dense<0.000000e+00> : vector<4x8x8xf32>
    %201 = tpu.matmul %199, %200, %cst_72 {dimension_numbers = #tpu.dot_dimension_numbers<[2], [2], [1], [1], [0, 0, 0, 1, 1, 1], [0], [0]>} : vector<4x8x8xbf16>, vector<4x8x8xbf16>, vector<4x8x8xf32> -> vector<4x8x8xf32>
    "tpu.trace_stop"() : () -> ()
    %202 = vector.shape_cast %201 : vector<4x8x8xf32> to vector<32x8xf32>
    %203 = tpu.transpose %202, [1, 0] : vector<32x8xf32> -> vector<8x32xf32>
    %204 = vector.extract_strided_slice %175 {offsets = [8, 0], sizes = [8, 96], strides = [1, 1]} : vector<16x96xf32> to vector<8x96xf32>
    %205 = tpu.transpose %204, [1, 0] : vector<8x96xf32> -> vector<96x8xf32>
    %206 = vector.shape_cast %205 : vector<96x8xf32> to vector<3x4x8x8xf32>
    %207 = vector.extract_strided_slice %206 {offsets = [0, 0, 0, 0], sizes = [1, 4, 8, 8], strides = [1, 1, 1, 1]} : vector<3x4x8x8xf32> to vector<1x4x8x8xf32>
    %208 = vector.shape_cast %207 : vector<1x4x8x8xf32> to vector<4x8x8xf32>
    %209 = tpu.transpose %208, [0, 2, 1] : vector<4x8x8xf32> -> vector<4x8x8xf32>
    %210 = vector.extract_strided_slice %206 {offsets = [1, 0, 0, 0], sizes = [1, 4, 8, 8], strides = [1, 1, 1, 1]} : vector<3x4x8x8xf32> to vector<1x4x8x8xf32>
    %211 = vector.shape_cast %210 : vector<1x4x8x8xf32> to vector<4x8x8xf32>
    %212 = vector.extract_strided_slice %206 {offsets = [2, 0, 0, 0], sizes = [1, 4, 8, 8], strides = [1, 1, 1, 1]} : vector<3x4x8x8xf32> to vector<1x4x8x8xf32>
    %213 = vector.shape_cast %212 : vector<1x4x8x8xf32> to vector<4x8x8xf32>
    %214 = arith.truncf %209 : vector<4x8x8xf32> to vector<4x8x8xbf16>
    %215 = arith.truncf %211 : vector<4x8x8xf32> to vector<4x8x8xbf16>
    "tpu.trace_start"() <{level = 10 : i32, message = "hsd,hdt->hst"}> : () -> ()
    %cst_73 = arith.constant dense<0.000000e+00> : vector<4x8x8xf32>
    %216 = tpu.matmul %214, %215, %cst_73 {dimension_numbers = #tpu.dot_dimension_numbers<[2], [1], [1], [2], [0, 0, 0, 1, 1, 2], [0], [0]>} : vector<4x8x8xbf16>, vector<4x8x8xbf16>, vector<4x8x8xf32> -> vector<4x8x8xf32>
    "tpu.trace_stop"() : () -> ()
    %cst_74 = arith.constant dense<0xFF800000> : vector<4x8xf32>
    %217 = vector.multi_reduction <maximumf>, %216, %cst_74 [2] : vector<4x8x8xf32> to vector<4x8xf32>
    %218 = vector.shape_cast %217 : vector<4x8xf32> to vector<4x8x1xf32>
    %219 = vector.broadcast %218 : vector<4x8x1xf32> to vector<4x8x8xf32>
    %220 = arith.subf %216, %219 : vector<4x8x8xf32>
    %221 = math.exp %220 : vector<4x8x8xf32>
    %cst_75 = arith.constant dense<0.000000e+00> : vector<4x8xf32>
    %222 = vector.multi_reduction <add>, %221, %cst_75 [2] : vector<4x8x8xf32> to vector<4x8xf32>
    %223 = vector.shape_cast %222 : vector<4x8xf32> to vector<4x8x1xf32>
    %224 = tpu.reciprocal %223 {approx = true} : vector<4x8x1xf32> -> vector<4x8x1xf32>
    %225 = vector.broadcast %224 : vector<4x8x1xf32> to vector<4x8x8xf32>
    %226 = arith.mulf %221, %225 : vector<4x8x8xf32>
    %227 = arith.truncf %213 : vector<4x8x8xf32> to vector<4x8x8xbf16>
    %228 = arith.truncf %226 : vector<4x8x8xf32> to vector<4x8x8xbf16>
    "tpu.trace_start"() <{level = 10 : i32, message = "hdt,hst->hds"}> : () -> ()
    %cst_76 = arith.constant dense<0.000000e+00> : vector<4x8x8xf32>
    %229 = tpu.matmul %227, %228, %cst_76 {dimension_numbers = #tpu.dot_dimension_numbers<[2], [2], [1], [1], [0, 0, 0, 1, 1, 1], [0], [0]>} : vector<4x8x8xbf16>, vector<4x8x8xbf16>, vector<4x8x8xf32> -> vector<4x8x8xf32>
    "tpu.trace_stop"() : () -> ()
    %230 = vector.shape_cast %229 : vector<4x8x8xf32> to vector<32x8xf32>
    %231 = tpu.transpose %230, [1, 0] : vector<32x8xf32> -> vector<8x32xf32>
    %232 = tpu.concatenate %203, %231 in 0 : vector<8x32xf32>, vector<8x32xf32> -> vector<16x32xf32>
    %233 = arith.truncf %232 : vector<16x32xf32> to vector<16x32xbf16>
    %cst_77 = arith.constant dense<0.000000e+00> : vector<16x32xf32>
    %234 = tpu.matmul %233, %141, %cst_77 {dimension_numbers = #tpu.dot_dimension_numbers<[1], [0], [0], [1], [0, 0, 1, 1], [], []>} : vector<16x32xbf16>, vector<32x32xbf16>, vector<16x32xf32> -> vector<16x32xf32>
    %235 = vector.broadcast %147 : vector<1x32xf32> to vector<16x32xf32>
    %236 = arith.addf %234, %235 : vector<16x32xf32>
    %237 = arith.addf %137, %236 : vector<16x32xf32>
    %cst_78 = arith.constant dense<0.000000e+00> : vector<16xf32>
    %238 = vector.multi_reduction <add>, %237, %cst_78 [1] : vector<16x32xf32> to vector<16xf32>
    %239 = vector.shape_cast %238 : vector<16xf32> to vector<16x1xf32>
    %cst_79 = arith.constant 3.200000e+01 : f32
    %240 = vector.broadcast %cst_79 : f32 to vector<16x1xf32>
    %241 = arith.divf %239, %240 : vector<16x1xf32>
    %242 = vector.broadcast %241 : vector<16x1xf32> to vector<16x32xf32>
    %243 = arith.subf %237, %242 : vector<16x32xf32>
    %244 = arith.mulf %243, %243 : vector<16x32xf32>
    %cst_80 = arith.constant dense<0.000000e+00> : vector<16xf32>
    %245 = vector.multi_reduction <add>, %244, %cst_80 [1] : vector<16x32xf32> to vector<16xf32>
    %246 = vector.shape_cast %245 : vector<16xf32> to vector<16x1xf32>
    %cst_81 = arith.constant 3.200000e+01 : f32
    %247 = vector.broadcast %cst_81 : f32 to vector<16x1xf32>
    %248 = arith.divf %246, %247 : vector<16x1xf32>
    %249 = vector.broadcast %241 : vector<16x1xf32> to vector<16x32xf32>
    %250 = arith.subf %237, %249 : vector<16x32xf32>
    %cst_82 = arith.constant 9.99999974E-6 : f32
    %251 = vector.broadcast %cst_82 : f32 to vector<16x1xf32>
    %252 = arith.addf %248, %251 : vector<16x1xf32>
    %253 = math.rsqrt %252 : vector<16x1xf32>
    %254 = vector.broadcast %253 : vector<16x1xf32> to vector<16x32xf32>
    %255 = arith.mulf %250, %254 : vector<16x32xf32>
    %256 = vector.broadcast %3 : vector<1x32xf32> to vector<16x32xf32>
    %257 = arith.mulf %255, %256 : vector<16x32xf32>
    %258 = vector.broadcast %4 : vector<1x32xf32> to vector<16x32xf32>
    %259 = arith.addf %257, %258 : vector<16x32xf32>
    %260 = arith.truncf %259 : vector<16x32xf32> to vector<16x32xbf16>
    %cst_83 = arith.constant dense<0.000000e+00> : vector<16x64xf32>
    %261 = tpu.matmul %260, %143, %cst_83 {dimension_numbers = #tpu.dot_dimension_numbers<[1], [0], [0], [1], [0, 0, 1, 1], [], []>} : vector<16x32xbf16>, vector<32x64xbf16>, vector<16x64xf32> -> vector<16x64xf32>
    %262 = vector.broadcast %148 : vector<1x64xf32> to vector<16x64xf32>
    %263 = arith.addf %261, %262 : vector<16x64xf32>
    %cst_84 = arith.constant 0.000000e+00 : f32
    %264 = vector.broadcast %cst_84 : f32 to vector<16x64xf32>
    %265 = arith.maximumf %263, %264 : vector<16x64xf32>
    %266 = arith.truncf %265 : vector<16x64xf32> to vector<16x64xbf16>
    %cst_85 = arith.constant dense<0.000000e+00> : vector<16x32xf32>
    %267 = tpu.matmul %266, %145, %cst_85 {dimension_numbers = #tpu.dot_dimension_numbers<[1], [0], [0], [1], [0, 0, 1, 1], [], []>} : vector<16x64xbf16>, vector<64x32xbf16>, vector<16x32xf32> -> vector<16x32xf32>
    %268 = vector.broadcast %149 : vector<1x32xf32> to vector<16x32xf32>
    %269 = arith.addf %267, %268 : vector<16x32xf32>
    %270 = arith.addf %237, %269 : vector<16x32xf32>
    %c0_86 = arith.constant 0 : index
    %c0_87 = arith.constant 0 : index
    %271 = vector.load %arg3[%c0_86, %c0_87] : memref<16x32xf32, #tpu.memory_space<vmem>>, vector<16x32xf32>
    tpu.vector_store %arg3[%c0_86, %c0_87], %270 {strides = array<i32>} : memref<16x32xf32, #tpu.memory_space<vmem>>, vector<16x32xf32>,
    return
  }
}

</mosaic_0001>

<llo_original>
// kernel: tpu_custom_call.1
$region0: #{tpu_custom_call.1}
  #allocation0 [shape = 'u32[]', space=smem, size = 0x4, offset = 0x4, fixed_abs, tag = 'smem constant byte address 0x4 - core index']
  #allocation1 [shape = 'u32[144,128]{1,0:T(1,128)}', space=vmem, size = 0x12000, scoped, tag = 'internal scratch']
  %s0 = inlined_call_operand.hbm [shape: f32[16,32], index: 0, kind: input, shape index: {}]
  %s1 = inlined_call_operand.hbm [shape: bf16[2,64,512], index: 1, kind: input, shape index: {}]
  %s2 = inlined_call_operand.hbm [shape: f32[6,512], index: 2, kind: input, shape index: {}]
  %s3 = inlined_call_operand.hbm [shape: f32[16,32], index: 3, kind: output, shape index: {}]
  %s4 = sld [smem:[#allocation0]]
  $region34: #{tpu_custom_call.1} parent=0
    _
  %s6 = ssub.s32 1, %s4
  %s7 = scalar_select 0, %s6, %s4
  $region1: #{tpu_custom_call.1} parent=0
    #allocation2 [shape = 'u8[8192]{0}', space=vmem, size = 0x2000, scoped, tag = 'input window, operand 0, single buffered']
    #allocation3 [shape = 's32[1]{0}', space=sflag, size = 0x4, scoped, tag = 'scoped memory for tpu_custom_call.1']
    #allocation4 [shape = 's32[1]{0}', space=sflag, size = 0x4, scoped, tag = 'scoped memory for tpu_custom_call.1']
    #allocation5 [shape = 'u8[131072]{0}', space=vmem, size = 0x20000, scoped, tag = 'input window, operand 1, single buffered']
    #allocation6 [shape = 's32[1]{0}', space=sflag, size = 0x4, scoped, tag = 'scoped memory for tpu_custom_call.1']
    #allocation7 [shape = 'u8[16384]{0}', space=vmem, size = 0x4000, scoped, tag = 'input window, operand 2, single buffered']
    #allocation8 [shape = 'u8[8192]{0}', space=vmem, size = 0x2000, scoped, tag = 'output window, operand 0, single buffered']
    %8 = vsyncpa [#allocation3], 0
    %9 = vsyncpa [#allocation6], 0
    %10 = vsyncpa [#allocation4], 0
    // Predicated region
    $region2: #{tpu_custom_call.1} parent=1 // pred_check
      _
    $region3: #{tpu_custom_call.1} parent=1 // pred_check_branch
      %12 = sbr.rel (0) target = $region5
    $region4: #{tpu_custom_call.1} parent=1 // pred_region
      %s14 = ssub.s32 256, 256
      %15 = vsyncadd [#allocation3], %s14
      %s16 = sshll.u32 [#allocation2], 4
      %s17 = int_to_ptr.vmem [resolvable:$true] %s16
      %22 = dma.hbm_to_vmem [thread:$0]  %s0, 256, %s17, [#allocation3], 128, 128, 8
    $region5: #{tpu_custom_call.1} parent=1 // pred_fallthru
      _
    // Predicated region
    $region6: #{tpu_custom_call.1} parent=1 // pred_check
      _
    $region7: #{tpu_custom_call.1} parent=1 // pred_check_branch
      %24 = sbr.rel (0) target = $region9
    $region8: #{tpu_custom_call.1} parent=1 // pred_region
      %s26 = ssub.s32 4096, 4096
      %27 = vsyncadd [#allocation6], %s26
      %s28 = sshll.u32 [#allocation5], 4
      %s29 = int_to_ptr.vmem [resolvable:$true] %s28
      %34 = dma.hbm_to_vmem [thread:$0]  %s1, 4096, %s29, [#allocation6], 256, 256, 16
    $region9: #{tpu_custom_call.1} parent=1 // pred_fallthru
      _
    // Predicated region
    $region10: #{tpu_custom_call.1} parent=1 // pred_check
      _
    $region11: #{tpu_custom_call.1} parent=1 // pred_check_branch
      %36 = sbr.rel (0) target = $region13
    $region12: #{tpu_custom_call.1} parent=1 // pred_region
      %s38 = ssub.s32 512, 512
      %39 = vsyncadd [#allocation6], %s38
      %s41 = sshll.u32 [#allocation7], 4
      %s42 = int_to_ptr.vmem [resolvable:$true] %s41
      %44 = dma.hbm_to_vmem [thread:$0]  %s2, 512, %s42, [#allocation6]
    $region13: #{tpu_custom_call.1} parent=1 // pred_fallthru
      _
    // Predicated region
    $region14: #{tpu_custom_call.1} parent=1 // pred_check
      _
    $region15: #{tpu_custom_call.1} parent=1 // pred_check_branch
      %46 = sbr.rel (0) target = $region17
    $region16: #{tpu_custom_call.1} parent=1 // pred_region
      %47 = dma.done [#allocation3], 256
    $region17: #{tpu_custom_call.1} parent=1 // pred_fallthru
      _
    // Predicated region
    $region18: #{tpu_custom_call.1} parent=1 // pred_check
      _
    $region19: #{tpu_custom_call.1} parent=1 // pred_check_branch
      %49 = sbr.rel (0) target = $region21
    $region20: #{tpu_custom_call.1} parent=1 // pred_region
      %50 = dma.done [#allocation6], 4096
    $region21: #{tpu_custom_call.1} parent=1 // pred_fallthru
      _
    // Predicated region
    $region22: #{tpu_custom_call.1} parent=1 // pred_check
      _
    $region23: #{tpu_custom_call.1} parent=1 // pred_check_branch
      %52 = sbr.rel (0) target = $region25
    $region24: #{tpu_custom_call.1} parent=1 // pred_region
      %53 = dma.done [#allocation6], 512
    $region25: #{tpu_custom_call.1} parent=1 // pred_fallthru
      _
    %v55 = vld [vmem:[#allocation2] sm:$0xff]
    %v56 = vld [vmem:[#allocation2 + $0x8] sm:$0xff]
    %v57 = vld [vmem:[#allocation7 + $0x2] ss:$0 sm:$0xff]
    %v58 = vld [vmem:[#allocation7 + $0x3] ss:$0 sm:$0xff]
    %v59 = vld [vmem:[#allocation7 + $0x4] ss:$0 sm:$0xff]
    %v60 = vld [vmem:[#allocation7 + $0x5] ss:$0 sm:$0xff]
    %v61 = vld [vmem:[#allocation5] sm:$0xf]
    %v62 = vld [vmem:[#allocation5 + $0x10] sm:$0xf]
    %v63 = vld [vmem:[#allocation5 + $0x20] sm:$0xf]
    %v64 = vld [vmem:[#allocation5 + $0x30] sm:$0xf]
    %v65 = vld [vmem:[#allocation5 + $0x4] sm:$0xf]
    %v66 = vld [vmem:[#allocation5 + $0x14] sm:$0xf]
    %v67 = vld [vmem:[#allocation5 + $0x24] sm:$0xf]
    %v68 = vld [vmem:[#allocation5 + $0x34] sm:$0xf]
    %v69 = vld [vmem:[#allocation5 + $0x8] sm:$0xf]
    %v70 = vld [vmem:[#allocation5 + $0x18] sm:$0xf]
    %v71 = vld [vmem:[#allocation5 + $0x28] sm:$0xf]
    %v72 = vld [vmem:[#allocation5 + $0x38] sm:$0xf]
    %v73 = vld [vmem:[#allocation5 + $0xc] sm:$0xf]
    %v74 = vld [vmem:[#allocation5 + $0x1c] sm:$0xf]
    %v75 = vld [vmem:[#allocation5 + $0x2c] sm:$0xf]
    %v76 = vld [vmem:[#allocation5 + $0x3c] sm:$0xf]
    %v77 = vld [vmem:[#allocation5 + $0x4c] sm:$0xf]
    %v78 = vld [vmem:[#allocation5 + $0x5c] sm:$0xf]
    %v79 = vld [vmem:[#allocation5 + $0x6c] sm:$0xf]
    %v80 = vld [vmem:[#allocation5 + $0x7c] sm:$0xf]
    %v81 = vld [vmem:[#allocation7] ss:$0 sm:$0xff]
    %v82 = vld [vmem:[#allocation7 + $0x8] ss:$0 sm:$0xff]
    %v83 = vld [vmem:[#allocation7 + $0x10] ss:$0 sm:$0xff]
    %v84 = vld [vmem:[#allocation7 + $0x18] ss:$0 sm:$0xff]
    %vm85 = vcmask 261120
    %v86 = vsel %vm85, %v55, 0.0
    %87 = vadd.xlane.f32.xlu0 %v86
    %v88 = vpop.xlane.xlu0 %87
    %v89 = vsel %vm85, %v56, 0.0
    %90 = vadd.xlane.f32.xlu0 %v89
    %v91 = vpop.xlane.xlu0 %90
    %v92 = vrcp.pop 32.0
    %v93 = vmul.f32 %v88, %v92
    %v94 = vmul.f32 %v91, %v92
    %v95 = vsub.f32 %v55, %v93
    %v96 = vsub.f32 %v56, %v94
    %v97 = vmul.f32 %v95, %v95
    %v98 = vmul.f32 %v96, %v96
    %v99 = vsel %vm85, %v97, 0.0
    %100 = vadd.xlane.f32.xlu0 %v99
    %v101 = vpop.xlane.xlu0 %100
    %v102 = vsel %vm85, %v98, 0.0
    %103 = vadd.xlane.f32.xlu0 %v102
    %v104 = vpop.xlane.xlu0 %103
    %v105 = vmul.f32 %v101, %v92
    %v106 = vmul.f32 %v104, %v92
    %v107 = vadd.f32 %v105, 1e-05
    %v108 = vadd.f32 %v106, 1e-05
    %v109 = vrsqrt.pop %v107
    %v110 = vrsqrt.pop %v108
    %v111 = vmul.f32 %v95, %v109
    %v112 = vmul.f32 %v96, %v110
    %v113 = vmul.f32 %v111, %v57
    %v114 = vmul.f32 %v112, %v57
    %v115 = vadd.f32 %v113, %v58
    %v116 = vadd.f32 %v114, %v58
    %v117 = vpack.c.bf16 %v116, %v115
    %v122 = vunpack.c.l.b16 %v61
    %v123 = vunpack.c.l.b16 %v62
    %v124 = vunpack.c.l.b16 %v63
    %v125 = vunpack.c.l.b16 %v64
    %v126 = vpack.c.b16 %v123, %v122
    %v127 = vpack.c.b16 %v125, %v124
    %v131 = vsel %vm85, %v117, 0
    %133 = vmatprep.subr.bf16.mxu0 0
    %134 = vmatpush1.bf16.msra.mxu0 %v126
    %135 = vmatprep.subr.bf16.mxu0 0
    %136 = vmatpush1.bf16.msra.mxu0 %v127
    %137 = vmatprep.subr.bf16.mxu0 0
    %138 = vmatpush1.bf16.msra.mxu0 0
    %139 = vmatprep.subr.bf16.mxu0 0
    %140 = vmatpush1.bf16.msra.mxu0 0
    %141 = vmatprep.subr.bf16.mxu0 0
    %142 = vmatpush1.bf16.msra.mxu0 0
    %143 = vmatprep.subr.bf16.mxu0 0
    %144 = vmatpush1.bf16.msra.mxu0 0
    %145 = vmatprep.subr.bf16.mxu0 0
    %146 = vmatpush1.bf16.msra.mxu0 0
    %147 = vmatprep.subr.bf16.mxu0 0
    %148 = vmatpush1.bf16.msra.mxu0 0
    %149 = vmatprep.subr.bf16.mxu0 0
    %150 = vmatpush1.bf16.msra.mxu0 0
    %151 = vmatprep.subr.bf16.mxu0 0
    %152 = vmatpush1.bf16.msra.mxu0 0
    %153 = vmatprep.subr.bf16.mxu0 0
    %154 = vmatpush1.bf16.msra.mxu0 0
    %155 = vmatprep.subr.bf16.mxu0 0
    %156 = vmatpush1.bf16.msra.mxu0 0
    %157 = vmatprep.subr.bf16.mxu0 0
    %158 = vmatpush1.bf16.msra.mxu0 0
    %159 = vmatprep.subr.bf16.mxu0 0
    %160 = vmatpush1.bf16.msra.mxu0 0
    %161 = vmatprep.subr.bf16.mxu0 0
    %162 = vmatpush1.bf16.msra.mxu0 0
    %163 = vmatprep.subr.bf16.mxu0 0
    %164 = vmatpush1.bf16.msra.mxu0 0
    %165 = vmatprep.mubr.bf16.mxu0 0
    %166 = vmatmul.mubr.bf16.gmra.mrb[0].mxu0 %v131
    %v167 = vpop.f32.mrb[0].mxu0
    %v168 = vadd.f32 %v81, %v167
    %v169 = vpop.f32.mrb[0].mxu0
    %v170 = vpop.f32.mrb[0].mxu0
    %v171 = vadd.f32 %v81, %v170
    %v172 = vpop.f32.mrb[0].mxu0
    %173 = vdwg.mxu0
    %174 = vxpose.xlu0.b32.start [1/16] %v168, 128
    %175 = vxpose.xlu0.b32.cont [2/16] 0.0, 128
    %176 = vxpose.xlu0.b32.cont [3/16] 0.0, 128
    %177 = vxpose.xlu0.b32.cont [4/16] 0.0, 128
    %178 = vxpose.xlu0.b32.cont [5/16] 0.0, 128
    %179 = vxpose.xlu0.b32.cont [6/16] 0.0, 128
    %180 = vxpose.xlu0.b32.cont [7/16] 0.0, 128
    %181 = vxpose.xlu0.b32.cont [8/16] 0.0, 128
    %182 = vxpose.xlu0.b32.cont [9/16] 0.0, 128
    %183 = vxpose.xlu0.b32.cont [10/16] 0.0, 128
    %184 = vxpose.xlu0.b32.cont [11/16] 0.0, 128
    %185 = vxpose.xlu0.b32.cont [12/16] 0.0, 128
    %186 = vxpose.xlu0.b32.cont [13/16] 0.0, 128
    %187 = vxpose.xlu0.b32.cont [14/16] 0.0, 128
    %188 = vxpose.xlu0.b32.cont [15/16] 0.0, 128
    %189 = vxpose.xlu0.b32.end [16/16] 0.0, 128
    %v190 = vpop.trf.xlu0
    %v191 = vpop.trf.xlu0
    %v192 = vpop.trf.xlu0
    %v193 = vpop.trf.xlu0
    %v194 = vpop.trf.xlu0
    %v195 = vpop.trf.xlu0
    %v196 = vpop.trf.xlu0
    %v197 = vpop.trf.xlu0
    %v198 = vpop.trf.xlu0
    %v199 = vpop.trf.xlu0
    %v200 = vpop.trf.xlu0
    %v201 = vpop.trf.xlu0
    %v202 = vpop.trf.xlu0
    %v203 = vpop.trf.xlu0
    %v204 = vpop.trf.xlu0
    %v205 = vpop.trf.xlu0
    %206 = vxpose.xlu0.b32.start [1/16] %v190, 128
    %207 = vxpose.xlu0.b32.cont [2/16] 0.0, 128
    %208 = vxpose.xlu0.b32.cont [3/16] 0.0, 128
    %209 = vxpose.xlu0.b32.cont [4/16] 0.0, 128
    %210 = vxpose.xlu0.b32.cont [5/16] 0.0, 128
    %211 = vxpose.xlu0.b32.cont [6/16] 0.0, 128
    %212 = vxpose.xlu0.b32.cont [7/16] 0.0, 128
    %213 = vxpose.xlu0.b32.cont [8/16] 0.0, 128
    %214 = vxpose.xlu0.b32.cont [9/16] 0.0, 128
    %215 = vxpose.xlu0.b32.cont [10/16] 0.0, 128
    %216 = vxpose.xlu0.b32.cont [11/16] 0.0, 128
    %217 = vxpose.xlu0.b32.cont [12/16] 0.0, 128
    %218 = vxpose.xlu0.b32.cont [13/16] 0.0, 128
    %219 = vxpose.xlu0.b32.cont [14/16] 0.0, 128
    %220 = vxpose.xlu0.b32.cont [15/16] 0.0, 128
    %221 = vxpose.xlu0.b32.end [16/16] 0.0, 128
    %v222 = vpop.trf.xlu0
    %v223 = vpop.trf.xlu0
    %v224 = vpop.trf.xlu0
    %v225 = vpop.trf.xlu0
    %v226 = vpop.trf.xlu0
    %v227 = vpop.trf.xlu0
    %v228 = vpop.trf.xlu0
    %v229 = vpop.trf.xlu0
    %v230 = vpop.trf.xlu0
    %v231 = vpop.trf.xlu0
    %v232 = vpop.trf.xlu0
    %v233 = vpop.trf.xlu0
    %v234 = vpop.trf.xlu0
    %v235 = vpop.trf.xlu0
    %v236 = vpop.trf.xlu0
    %v237 = vpop.trf.xlu0
    %238 = vxpose.xlu0.b32.start [1/16] %v191, 128
    %239 = vxpose.xlu0.b32.cont [2/16] 0.0, 128
    %240 = vxpose.xlu0.b32.cont [3/16] 0.0, 128
    %241 = vxpose.xlu0.b32.cont [4/16] 0.0, 128
    %242 = vxpose.xlu0.b32.cont [5/16] 0.0, 128
    %243 = vxpose.xlu0.b32.cont [6/16] 0.0, 128
    %244 = vxpose.xlu0.b32.cont [7/16] 0.0, 128
    %245 = vxpose.xlu0.b32.cont [8/16] 0.0, 128
    %246 = vxpose.xlu0.b32.cont [9/16] 0.0, 128
    %247 = vxpose.xlu0.b32.cont [10/16] 0.0, 128
    %248 = vxpose.xlu0.b32.cont [11/16] 0.0, 128
    %249 = vxpose.xlu0.b32.cont [12/16] 0.0, 128
    %250 = vxpose.xlu0.b32.cont [13/16] 0.0, 128
    %251 = vxpose.xlu0.b32.cont [14/16] 0.0, 128
    %252 = vxpose.xlu0.b32.cont [15/16] 0.0, 128
    %253 = vxpose.xlu0.b32.end [16/16] 0.0, 128
    %v254 = vpop.trf.xlu0
    %v255 = vpop.trf.xlu0
    %v256 = vpop.trf.xlu0
    %v257 = vpop.trf.xlu0
    %v258 = vpop.trf.xlu0
    %v259 = vpop.trf.xlu0
    %v260 = vpop.trf.xlu0
    %v261 = vpop.trf.xlu0
    %v262 = vpop.trf.xlu0
    %v263 = vpop.trf.xlu0
    %v264 = vpop.trf.xlu0
    %v265 = vpop.trf.xlu0
    %v266 = vpop.trf.xlu0
    %v267 = vpop.trf.xlu0
    %v268 = vpop.trf.xlu0
    %v269 = vpop.trf.xlu0
    %270 = vxpose.xlu0.b32.start [1/16] %v192, 128
    %271 = vxpose.xlu0.b32.cont [2/16] 0.0, 128
    %272 = vxpose.xlu0.b32.cont [3/16] 0.0, 128
    %273 = vxpose.xlu0.b32.cont [4/16] 0.0, 128
    %274 = vxpose.xlu0.b32.cont [5/16] 0.0, 128
    %275 = vxpose.xlu0.b32.cont [6/16] 0.0, 128
    %276 = vxpose.xlu0.b32.cont [7/16] 0.0, 128
    %277 = vxpose.xlu0.b32.cont [8/16] 0.0, 128
    %278 = vxpose.xlu0.b32.cont [9/16] 0.0, 128
    %279 = vxpose.xlu0.b32.cont [10/16] 0.0, 128
    %280 = vxpose.xlu0.b32.cont [11/16] 0.0, 128
    %281 = vxpose.xlu0.b32.cont [12/16] 0.0, 128
    %282 = vxpose.xlu0.b32.cont [13/16] 0.0, 128
    %283 = vxpose.xlu0.b32.cont [14/16] 0.0, 128
    %284 = vxpose.xlu0.b32.cont [15/16] 0.0, 128
    %285 = vxpose.xlu0.b32.end [16/16] 0.0, 128
    %v286 = vpop.trf.xlu0
    %v287 = vpop.trf.xlu0
    %v288 = vpop.trf.xlu0
    %v289 = vpop.trf.xlu0
    %v290 = vpop.trf.xlu0
    %v291 = vpop.trf.xlu0
    %v292 = vpop.trf.xlu0
    %v293 = vpop.trf.xlu0
    %v294 = vpop.trf.xlu0
    %v295 = vpop.trf.xlu0
    %v296 = vpop.trf.xlu0
    %v297 = vpop.trf.xlu0
    %v298 = vpop.trf.xlu0
    %v299 = vpop.trf.xlu0
    %v300 = vpop.trf.xlu0
    %v301 = vpop.trf.xlu0
    %302 = vxpose.xlu0.b32.start [1/16] %v193, 128
    %303 = vxpose.xlu0.b32.cont [2/16] 0.0, 128
    %304 = vxpose.xlu0.b32.cont [3/16] 0.0, 128
    %305 = vxpose.xlu0.b32.cont [4/16] 0.0, 128
    %306 = vxpose.xlu0.b32.cont [5/16] 0.0, 128
    %307 = vxpose.xlu0.b32.cont [6/16] 0.0, 128
    %308 = vxpose.xlu0.b32.cont [7/16] 0.0, 128
    %309 = vxpose.xlu0.b32.cont [8/16] 0.0, 128
    %310 = vxpose.xlu0.b32.cont [9/16] 0.0, 128
    %311 = vxpose.xlu0.b32.cont [10/16] 0.0, 128
    %312 = vxpose.xlu0.b32.cont [11/16] 0.0, 128
    %313 = vxpose.xlu0.b32.cont [12/16] 0.0, 128
    %314 = vxpose.xlu0.b32.cont [13/16] 0.0, 128
    %315 = vxpose.xlu0.b32.cont [14/16] 0.0, 128
    %316 = vxpose.xlu0.b32.cont [15/16] 0.0, 128
    %317 = vxpose.xlu0.b32.end [16/16] 0.0, 128
    %v318 = vpop.trf.xlu0
    %v319 = vpop.trf.xlu0
    %v320 = vpop.trf.xlu0
    %v321 = vpop.trf.xlu0
    %v322 = vpop.trf.xlu0
    %v323 = vpop.trf.xlu0
    %v324 = vpop.trf.xlu0
    %v325 = vpop.trf.xlu0
    %v326 = vpop.trf.xlu0
    %v327 = vpop.trf.xlu0
    %v328 = vpop.trf.xlu0
    %v329 = vpop.trf.xlu0
    %v330 = vpop.trf.xlu0
    %v331 = vpop.trf.xlu0
    %v332 = vpop.trf.xlu0
    %v333 = vpop.trf.xlu0
    %v334 = vpack.c.bf16 %v222, %v222
    %v335 = vpack.c.bf16 %v254, %v254
    %v336 = vpack.c.bf16 %v286, %v286
    %v337 = vpack.c.bf16 %v318, %v318
    %v338 = vpack.c.bf16 %v194, %v194
    %v339 = vpack.c.bf16 %v195, %v195
    %v340 = vpack.c.bf16 %v196, %v196
    %v341 = vpack.c.bf16 %v197, %v197
    %vm342 = vcmask 64512
    %v344 = vsel %vm342, %v334, 0
    %vm346 = vcmask 1043456
    %v348 = vsel %vm346, %v338, 0
    %350 = vmatprep.subr.bf16.mxu0 0
    %351 = vmatpush1.bf16.msra.mxu0 %v348
    %352 = vmatprep.subr.bf16.mxu0 0
    %353 = vmatpush1.bf16.msra.mxu0 0
    %354 = vmatprep.subr.bf16.mxu0 0
    %355 = vmatpush1.bf16.msra.mxu0 0
    %356 = vmatprep.subr.bf16.mxu0 0
    %357 = vmatpush1.bf16.msra.mxu0 0
    %358 = vmatprep.subr.bf16.mxu0 0
    %359 = vmatpush1.bf16.msra.mxu0 0
    %360 = vmatprep.subr.bf16.mxu0 0
    %361 = vmatpush1.bf16.msra.mxu0 0
    %362 = vmatprep.subr.bf16.mxu0 0
    %363 = vmatpush1.bf16.msra.mxu0 0
    %364 = vmatprep.subr.bf16.mxu0 0
    %365 = vmatpush1.bf16.msra.mxu0 0
    %366 = vmatprep.subr.bf16.mxu0 0
    %367 = vmatpush1.bf16.msra.mxu0 0
    %368 = vmatprep.subr.bf16.mxu0 0
    %369 = vmatpush1.bf16.msra.mxu0 0
    %370 = vmatprep.subr.bf16.mxu0 0
    %371 = vmatpush1.bf16.msra.mxu0 0
    %372 = vmatprep.subr.bf16.mxu0 0
    %373 = vmatpush1.bf16.msra.mxu0 0
    %374 = vmatprep.subr.bf16.mxu0 0
    %375 = vmatpush1.bf16.msra.mxu0 0
    %376 = vmatprep.subr.bf16.mxu0 0
    %377 = vmatpush1.bf16.msra.mxu0 0
    %378 = vmatprep.subr.bf16.mxu0 0
    %379 = vmatpush1.bf16.msra.mxu0 0
    %380 = vmatprep.subr.bf16.mxu0 0
    %381 = vmatpush1.bf16.msra.mxu0 0
    %382 = vmatprep.mubr.bf16.mxu0 0
    %383 = vmatmul.mubr.bf16.gmra.mrb[0].mxu0 %v344
    %v384 = vpop.f32.mrb[0].mxu0
    %v385 = vadd.f32 0.0, %v384
    %v386 = vpop.f32.mrb[0].mxu0
    %v387 = vpop.f32.mrb[0].mxu0
    %v388 = vpop.f32.mrb[0].mxu0
    %389 = vdwg.mxu0
    %v391 = vsel %vm342, %v335, 0
    %v394 = vsel %vm346, %v339, 0
    %396 = vmatprep.subr.bf16.mxu0 0
    %397 = vmatpush1.bf16.msra.mxu0 %v394
    %398 = vmatprep.subr.bf16.mxu0 0
    %399 = vmatpush1.bf16.msra.mxu0 0
    %400 = vmatprep.subr.bf16.mxu0 0
    %401 = vmatpush1.bf16.msra.mxu0 0
    %402 = vmatprep.subr.bf16.mxu0 0
    %403 = vmatpush1.bf16.msra.mxu0 0
    %404 = vmatprep.subr.bf16.mxu0 0
    %405 = vmatpush1.bf16.msra.mxu0 0
    %406 = vmatprep.subr.bf16.mxu0 0
    %407 = vmatpush1.bf16.msra.mxu0 0
    %408 = vmatprep.subr.bf16.mxu0 0
    %409 = vmatpush1.bf16.msra.mxu0 0
    %410 = vmatprep.subr.bf16.mxu0 0
    %411 = vmatpush1.bf16.msra.mxu0 0
    %412 = vmatprep.subr.bf16.mxu0 0
    %413 = vmatpush1.bf16.msra.mxu0 0
    %414 = vmatprep.subr.bf16.mxu0 0
    %415 = vmatpush1.bf16.msra.mxu0 0
    %416 = vmatprep.subr.bf16.mxu0 0
    %417 = vmatpush1.bf16.msra.mxu0 0
    %418 = vmatprep.subr.bf16.mxu0 0
    %419 = vmatpush1.bf16.msra.mxu0 0
    %420 = vmatprep.subr.bf16.mxu0 0
    %421 = vmatpush1.bf16.msra.mxu0 0
    %422 = vmatprep.subr.bf16.mxu0 0
    %423 = vmatpush1.bf16.msra.mxu0 0
    %424 = vmatprep.subr.bf16.mxu0 0
    %425 = vmatpush1.bf16.msra.mxu0 0
    %426 = vmatprep.subr.bf16.mxu0 0
    %427 = vmatpush1.bf16.msra.mxu0 0
    %428 = vmatprep.mubr.bf16.mxu0 0
    %429 = vmatmul.mubr.bf16.gmra.mrb[0].mxu0 %v391
    %v430 = vpop.f32.mrb[0].mxu0
    %v431 = vadd.f32 0.0, %v430
    %v432 = vpop.f32.mrb[0].mxu0
    %v433 = vpop.f32.mrb[0].mxu0
    %v434 = vpop.f32.mrb[0].mxu0
    %435 = vdwg.mxu0
    %v437 = vsel %vm342, %v336, 0
    %v440 = vsel %vm346, %v340, 0
    %442 = vmatprep.subr.bf16.mxu0 0
    %443 = vmatpush1.bf16.msra.mxu0 %v440
    %444 = vmatprep.subr.bf16.mxu0 0
    %445 = vmatpush1.bf16.msra.mxu0 0
    %446 = vmatprep.subr.bf16.mxu0 0
    %447 = vmatpush1.bf16.msra.mxu0 0
    %448 = vmatprep.subr.bf16.mxu0 0
    %449 = vmatpush1.bf16.msra.mxu0 0
    %450 = vmatprep.subr.bf16.mxu0 0
    %451 = vmatpush1.bf16.msra.mxu0 0
    %452 = vmatprep.subr.bf16.mxu0 0
    %453 = vmatpush1.bf16.msra.mxu0 0
    %454 = vmatprep.subr.bf16.mxu0 0
    %455 = vmatpush1.bf16.msra.mxu0 0
    %456 = vmatprep.subr.bf16.mxu0 0
    %457 = vmatpush1.bf16.msra.mxu0 0
    %458 = vmatprep.subr.bf16.mxu0 0
    %459 = vmatpush1.bf16.msra.mxu0 0
    %460 = vmatprep.subr.bf16.mxu0 0
    %461 = vmatpush1.bf16.msra.mxu0 0
    %462 = vmatprep.subr.bf16.mxu0 0
    %463 = vmatpush1.bf16.msra.mxu0 0
    %464 = vmatprep.subr.bf16.mxu0 0
    %465 = vmatpush1.bf16.msra.mxu0 0
    %466 = vmatprep.subr.bf16.mxu0 0
    %467 = vmatpush1.bf16.msra.mxu0 0
    %468 = vmatprep.subr.bf16.mxu0 0
    %469 = vmatpush1.bf16.msra.mxu0 0
    %470 = vmatprep.subr.bf16.mxu0 0
    %471 = vmatpush1.bf16.msra.mxu0 0
    %472 = vmatprep.subr.bf16.mxu0 0
    %473 = vmatpush1.bf16.msra.mxu0 0
    %474 = vmatprep.mubr.bf16.mxu0 0
    %475 = vmatmul.mubr.bf16.gmra.mrb[0].mxu0 %v437
    %v476 = vpop.f32.mrb[0].mxu0
    %v477 = vadd.f32 0.0, %v476
    %v478 = vpop.f32.mrb[0].mxu0
    %v479 = vpop.f32.mrb[0].mxu0
    %v480 = vpop.f32.mrb[0].mxu0
    %481 = vdwg.mxu0
    %v483 = vsel %vm342, %v337, 0
    %v486 = vsel %vm346, %v341, 0
    %488 = vmatprep.subr.bf16.mxu0 0
    %489 = vmatpush1.bf16.msra.mxu0 %v486
    %490 = vmatprep.subr.bf16.mxu0 0
    %491 = vmatpush1.bf16.msra.mxu0 0
    %492 = vmatprep.subr.bf16.mxu0 0
    %493 = vmatpush1.bf16.msra.mxu0 0
    %494 = vmatprep.subr.bf16.mxu0 0
    %495 = vmatpush1.bf16.msra.mxu0 0
    %496 = vmatprep.subr.bf16.mxu0 0
    %497 = vmatpush1.bf16.msra.mxu0 0
    %498 = vmatprep.subr.bf16.mxu0 0
    %499 = vmatpush1.bf16.msra.mxu0 0
    %500 = vmatprep.subr.bf16.mxu0 0
    %501 = vmatpush1.bf16.msra.mxu0 0
    %502 = vmatprep.subr.bf16.mxu0 0
    %503 = vmatpush1.bf16.msra.mxu0 0
    %504 = vmatprep.subr.bf16.mxu0 0
    %505 = vmatpush1.bf16.msra.mxu0 0
    %506 = vmatprep.subr.bf16.mxu0 0
    %507 = vmatpush1.bf16.msra.mxu0 0
    %508 = vmatprep.subr.bf16.mxu0 0
    %509 = vmatpush1.bf16.msra.mxu0 0
    %510 = vmatprep.subr.bf16.mxu0 0
    %511 = vmatpush1.bf16.msra.mxu0 0
    %512 = vmatprep.subr.bf16.mxu0 0
    %513 = vmatpush1.bf16.msra.mxu0 0
    %514 = vmatprep.subr.bf16.mxu0 0
    %515 = vmatpush1.bf16.msra.mxu0 0
    %516 = vmatprep.subr.bf16.mxu0 0
    %517 = vmatpush1.bf16.msra.mxu0 0
    %518 = vmatprep.subr.bf16.mxu0 0
    %519 = vmatpush1.bf16.msra.mxu0 0
    %520 = vmatprep.mubr.bf16.mxu0 0
    %521 = vmatmul.mubr.bf16.gmra.mrb[0].mxu0 %v483
    %v522 = vpop.f32.mrb[0].mxu0
    %v523 = vadd.f32 0.0, %v522
    %v524 = vpop.f32.mrb[0].mxu0
    %v525 = vpop.f32.mrb[0].mxu0
    %v526 = vpop.f32.mrb[0].mxu0
    %527 = vdwg.mxu0
    %v528 = vsel %vm342, %v385, -inf
    %529 = vmax.xlane.f32.xlu0 %v528
    %v530 = vpop.xlane.xlu0 %529
    %v531 = vsel %vm342, %v431, -inf
    %532 = vmax.xlane.f32.xlu0 %v531
    %v533 = vpop.xlane.xlu0 %532
    %v534 = vsel %vm342, %v477, -inf
    %535 = vmax.xlane.f32.xlu0 %v534
    %v536 = vpop.xlane.xlu0 %535
    %v537 = vsel %vm342, %v523, -inf
    %538 = vmax.xlane.f32.xlu0 %v537
    %v539 = vpop.xlane.xlu0 %538
    %v540 = vsub.f32 %v385, %v530
    %v541 = vsub.f32 %v431, %v533
    %v542 = vsub.f32 %v477, %v536
    %v543 = vsub.f32 %v523, %v539
    %v544 = vmul.f32 %v540, 1.442695
    %v545 = vpow.pop %v544
    %v546 = vmul.f32 %v541, 1.442695
    %v547 = vpow.pop %v546
    %v548 = vmul.f32 %v542, 1.442695
    %v549 = vpow.pop %v548
    %v550 = vmul.f32 %v543, 1.442695
    %v551 = vpow.pop %v550
    %v552 = vsel %vm342, %v545, 0.0
    %553 = vadd.xlane.f32.xlu0 %v552
    %v554 = vpop.xlane.xlu0 %553
    %v555 = vsel %vm342, %v547, 0.0
    %556 = vadd.xlane.f32.xlu0 %v555
    %v557 = vpop.xlane.xlu0 %556
    %v558 = vsel %vm342, %v549, 0.0
    %559 = vadd.xlane.f32.xlu0 %v558
    %v560 = vpop.xlane.xlu0 %559
    %v561 = vsel %vm342, %v551, 0.0
    %562 = vadd.xlane.f32.xlu0 %v561
    %v563 = vpop.xlane.xlu0 %562
    %v564 = vrcp.pop %v554
    %v565 = vrcp.pop %v557
    %v566 = vrcp.pop %v560
    %v567 = vrcp.pop %v563
    %v568 = vmul.f32 %v545, %v564
    %v569 = vmul.f32 %v547, %v565
    %v570 = vmul.f32 %v549, %v566
    %v571 = vmul.f32 %v551, %v567
    %v572 = vpack.c.bf16 %v198, %v198
    %v573 = vpack.c.bf16 %v199, %v199
    %v574 = vpack.c.bf16 %v200, %v200
    %v575 = vpack.c.bf16 %v201, %v201
    %v576 = vpack.c.bf16 %v568, %v568
    %v577 = vpack.c.bf16 %v569, %v569
    %v578 = vpack.c.bf16 %v570, %v570
    %v579 = vpack.c.bf16 %v571, %v571
    %v581 = vsel %vm342, %v572, 0
    %v584 = vsel %vm342, %v576, 0
    %586 = vmatprep.subr.bf16.mxu0 0
    %587 = vmatpush1.bf16.xpose.msra.mxu0 %v584
    %588 = vmatprep.subr.bf16.mxu0 0
    %589 = vmatpush1.bf16.xpose.msra.mxu0 0
    %590 = vmatprep.subr.bf16.mxu0 0
    %591 = vmatpush1.bf16.xpose.msra.mxu0 0
    %592 = vmatprep.subr.bf16.mxu0 0
    %593 = vmatpush1.bf16.xpose.msra.mxu0 0
    %594 = vmatprep.subr.bf16.mxu0 0
    %595 = vmatpush1.bf16.xpose.msra.mxu0 0
    %596 = vmatprep.subr.bf16.mxu0 0
    %597 = vmatpush1.bf16.xpose.msra.mxu0 0
    %598 = vmatprep.subr.bf16.mxu0 0
    %599 = vmatpush1.bf16.xpose.msra.mxu0 0
    %600 = vmatprep.subr.bf16.mxu0 0
    %601 = vmatpush1.bf16.xpose.msra.mxu0 0
    %602 = vmatprep.subr.bf16.mxu0 0
    %603 = vmatpush1.bf16.xpose.msra.mxu0 0
    %604 = vmatprep.subr.bf16.mxu0 0
    %605 = vmatpush1.bf16.xpose.msra.mxu0 0
    %606 = vmatprep.subr.bf16.mxu0 0
    %607 = vmatpush1.bf16.xpose.msra.mxu0 0
    %608 = vmatprep.subr.bf16.mxu0 0
    %609 = vmatpush1.bf16.xpose.msra.mxu0 0
    %610 = vmatprep.subr.bf16.mxu0 0
    %611 = vmatpush1.bf16.xpose.msra.mxu0 0
    %612 = vmatprep.subr.bf16.mxu0 0
    %613 = vmatpush1.bf16.xpose.msra.mxu0 0
    %614 = vmatprep.subr.bf16.mxu0 0
    %615 = vmatpush1.bf16.xpose.msra.mxu0 0
    %616 = vmatprep.subr.bf16.mxu0 0
    %617 = vmatpush1.bf16.xpose.msra.mxu0 0
    %618 = vmatprep.mubr.bf16.mxu0 0
    %619 = vmatmul.mubr.bf16.gmra.mrb[0].mxu0 %v581
    %v620 = vpop.f32.mrb[0].mxu0
    %v621 = vadd.f32 0.0, %v620
    %v622 = vpop.f32.mrb[0].mxu0
    %v623 = vpop.f32.mrb[0].mxu0
    %v624 = vpop.f32.mrb[0].mxu0
    %625 = vdwg.mxu0
    %v627 = vsel %vm342, %v573, 0
    %v630 = vsel %vm342, %v577, 0
    %632 = vmatprep.subr.bf16.mxu0 0
    %633 = vmatpush1.bf16.xpose.msra.mxu0 %v630
    %634 = vmatprep.subr.bf16.mxu0 0
    %635 = vmatpush1.bf16.xpose.msra.mxu0 0
    %636 = vmatprep.subr.bf16.mxu0 0
    %637 = vmatpush1.bf16.xpose.msra.mxu0 0
    %638 = vmatprep.subr.bf16.mxu0 0
    %639 = vmatpush1.bf16.xpose.msra.mxu0 0
    %640 = vmatprep.subr.bf16.mxu0 0
    %641 = vmatpush1.bf16.xpose.msra.mxu0 0
    %642 = vmatprep.subr.bf16.mxu0 0
    %643 = vmatpush1.bf16.xpose.msra.mxu0 0
    %644 = vmatprep.subr.bf16.mxu0 0
    %645 = vmatpush1.bf16.xpose.msra.mxu0 0
    %646 = vmatprep.subr.bf16.mxu0 0
    %647 = vmatpush1.bf16.xpose.msra.mxu0 0
    %648 = vmatprep.subr.bf16.mxu0 0
    %649 = vmatpush1.bf16.xpose.msra.mxu0 0
    %650 = vmatprep.subr.bf16.mxu0 0
    %651 = vmatpush1.bf16.xpose.msra.mxu0 0
    %652 = vmatprep.subr.bf16.mxu0 0
    %653 = vmatpush1.bf16.xpose.msra.mxu0 0
    %654 = vmatprep.subr.bf16.mxu0 0
    %655 = vmatpush1.bf16.xpose.msra.mxu0 0
    %656 = vmatprep.subr.bf16.mxu0 0
    %657 = vmatpush1.bf16.xpose.msra.mxu0 0
    %658 = vmatprep.subr.bf16.mxu0 0
    %659 = vmatpush1.bf16.xpose.msra.mxu0 0
    %660 = vmatprep.subr.bf16.mxu0 0
    %661 = vmatpush1.bf16.xpose.msra.mxu0 0
    %662 = vmatprep.subr.bf16.mxu0 0
    %663 = vmatpush1.bf16.xpose.msra.mxu0 0
    %664 = vmatprep.mubr.bf16.mxu0 0
    %665 = vmatmul.mubr.bf16.gmra.mrb[0].mxu0 %v627
    %v666 = vpop.f32.mrb[0].mxu0
    %v667 = vadd.f32 0.0, %v666
    %v668 = vpop.f32.mrb[0].mxu0
    %v669 = vpop.f32.mrb[0].mxu0
    %v670 = vpop.f32.mrb[0].mxu0
    %671 = vdwg.mxu0
    %v673 = vsel %vm342, %v574, 0
    %v676 = vsel %vm342, %v578, 0
    %678 = vmatprep.subr.bf16.mxu0 0
    %679 = vmatpush1.bf16.xpose.msra.mxu0 %v676
    %680 = vmatprep.subr.bf16.mxu0 0
    %681 = vmatpush1.bf16.xpose.msra.mxu0 0
    %682 = vmatprep.subr.bf16.mxu0 0
    %683 = vmatpush1.bf16.xpose.msra.mxu0 0
    %684 = vmatprep.subr.bf16.mxu0 0
    %685 = vmatpush1.bf16.xpose.msra.mxu0 0
    %686 = vmatprep.subr.bf16.mxu0 0
    %687 = vmatpush1.bf16.xpose.msra.mxu0 0
    %688 = vmatprep.subr.bf16.mxu0 0
    %689 = vmatpush1.bf16.xpose.msra.mxu0 0
    %690 = vmatprep.subr.bf16.mxu0 0
    %691 = vmatpush1.bf16.xpose.msra.mxu0 0
    %692 = vmatprep.subr.bf16.mxu0 0
    %693 = vmatpush1.bf16.xpose.msra.mxu0 0
    %694 = vmatprep.subr.bf16.mxu0 0
    %695 = vmatpush1.bf16.xpose.msra.mxu0 0
    %696 = vmatprep.subr.bf16.mxu0 0
    %697 = vmatpush1.bf16.xpose.msra.mxu0 0
    %698 = vmatprep.subr.bf16.mxu0 0
    %699 = vmatpush1.bf16.xpose.msra.mxu0 0
    %700 = vmatprep.subr.bf16.mxu0 0
    %701 = vmatpush1.bf16.xpose.msra.mxu0 0
    %702 = vmatprep.subr.bf16.mxu0 0
    %703 = vmatpush1.bf16.xpose.msra.mxu0 0
    %704 = vmatprep.subr.bf16.mxu0 0
    %705 = vmatpush1.bf16.xpose.msra.mxu0 0
    %706 = vmatprep.subr.bf16.mxu0 0
    %707 = vmatpush1.bf16.xpose.msra.mxu0 0
    %708 = vmatprep.subr.bf16.mxu0 0
    %709 = vmatpush1.bf16.xpose.msra.mxu0 0
    %710 = vmatprep.mubr.bf16.mxu0 0
    %711 = vmatmul.mubr.bf16.gmra.mrb[0].mxu0 %v673
    %v712 = vpop.f32.mrb[0].mxu0
    %v713 = vadd.f32 0.0, %v712
    %v714 = vpop.f32.mrb[0].mxu0
    %v715 = vpop.f32.mrb[0].mxu0
    %v716 = vpop.f32.mrb[0].mxu0
    %717 = vdwg.mxu0
    %v719 = vsel %vm342, %v575, 0
    %v722 = vsel %vm342, %v579, 0
    %724 = vmatprep.subr.bf16.mxu0 0
    %725 = vmatpush1.bf16.xpose.msra.mxu0 %v722
    %726 = vmatprep.subr.bf16.mxu0 0
    %727 = vmatpush1.bf16.xpose.msra.mxu0 0
    %728 = vmatprep.subr.bf16.mxu0 0
    %729 = vmatpush1.bf16.xpose.msra.mxu0 0
    %730 = vmatprep.subr.bf16.mxu0 0
    %731 = vmatpush1.bf16.xpose.msra.mxu0 0
    %732 = vmatprep.subr.bf16.mxu0 0
    %733 = vmatpush1.bf16.xpose.msra.mxu0 0
    %734 = vmatprep.subr.bf16.mxu0 0
    %735 = vmatpush1.bf16.xpose.msra.mxu0 0
    %736 = vmatprep.subr.bf16.mxu0 0
    %737 = vmatpush1.bf16.xpose.msra.mxu0 0
    %738 = vmatprep.subr.bf16.mxu0 0
    %739 = vmatpush1.bf16.xpose.msra.mxu0 0
    %740 = vmatprep.subr.bf16.mxu0 0
    %741 = vmatpush1.bf16.xpose.msra.mxu0 0
    %742 = vmatprep.subr.bf16.mxu0 0
    %743 = vmatpush1.bf16.xpose.msra.mxu0 0
    %744 = vmatprep.subr.bf16.mxu0 0
    %745 = vmatpush1.bf16.xpose.msra.mxu0 0
    %746 = vmatprep.subr.bf16.mxu0 0
    %747 = vmatpush1.bf16.xpose.msra.mxu0 0
    %748 = vmatprep.subr.bf16.mxu0 0
    %749 = vmatpush1.bf16.xpose.msra.mxu0 0
    %750 = vmatprep.subr.bf16.mxu0 0
    %751 = vmatpush1.bf16.xpose.msra.mxu0 0
    %752 = vmatprep.subr.bf16.mxu0 0
    %753 = vmatpush1.bf16.xpose.msra.mxu0 0
    %754 = vmatprep.subr.bf16.mxu0 0
    %755 = vmatpush1.bf16.xpose.msra.mxu0 0
    %756 = vmatprep.mubr.bf16.mxu0 0
    %757 = vmatmul.mubr.bf16.gmra.mrb[0].mxu0 %v719
    %v758 = vpop.f32.mrb[0].mxu0
    %v759 = vadd.f32 0.0, %v758
    %v760 = vpop.f32.mrb[0].mxu0
    %v761 = vpop.f32.mrb[0].mxu0
    %v762 = vpop.f32.mrb[0].mxu0
    %763 = vdwg.mxu0
    %764 = vxpose.xlu0.b32.start [1/16] %v621, 128
    %765 = vxpose.xlu0.b32.cont [2/16] %v667, 128
    %766 = vxpose.xlu0.b32.cont [3/16] %v713, 128
    %767 = vxpose.xlu0.b32.cont [4/16] %v759, 128
    %768 = vxpose.xlu0.b32.cont [5/16] 0.0, 128
    %769 = vxpose.xlu0.b32.cont [6/16] 0.0, 128
    %770 = vxpose.xlu0.b32.cont [7/16] 0.0, 128
    %771 = vxpose.xlu0.b32.cont [8/16] 0.0, 128
    %772 = vxpose.xlu0.b32.cont [9/16] 0.0, 128
    %773 = vxpose.xlu0.b32.cont [10/16] 0.0, 128
    %774 = vxpose.xlu0.b32.cont [11/16] 0.0, 128
    %775 = vxpose.xlu0.b32.cont [12/16] 0.0, 128
    %776 = vxpose.xlu0.b32.cont [13/16] 0.0, 128
    %777 = vxpose.xlu0.b32.cont [14/16] 0.0, 128
    %778 = vxpose.xlu0.b32.cont [15/16] 0.0, 128
    %779 = vxpose.xlu0.b32.end [16/16] 0.0, 128
    %v780 = vpop.trf.xlu0
    %v781 = vpop.trf.xlu0
    %v782 = vpop.trf.xlu0
    %v783 = vpop.trf.xlu0
    %v784 = vpop.trf.xlu0
    %v785 = vpop.trf.xlu0
    %v786 = vpop.trf.xlu0
    %v787 = vpop.trf.xlu0
    %v788 = vpop.trf.xlu0
    %v789 = vpop.trf.xlu0
    %v790 = vpop.trf.xlu0
    %v791 = vpop.trf.xlu0
    %v792 = vpop.trf.xlu0
    %v793 = vpop.trf.xlu0
    %v794 = vpop.trf.xlu0
    %v795 = vpop.trf.xlu0
    %796 = vxpose.xlu0.b32.start [1/16] %v171, 128
    %797 = vxpose.xlu0.b32.cont [2/16] 0.0, 128
    %798 = vxpose.xlu0.b32.cont [3/16] 0.0, 128
    %799 = vxpose.xlu0.b32.cont [4/16] 0.0, 128
    %800 = vxpose.xlu0.b32.cont [5/16] 0.0, 128
    %801 = vxpose.xlu0.b32.cont [6/16] 0.0, 128
    %802 = vxpose.xlu0.b32.cont [7/16] 0.0, 128
    %803 = vxpose.xlu0.b32.cont [8/16] 0.0, 128
    %804 = vxpose.xlu0.b32.cont [9/16] 0.0, 128
    %805 = vxpose.xlu0.b32.cont [10/16] 0.0, 128
    %806 = vxpose.xlu0.b32.cont [11/16] 0.0, 128
    %807 = vxpose.xlu0.b32.cont [12/16] 0.0, 128
    %808 = vxpose.xlu0.b32.cont [13/16] 0.0, 128
    %809 = vxpose.xlu0.b32.cont [14/16] 0.0, 128
    %810 = vxpose.xlu0.b32.cont [15/16] 0.0, 128
    %811 = vxpose.xlu0.b32.end [16/16] 0.0, 128
    %v812 = vpop.trf.xlu0
    %v813 = vpop.trf.xlu0
    %v814 = vpop.trf.xlu0
    %v815 = vpop.trf.xlu0
    %v816 = vpop.trf.xlu0
    %v817 = vpop.trf.xlu0
    %v818 = vpop.trf.xlu0
    %v819 = vpop.trf.xlu0
    %v820 = vpop.trf.xlu0
    %v821 = vpop.trf.xlu0
    %v822 = vpop.trf.xlu0
    %v823 = vpop.trf.xlu0
    %v824 = vpop.trf.xlu0
    %v825 = vpop.trf.xlu0
    %v826 = vpop.trf.xlu0
    %v827 = vpop.trf.xlu0
    %828 = vxpose.xlu0.b32.start [1/16] %v812, 128
    %829 = vxpose.xlu0.b32.cont [2/16] 0.0, 128
    %830 = vxpose.xlu0.b32.cont [3/16] 0.0, 128
    %831 = vxpose.xlu0.b32.cont [4/16] 0.0, 128
    %832 = vxpose.xlu0.b32.cont [5/16] 0.0, 128
    %833 = vxpose.xlu0.b32.cont [6/16] 0.0, 128
    %834 = vxpose.xlu0.b32.cont [7/16] 0.0, 128
    %835 = vxpose.xlu0.b32.cont [8/16] 0.0, 128
    %836 = vxpose.xlu0.b32.cont [9/16] 0.0, 128
    %837 = vxpose.xlu0.b32.cont [10/16] 0.0, 128
    %838 = vxpose.xlu0.b32.cont [11/16] 0.0, 128
    %839 = vxpose.xlu0.b32.cont [12/16] 0.0, 128
    %840 = vxpose.xlu0.b32.cont [13/16] 0.0, 128
    %841 = vxpose.xlu0.b32.cont [14/16] 0.0, 128
    %842 = vxpose.xlu0.b32.cont [15/16] 0.0, 128
    %843 = vxpose.xlu0.b32.end [16/16] 0.0, 128
    %v844 = vpop.trf.xlu0
    %v845 = vpop.trf.xlu0
    %v846 = vpop.trf.xlu0
    %v847 = vpop.trf.xlu0
    %v848 = vpop.trf.xlu0
    %v849 = vpop.trf.xlu0
    %v850 = vpop.trf.xlu0
    %v851 = vpop.trf.xlu0
    %v852 = vpop.trf.xlu0
    %v853 = vpop.trf.xlu0
    %v854 = vpop.trf.xlu0
    %v855 = vpop.trf.xlu0
    %v856 = vpop.trf.xlu0
    %v857 = vpop.trf.xlu0
    %v858 = vpop.trf.xlu0
    %v859 = vpop.trf.xlu0
    %860 = vxpose.xlu0.b32.start [1/16] %v813, 128
    %861 = vxpose.xlu0.b32.cont [2/16] 0.0, 128
    %862 = vxpose.xlu0.b32.cont [3/16] 0.0, 128
    %863 = vxpose.xlu0.b32.cont [4/16] 0.0, 128
    %864 = vxpose.xlu0.b32.cont [5/16] 0.0, 128
    %865 = vxpose.xlu0.b32.cont [6/16] 0.0, 128
    %866 = vxpose.xlu0.b32.cont [7/16] 0.0, 128
    %867 = vxpose.xlu0.b32.cont [8/16] 0.0, 128
    %868 = vxpose.xlu0.b32.cont [9/16] 0.0, 128
    %869 = vxpose.xlu0.b32.cont [10/16] 0.0, 128
    %870 = vxpose.xlu0.b32.cont [11/16] 0.0, 128
    %871 = vxpose.xlu0.b32.cont [12/16] 0.0, 128
    %872 = vxpose.xlu0.b32.cont [13/16] 0.0, 128
    %873 = vxpose.xlu0.b32.cont [14/16] 0.0, 128
    %874 = vxpose.xlu0.b32.cont [15/16] 0.0, 128
    %875 = vxpose.xlu0.b32.end [16/16] 0.0, 128
    %v876 = vpop.trf.xlu0
    %v877 = vpop.trf.xlu0
    %v878 = vpop.trf.xlu0
    %v879 = vpop.trf.xlu0
    %v880 = vpop.trf.xlu0
    %v881 = vpop.trf.xlu0
    %v882 = vpop.trf.xlu0
    %v883 = vpop.trf.xlu0
    %v884 = vpop.trf.xlu0
    %v885 = vpop.trf.xlu0
    %v886 = vpop.trf.xlu0
    %v887 = vpop.trf.xlu0
    %v888 = vpop.trf.xlu0
    %v889 = vpop.trf.xlu0
    %v890 = vpop.trf.xlu0
    %v891 = vpop.trf.xlu0
    %892 = vxpose.xlu0.b32.start [1/16] %v814, 128
    %893 = vxpose.xlu0.b32.cont [2/16] 0.0, 128
    %894 = vxpose.xlu0.b32.cont [3/16] 0.0, 128
    %895 = vxpose.xlu0.b32.cont [4/16] 0.0, 128
    %896 = vxpose.xlu0.b32.cont [5/16] 0.0, 128
    %897 = vxpose.xlu0.b32.cont [6/16] 0.0, 128
    %898 = vxpose.xlu0.b32.cont [7/16] 0.0, 128
    %899 = vxpose.xlu0.b32.cont [8/16] 0.0, 128
    %900 = vxpose.xlu0.b32.cont [9/16] 0.0, 128
    %901 = vxpose.xlu0.b32.cont [10/16] 0.0, 128
    %902 = vxpose.xlu0.b32.cont [11/16] 0.0, 128
    %903 = vxpose.xlu0.b32.cont [12/16] 0.0, 128
    %904 = vxpose.xlu0.b32.cont [13/16] 0.0, 128
    %905 = vxpose.xlu0.b32.cont [14/16] 0.0, 128
    %906 = vxpose.xlu0.b32.cont [15/16] 0.0, 128
    %907 = vxpose.xlu0.b32.end [16/16] 0.0, 128
    %v908 = vpop.trf.xlu0
    %v909 = vpop.trf.xlu0
    %v910 = vpop.trf.xlu0
    %v911 = vpop.trf.xlu0
    %v912 = vpop.trf.xlu0
    %v913 = vpop.trf.xlu0
    %v914 = vpop.trf.xlu0
    %v915 = vpop.trf.xlu0
    %v916 = vpop.trf.xlu0
    %v917 = vpop.trf.xlu0
    %v918 = vpop.trf.xlu0
    %v919 = vpop.trf.xlu0
    %v920 = vpop.trf.xlu0
    %v921 = vpop.trf.xlu0
    %v922 = vpop.trf.xlu0
    %v923 = vpop.trf.xlu0
    %924 = vxpose.xlu0.b32.start [1/16] %v815, 128
    %925 = vxpose.xlu0.b32.cont [2/16] 0.0, 128
    %926 = vxpose.xlu0.b32.cont [3/16] 0.0, 128
    %927 = vxpose.xlu0.b32.cont [4/16] 0.0, 128
    %928 = vxpose.xlu0.b32.cont [5/16] 0.0, 128
    %929 = vxpose.xlu0.b32.cont [6/16] 0.0, 128
    %930 = vxpose.xlu0.b32.cont [7/16] 0.0, 128
    %931 = vxpose.xlu0.b32.cont [8/16] 0.0, 128
    %932 = vxpose.xlu0.b32.cont [9/16] 0.0, 128
    %933 = vxpose.xlu0.b32.cont [10/16] 0.0, 128
    %934 = vxpose.xlu0.b32.cont [11/16] 0.0, 128
    %935 = vxpose.xlu0.b32.cont [12/16] 0.0, 128
    %936 = vxpose.xlu0.b32.cont [13/16] 0.0, 128
    %937 = vxpose.xlu0.b32.cont [14/16] 0.0, 128
    %938 = vxpose.xlu0.b32.cont [15/16] 0.0, 128
    %939 = vxpose.xlu0.b32.end [16/16] 0.0, 128
    %v940 = vpop.trf.xlu0
    %v941 = vpop.trf.xlu0
    %v942 = vpop.trf.xlu0
    %v943 = vpop.trf.xlu0
    %v944 = vpop.trf.xlu0
    %v945 = vpop.trf.xlu0
    %v946 = vpop.trf.xlu0
    %v947 = vpop.trf.xlu0
    %v948 = vpop.trf.xlu0
    %v949 = vpop.trf.xlu0
    %v950 = vpop.trf.xlu0
    %v951 = vpop.trf.xlu0
    %v952 = vpop.trf.xlu0
    %v953 = vpop.trf.xlu0
    %v954 = vpop.trf.xlu0
    %v955 = vpop.trf.xlu0
    %v956 = vpack.c.bf16 %v844, %v844
    %v957 = vpack.c.bf16 %v876, %v876
    %v958 = vpack.c.bf16 %v908, %v908
    %v959 = vpack.c.bf16 %v940, %v940
    %v960 = vpack.c.bf16 %v816, %v816
    %v961 = vpack.c.bf16 %v817, %v817
    %v962 = vpack.c.bf16 %v818, %v818
    %v963 = vpack.c.bf16 %v819, %v819
    %v965 = vsel %vm342, %v956, 0
    %v968 = vsel %vm346, %v960, 0
    %970 = vmatprep.subr.bf16.mxu0 0
    %971 = vmatpush1.bf16.msra.mxu0 %v968
    %972 = vmatprep.subr.bf16.mxu0 0
    %973 = vmatpush1.bf16.msra.mxu0 0
    %974 = vmatprep.subr.bf16.mxu0 0
    %975 = vmatpush1.bf16.msra.mxu0 0
    %976 = vmatprep.subr.bf16.mxu0 0
    %977 = vmatpush1.bf16.msra.mxu0 0
    %978 = vmatprep.subr.bf16.mxu0 0
    %979 = vmatpush1.bf16.msra.mxu0 0
    %980 = vmatprep.subr.bf16.mxu0 0
    %981 = vmatpush1.bf16.msra.mxu0 0
    %982 = vmatprep.subr.bf16.mxu0 0
    %983 = vmatpush1.bf16.msra.mxu0 0
    %984 = vmatprep.subr.bf16.mxu0 0
    %985 = vmatpush1.bf16.msra.mxu0 0
    %986 = vmatprep.subr.bf16.mxu0 0
    %987 = vmatpush1.bf16.msra.mxu0 0
    %988 = vmatprep.subr.bf16.mxu0 0
    %989 = vmatpush1.bf16.msra.mxu0 0
    %990 = vmatprep.subr.bf16.mxu0 0
    %991 = vmatpush1.bf16.msra.mxu0 0
    %992 = vmatprep.subr.bf16.mxu0 0
    %993 = vmatpush1.bf16.msra.mxu0 0
    %994 = vmatprep.subr.bf16.mxu0 0
    %995 = vmatpush1.bf16.msra.mxu0 0
    %996 = vmatprep.subr.bf16.mxu0 0
    %997 = vmatpush1.bf16.msra.mxu0 0
    %998 = vmatprep.subr.bf16.mxu0 0
    %999 = vmatpush1.bf16.msra.mxu0 0
    %1000 = vmatprep.subr.bf16.mxu0 0
    %1001 = vmatpush1.bf16.msra.mxu0 0
    %1002 = vmatprep.mubr.bf16.mxu0 0
    %1003 = vmatmul.mubr.bf16.gmra.mrb[0].mxu0 %v965
    %v1004 = vpop.f32.mrb[0].mxu0
    %v1005 = vadd.f32 0.0, %v1004
    %v1006 = vpop.f32.mrb[0].mxu0
    %v1007 = vpop.f32.mrb[0].mxu0
    %v1008 = vpop.f32.mrb[0].mxu0
    %1009 = vdwg.mxu0
    %v1011 = vsel %vm342, %v957, 0
    %v1014 = vsel %vm346, %v961, 0
    %1016 = vmatprep.subr.bf16.mxu0 0
    %1017 = vmatpush1.bf16.msra.mxu0 %v1014
    %1018 = vmatprep.subr.bf16.mxu0 0
    %1019 = vmatpush1.bf16.msra.mxu0 0
    %1020 = vmatprep.subr.bf16.mxu0 0
    %1021 = vmatpush1.bf16.msra.mxu0 0
    %1022 = vmatprep.subr.bf16.mxu0 0
    %1023 = vmatpush1.bf16.msra.mxu0 0
    %1024 = vmatprep.subr.bf16.mxu0 0
    %1025 = vmatpush1.bf16.msra.mxu0 0
    %1026 = vmatprep.subr.bf16.mxu0 0
    %1027 = vmatpush1.bf16.msra.mxu0 0
    %1028 = vmatprep.subr.bf16.mxu0 0
    %1029 = vmatpush1.bf16.msra.mxu0 0
    %1030 = vmatprep.subr.bf16.mxu0 0
    %1031 = vmatpush1.bf16.msra.mxu0 0
    %1032 = vmatprep.subr.bf16.mxu0 0
    %1033 = vmatpush1.bf16.msra.mxu0 0
    %1034 = vmatprep.subr.bf16.mxu0 0
    %1035 = vmatpush1.bf16.msra.mxu0 0
    %1036 = vmatprep.subr.bf16.mxu0 0
    %1037 = vmatpush1.bf16.msra.mxu0 0
    %1038 = vmatprep.subr.bf16.mxu0 0
    %1039 = vmatpush1.bf16.msra.mxu0 0
    %1040 = vmatprep.subr.bf16.mxu0 0
    %1041 = vmatpush1.bf16.msra.mxu0 0
    %1042 = vmatprep.subr.bf16.mxu0 0
    %1043 = vmatpush1.bf16.msra.mxu0 0
    %1044 = vmatprep.subr.bf16.mxu0 0
    %1045 = vmatpush1.bf16.msra.mxu0 0
    %1046 = vmatprep.subr.bf16.mxu0 0
    %1047 = vmatpush1.bf16.msra.mxu0 0
    %1048 = vmatprep.mubr.bf16.mxu0 0
    %1049 = vmatmul.mubr.bf16.gmra.mrb[0].mxu0 %v1011
    %v1050 = vpop.f32.mrb[0].mxu0
    %v1051 = vadd.f32 0.0, %v1050
    %v1052 = vpop.f32.mrb[0].mxu0
    %v1053 = vpop.f32.mrb[0].mxu0
    %v1054 = vpop.f32.mrb[0].mxu0
    %1055 = vdwg.mxu0
    %v1057 = vsel %vm342, %v958, 0
    %v1060 = vsel %vm346, %v962, 0
    %1062 = vmatprep.subr.bf16.mxu0 0
    %1063 = vmatpush1.bf16.msra.mxu0 %v1060
    %1064 = vmatprep.subr.bf16.mxu0 0
    %1065 = vmatpush1.bf16.msra.mxu0 0
    %1066 = vmatprep.subr.bf16.mxu0 0
    %1067 = vmatpush1.bf16.msra.mxu0 0
    %1068 = vmatprep.subr.bf16.mxu0 0
    %1069 = vmatpush1.bf16.msra.mxu0 0
    %1070 = vmatprep.subr.bf16.mxu0 0
    %1071 = vmatpush1.bf16.msra.mxu0 0
    %1072 = vmatprep.subr.bf16.mxu0 0
    %1073 = vmatpush1.bf16.msra.mxu0 0
    %1074 = vmatprep.subr.bf16.mxu0 0
    %1075 = vmatpush1.bf16.msra.mxu0 0
    %1076 = vmatprep.subr.bf16.mxu0 0
    %1077 = vmatpush1.bf16.msra.mxu0 0
    %1078 = vmatprep.subr.bf16.mxu0 0
    %1079 = vmatpush1.bf16.msra.mxu0 0
    %1080 = vmatprep.subr.bf16.mxu0 0
    %1081 = vmatpush1.bf16.msra.mxu0 0
    %1082 = vmatprep.subr.bf16.mxu0 0
    %1083 = vmatpush1.bf16.msra.mxu0 0
    %1084 = vmatprep.subr.bf16.mxu0 0
    %1085 = vmatpush1.bf16.msra.mxu0 0
    %1086 = vmatprep.subr.bf16.mxu0 0
    %1087 = vmatpush1.bf16.msra.mxu0 0
    %1088 = vmatprep.subr.bf16.mxu0 0
    %1089 = vmatpush1.bf16.msra.mxu0 0
    %1090 = vmatprep.subr.bf16.mxu0 0
    %1091 = vmatpush1.bf16.msra.mxu0 0
    %1092 = vmatprep.subr.bf16.mxu0 0
    %1093 = vmatpush1.bf16.msra.mxu0 0
    %1094 = vmatprep.mubr.bf16.mxu0 0
    %1095 = vmatmul.mubr.bf16.gmra.mrb[0].mxu0 %v1057
    %v1096 = vpop.f32.mrb[0].mxu0
    %v1097 = vadd.f32 0.0, %v1096
    %v1098 = vpop.f32.mrb[0].mxu0
    %v1099 = vpop.f32.mrb[0].mxu0
    %v1100 = vpop.f32.mrb[0].mxu0
    %1101 = vdwg.mxu0
    %v1103 = vsel %vm342, %v959, 0
    %v1106 = vsel %vm346, %v963, 0
    %1108 = vmatprep.subr.bf16.mxu0 0
    %1109 = vmatpush1.bf16.msra.mxu0 %v1106
    %1110 = vmatprep.subr.bf16.mxu0 0
    %1111 = vmatpush1.bf16.msra.mxu0 0
    %1112 = vmatprep.subr.bf16.mxu0 0
    %1113 = vmatpush1.bf16.msra.mxu0 0
    %1114 = vmatprep.subr.bf16.mxu0 0
    %1115 = vmatpush1.bf16.msra.mxu0 0
    %1116 = vmatprep.subr.bf16.mxu0 0
    %1117 = vmatpush1.bf16.msra.mxu0 0
    %1118 = vmatprep.subr.bf16.mxu0 0
    %1119 = vmatpush1.bf16.msra.mxu0 0
    %1120 = vmatprep.subr.bf16.mxu0 0
    %1121 = vmatpush1.bf16.msra.mxu0 0
    %1122 = vmatprep.subr.bf16.mxu0 0
    %1123 = vmatpush1.bf16.msra.mxu0 0
    %1124 = vmatprep.subr.bf16.mxu0 0
    %1125 = vmatpush1.bf16.msra.mxu0 0
    %1126 = vmatprep.subr.bf16.mxu0 0
    %1127 = vmatpush1.bf16.msra.mxu0 0
    %1128 = vmatprep.subr.bf16.mxu0 0
    %1129 = vmatpush1.bf16.msra.mxu0 0
    %1130 = vmatprep.subr.bf16.mxu0 0
    %1131 = vmatpush1.bf16.msra.mxu0 0
    %1132 = vmatprep.subr.bf16.mxu0 0
    %1133 = vmatpush1.bf16.msra.mxu0 0
    %1134 = vmatprep.subr.bf16.mxu0 0
    %1135 = vmatpush1.bf16.msra.mxu0 0
    %1136 = vmatprep.subr.bf16.mxu0 0
    %1137 = vmatpush1.bf16.msra.mxu0 0
    %1138 = vmatprep.subr.bf16.mxu0 0
    %1139 = vmatpush1.bf16.msra.mxu0 0
    %1140 = vmatprep.mubr.bf16.mxu0 0
    %1141 = vmatmul.mubr.bf16.gmra.mrb[0].mxu0 %v1103
    %v1142 = vpop.f32.mrb[0].mxu0
    %v1143 = vadd.f32 0.0, %v1142
    %v1144 = vpop.f32.mrb[0].mxu0
    %v1145 = vpop.f32.mrb[0].mxu0
    %v1146 = vpop.f32.mrb[0].mxu0
    %1147 = vdwg.mxu0
    %v1148 = vsel %vm342, %v1005, -inf
    %1149 = vmax.xlane.f32.xlu0 %v1148
    %v1150 = vpop.xlane.xlu0 %1149
    %v1151 = vsel %vm342, %v1051, -inf
    %1152 = vmax.xlane.f32.xlu0 %v1151
    %v1153 = vpop.xlane.xlu0 %1152
    %v1154 = vsel %vm342, %v1097, -inf
    %1155 = vmax.xlane.f32.xlu0 %v1154
    %v1156 = vpop.xlane.xlu0 %1155
    %v1157 = vsel %vm342, %v1143, -inf
    %1158 = vmax.xlane.f32.xlu0 %v1157
    %v1159 = vpop.xlane.xlu0 %1158
    %v1160 = vsub.f32 %v1005, %v1150
    %v1161 = vsub.f32 %v1051, %v1153
    %v1162 = vsub.f32 %v1097, %v1156
    %v1163 = vsub.f32 %v1143, %v1159
    %v1164 = vmul.f32 %v1160, 1.442695
    %v1165 = vpow.pop %v1164
    %v1166 = vmul.f32 %v1161, 1.442695
    %v1167 = vpow.pop %v1166
    %v1168 = vmul.f32 %v1162, 1.442695
    %v1169 = vpow.pop %v1168
    %v1170 = vmul.f32 %v1163, 1.442695
    %v1171 = vpow.pop %v1170
    %v1172 = vsel %vm342, %v1165, 0.0
    %1173 = vadd.xlane.f32.xlu0 %v1172
    %v1174 = vpop.xlane.xlu0 %1173
    %v1175 = vsel %vm342, %v1167, 0.0
    %1176 = vadd.xlane.f32.xlu0 %v1175
    %v1177 = vpop.xlane.xlu0 %1176
    %v1178 = vsel %vm342, %v1169, 0.0
    %1179 = vadd.xlane.f32.xlu0 %v1178
    %v1180 = vpop.xlane.xlu0 %1179
    %v1181 = vsel %vm342, %v1171, 0.0
    %1182 = vadd.xlane.f32.xlu0 %v1181
    %v1183 = vpop.xlane.xlu0 %1182
    %v1184 = vrcp.pop %v1174
    %v1185 = vrcp.pop %v1177
    %v1186 = vrcp.pop %v1180
    %v1187 = vrcp.pop %v1183
    %v1188 = vmul.f32 %v1165, %v1184
    %v1189 = vmul.f32 %v1167, %v1185
    %v1190 = vmul.f32 %v1169, %v1186
    %v1191 = vmul.f32 %v1171, %v1187
    %v1192 = vpack.c.bf16 %v820, %v820
    %v1193 = vpack.c.bf16 %v821, %v821
    %v1194 = vpack.c.bf16 %v822, %v822
    %v1195 = vpack.c.bf16 %v823, %v823
    %v1196 = vpack.c.bf16 %v1188, %v1188
    %v1197 = vpack.c.bf16 %v1189, %v1189
    %v1198 = vpack.c.bf16 %v1190, %v1190
    %v1199 = vpack.c.bf16 %v1191, %v1191
    %v1201 = vsel %vm342, %v1192, 0
    %v1204 = vsel %vm342, %v1196, 0
    %1206 = vmatprep.subr.bf16.mxu0 0
    %1207 = vmatpush1.bf16.xpose.msra.mxu0 %v1204
    %1208 = vmatprep.subr.bf16.mxu0 0
    %1209 = vmatpush1.bf16.xpose.msra.mxu0 0
    %1210 = vmatprep.subr.bf16.mxu0 0
    %1211 = vmatpush1.bf16.xpose.msra.mxu0 0
    %1212 = vmatprep.subr.bf16.mxu0 0
    %1213 = vmatpush1.bf16.xpose.msra.mxu0 0
    %1214 = vmatprep.subr.bf16.mxu0 0
    %1215 = vmatpush1.bf16.xpose.msra.mxu0 0
    %1216 = vmatprep.subr.bf16.mxu0 0
    %1217 = vmatpush1.bf16.xpose.msra.mxu0 0
    %1218 = vmatprep.subr.bf16.mxu0 0
    %1219 = vmatpush1.bf16.xpose.msra.mxu0 0
    %1220 = vmatprep.subr.bf16.mxu0 0
    %1221 = vmatpush1.bf16.xpose.msra.mxu0 0
    %1222 = vmatprep.subr.bf16.mxu0 0
    %1223 = vmatpush1.bf16.xpose.msra.mxu0 0
    %1224 = vmatprep.subr.bf16.mxu0 0
    %1225 = vmatpush1.bf16.xpose.msra.mxu0 0
    %1226 = vmatprep.subr.bf16.mxu0 0
    %1227 = vmatpush1.bf16.xpose.msra.mxu0 0
    %1228 = vmatprep.subr.bf16.mxu0 0
    %1229 = vmatpush1.bf16.xpose.msra.mxu0 0
    %1230 = vmatprep.subr.bf16.mxu0 0
    %1231 = vmatpush1.bf16.xpose.msra.mxu0 0
    %1232 = vmatprep.subr.bf16.mxu0 0
    %1233 = vmatpush1.bf16.xpose.msra.mxu0 0
    %1234 = vmatprep.subr.bf16.mxu0 0
    %1235 = vmatpush1.bf16.xpose.msra.mxu0 0
    %1236 = vmatprep.subr.bf16.mxu0 0
    %1237 = vmatpush1.bf16.xpose.msra.mxu0 0
    %1238 = vmatprep.mubr.bf16.mxu0 0
    %1239 = vmatmul.mubr.bf16.gmra.mrb[0].mxu0 %v1201
    %v1240 = vpop.f32.mrb[0].mxu0
    %v1241 = vadd.f32 0.0, %v1240
    %v1242 = vpop.f32.mrb[0].mxu0
    %v1243 = vpop.f32.mrb[0].mxu0
    %v1244 = vpop.f32.mrb[0].mxu0
    %1245 = vdwg.mxu0
    %v1247 = vsel %vm342, %v1193, 0
    %v1250 = vsel %vm342, %v1197, 0
    %1252 = vmatprep.subr.bf16.mxu0 0
    %1253 = vmatpush1.bf16.xpose.msra.mxu0 %v1250
    %1254 = vmatprep.subr.bf16.mxu0 0
    %1255 = vmatpush1.bf16.xpose.msra.mxu0 0
    %1256 = vmatprep.subr.bf16.mxu0 0
    %1257 = vmatpush1.bf16.xpose.msra.mxu0 0
    %1258 = vmatprep.subr.bf16.mxu0 0
    %1259 = vmatpush1.bf16.xpose.msra.mxu0 0
    %1260 = vmatprep.subr.bf16.mxu0 0
    %1261 = vmatpush1.bf16.xpose.msra.mxu0 0
    %1262 = vmatprep.subr.bf16.mxu0 0
    %1263 = vmatpush1.bf16.xpose.msra.mxu0 0
    %1264 = vmatprep.subr.bf16.mxu0 0
    %1265 = vmatpush1.bf16.xpose.msra.mxu0 0
    %1266 = vmatprep.subr.bf16.mxu0 0
    %1267 = vmatpush1.bf16.xpose.msra.mxu0 0
    %1268 = vmatprep.subr.bf16.mxu0 0
    %1269 = vmatpush1.bf16.xpose.msra.mxu0 0
    %1270 = vmatprep.subr.bf16.mxu0 0
    %1271 = vmatpush1.bf16.xpose.msra.mxu0 0
    %1272 = vmatprep.subr.bf16.mxu0 0
    %1273 = vmatpush1.bf16.xpose.msra.mxu0 0
    %1274 = vmatprep.subr.bf16.mxu0 0
    %1275 = vmatpush1.bf16.xpose.msra.mxu0 0
    %1276 = vmatprep.subr.bf16.mxu0 0
    %1277 = vmatpush1.bf16.xpose.msra.mxu0 0
    %1278 = vmatprep.subr.bf16.mxu0 0
    %1279 = vmatpush1.bf16.xpose.msra.mxu0 0
    %1280 = vmatprep.subr.bf16.mxu0 0
    %1281 = vmatpush1.bf16.xpose.msra.mxu0 0
    %1282 = vmatprep.subr.bf16.mxu0 0
    %1283 = vmatpush1.bf16.xpose.msra.mxu0 0
    %1284 = vmatprep.mubr.bf16.mxu0 0
    %1285 = vmatmul.mubr.bf16.gmra.mrb[0].mxu0 %v1247
    %v1286 = vpop.f32.mrb[0].mxu0
    %v1287 = vadd.f32 0.0, %v1286
    %v1288 = vpop.f32.mrb[0].mxu0
    %v1289 = vpop.f32.mrb[0].mxu0
    %v1290 = vpop.f32.mrb[0].mxu0
    %1291 = vdwg.mxu0
    %v1293 = vsel %vm342, %v1194, 0
    %v1296 = vsel %vm342, %v1198, 0
    %1298 = vmatprep.subr.bf16.mxu0 0
    %1299 = vmatpush1.bf16.xpose.msra.mxu0 %v1296
    %1300 = vmatprep.subr.bf16.mxu0 0
    %1301 = vmatpush1.bf16.xpose.msra.mxu0 0
    %1302 = vmatprep.subr.bf16.mxu0 0
    %1303 = vmatpush1.bf16.xpose.msra.mxu0 0
    %1304 = vmatprep.subr.bf16.mxu0 0
    %1305 = vmatpush1.bf16.xpose.msra.mxu0 0
    %1306 = vmatprep.subr.bf16.mxu0 0
    %1307 = vmatpush1.bf16.xpose.msra.mxu0 0
    %1308 = vmatprep.subr.bf16.mxu0 0
    %1309 = vmatpush1.bf16.xpose.msra.mxu0 0
    %1310 = vmatprep.subr.bf16.mxu0 0
    %1311 = vmatpush1.bf16.xpose.msra.mxu0 0
    %1312 = vmatprep.subr.bf16.mxu0 0
    %1313 = vmatpush1.bf16.xpose.msra.mxu0 0
    %1314 = vmatprep.subr.bf16.mxu0 0
    %1315 = vmatpush1.bf16.xpose.msra.mxu0 0
    %1316 = vmatprep.subr.bf16.mxu0 0
    %1317 = vmatpush1.bf16.xpose.msra.mxu0 0
    %1318 = vmatprep.subr.bf16.mxu0 0
    %1319 = vmatpush1.bf16.xpose.msra.mxu0 0
    %1320 = vmatprep.subr.bf16.mxu0 0
    %1321 = vmatpush1.bf16.xpose.msra.mxu0 0
    %1322 = vmatprep.subr.bf16.mxu0 0
    %1323 = vmatpush1.bf16.xpose.msra.mxu0 0
    %1324 = vmatprep.subr.bf16.mxu0 0
    %1325 = vmatpush1.bf16.xpose.msra.mxu0 0
    %1326 = vmatprep.subr.bf16.mxu0 0
    %1327 = vmatpush1.bf16.xpose.msra.mxu0 0
    %1328 = vmatprep.subr.bf16.mxu0 0
    %1329 = vmatpush1.bf16.xpose.msra.mxu0 0
    %1330 = vmatprep.mubr.bf16.mxu0 0
    %1331 = vmatmul.mubr.bf16.gmra.mrb[0].mxu0 %v1293
    %v1332 = vpop.f32.mrb[0].mxu0
    %v1333 = vadd.f32 0.0, %v1332
    %v1334 = vpop.f32.mrb[0].mxu0
    %v1335 = vpop.f32.mrb[0].mxu0
    %v1336 = vpop.f32.mrb[0].mxu0
    %1337 = vdwg.mxu0
    %v1339 = vsel %vm342, %v1195, 0
    %v1342 = vsel %vm342, %v1199, 0
    %1344 = vmatprep.subr.bf16.mxu0 0
    %1345 = vmatpush1.bf16.xpose.msra.mxu0 %v1342
    %1346 = vmatprep.subr.bf16.mxu0 0
    %1347 = vmatpush1.bf16.xpose.msra.mxu0 0
    %1348 = vmatprep.subr.bf16.mxu0 0
    %1349 = vmatpush1.bf16.xpose.msra.mxu0 0
    %1350 = vmatprep.subr.bf16.mxu0 0
    %1351 = vmatpush1.bf16.xpose.msra.mxu0 0
    %1352 = vmatprep.subr.bf16.mxu0 0
    %1353 = vmatpush1.bf16.xpose.msra.mxu0 0
    %1354 = vmatprep.subr.bf16.mxu0 0
    %1355 = vmatpush1.bf16.xpose.msra.mxu0 0
    %1356 = vmatprep.subr.bf16.mxu0 0
    %1357 = vmatpush1.bf16.xpose.msra.mxu0 0
    %1358 = vmatprep.subr.bf16.mxu0 0
    %1359 = vmatpush1.bf16.xpose.msra.mxu0 0
    %1360 = vmatprep.subr.bf16.mxu0 0
    %1361 = vmatpush1.bf16.xpose.msra.mxu0 0
    %1362 = vmatprep.subr.bf16.mxu0 0
    %1363 = vmatpush1.bf16.xpose.msra.mxu0 0
    %1364 = vmatprep.subr.bf16.mxu0 0
    %1365 = vmatpush1.bf16.xpose.msra.mxu0 0
    %1366 = vmatprep.subr.bf16.mxu0 0
    %1367 = vmatpush1.bf16.xpose.msra.mxu0 0
    %1368 = vmatprep.subr.bf16.mxu0 0
    %1369 = vmatpush1.bf16.xpose.msra.mxu0 0
    %1370 = vmatprep.subr.bf16.mxu0 0
    %1371 = vmatpush1.bf16.xpose.msra.mxu0 0
    %1372 = vmatprep.subr.bf16.mxu0 0
    %1373 = vmatpush1.bf16.xpose.msra.mxu0 0
    %1374 = vmatprep.subr.bf16.mxu0 0
    %1375 = vmatpush1.bf16.xpose.msra.mxu0 0
    %1376 = vmatprep.mubr.bf16.mxu0 0
    %1377 = vmatmul.mubr.bf16.gmra.mrb[0].mxu0 %v1339
    %v1378 = vpop.f32.mrb[0].mxu0
    %v1379 = vadd.f32 0.0, %v1378
    %v1380 = vpop.f32.mrb[0].mxu0
    %v1381 = vpop.f32.mrb[0].mxu0
    %v1382 = vpop.f32.mrb[0].mxu0
    %1383 = vdwg.mxu0
    %1384 = vxpose.xlu0.b32.start [1/16] %v1241, 128
    %1385 = vxpose.xlu0.b32.cont [2/16] %v1287, 128
    %1386 = vxpose.xlu0.b32.cont [3/16] %v1333, 128
    %1387 = vxpose.xlu0.b32.cont [4/16] %v1379, 128
    %1388 = vxpose.xlu0.b32.cont [5/16] 0.0, 128
    %1389 = vxpose.xlu0.b32.cont [6/16] 0.0, 128
    %1390 = vxpose.xlu0.b32.cont [7/16] 0.0, 128
    %1391 = vxpose.xlu0.b32.cont [8/16] 0.0, 128
    %1392 = vxpose.xlu0.b32.cont [9/16] 0.0, 128
    %1393 = vxpose.xlu0.b32.cont [10/16] 0.0, 128
    %1394 = vxpose.xlu0.b32.cont [11/16] 0.0, 128
    %1395 = vxpose.xlu0.b32.cont [12/16] 0.0, 128
    %1396 = vxpose.xlu0.b32.cont [13/16] 0.0, 128
    %1397 = vxpose.xlu0.b32.cont [14/16] 0.0, 128
    %1398 = vxpose.xlu0.b32.cont [15/16] 0.0, 128
    %1399 = vxpose.xlu0.b32.end [16/16] 0.0, 128
    %v1400 = vpop.trf.xlu0
    %v1401 = vpop.trf.xlu0
    %v1402 = vpop.trf.xlu0
    %v1403 = vpop.trf.xlu0
    %v1404 = vpop.trf.xlu0
    %v1405 = vpop.trf.xlu0
    %v1406 = vpop.trf.xlu0
    %v1407 = vpop.trf.xlu0
    %v1408 = vpop.trf.xlu0
    %v1409 = vpop.trf.xlu0
    %v1410 = vpop.trf.xlu0
    %v1411 = vpop.trf.xlu0
    %v1412 = vpop.trf.xlu0
    %v1413 = vpop.trf.xlu0
    %v1414 = vpop.trf.xlu0
    %v1415 = vpop.trf.xlu0
    %v1416 = vpack.c.bf16 %v1400, %v780
    %v1421 = vunpack.c.l.b16 %v65
    %v1422 = vunpack.c.l.b16 %v66
    %v1423 = vunpack.c.l.b16 %v67
    %v1424 = vunpack.c.l.b16 %v68
    %v1425 = vpack.c.b16 %v1422, %v1421
    %v1426 = vpack.c.b16 %v1424, %v1423
    %v1430 = vsel %vm85, %v1416, 0
    %1432 = vmatprep.subr.bf16.mxu0 0
    %1433 = vmatpush1.bf16.msra.mxu0 %v1425
    %1434 = vmatprep.subr.bf16.mxu0 0
    %1435 = vmatpush1.bf16.msra.mxu0 %v1426
    %1436 = vmatprep.subr.bf16.mxu0 0
    %1437 = vmatpush1.bf16.msra.mxu0 0
    %1438 = vmatprep.subr.bf16.mxu0 0
    %1439 = vmatpush1.bf16.msra.mxu0 0
    %1440 = vmatprep.subr.bf16.mxu0 0
    %1441 = vmatpush1.bf16.msra.mxu0 0
    %1442 = vmatprep.subr.bf16.mxu0 0
    %1443 = vmatpush1.bf16.msra.mxu0 0
    %1444 = vmatprep.subr.bf16.mxu0 0
    %1445 = vmatpush1.bf16.msra.mxu0 0
    %1446 = vmatprep.subr.bf16.mxu0 0
    %1447 = vmatpush1.bf16.msra.mxu0 0
    %1448 = vmatprep.subr.bf16.mxu0 0
    %1449 = vmatpush1.bf16.msra.mxu0 0
    %1450 = vmatprep.subr.bf16.mxu0 0
    %1451 = vmatpush1.bf16.msra.mxu0 0
    %1452 = vmatprep.subr.bf16.mxu0 0
    %1453 = vmatpush1.bf16.msra.mxu0 0
    %1454 = vmatprep.subr.bf16.mxu0 0
    %1455 = vmatpush1.bf16.msra.mxu0 0
    %1456 = vmatprep.subr.bf16.mxu0 0
    %1457 = vmatpush1.bf16.msra.mxu0 0
    %1458 = vmatprep.subr.bf16.mxu0 0
    %1459 = vmatpush1.bf16.msra.mxu0 0
    %1460 = vmatprep.subr.bf16.mxu0 0
    %1461 = vmatpush1.bf16.msra.mxu0 0
    %1462 = vmatprep.subr.bf16.mxu0 0
    %1463 = vmatpush1.bf16.msra.mxu0 0
    %1464 = vmatprep.mubr.bf16.mxu0 0
    %1465 = vmatmul.mubr.bf16.gmra.mrb[0].mxu0 %v1430
    %v1466 = vpop.f32.mrb[0].mxu0
    %v1467 = vadd.f32 %v82, %v1466
    %v1468 = vpop.f32.mrb[0].mxu0
    %v1469 = vpop.f32.mrb[0].mxu0
    %v1470 = vadd.f32 %v82, %v1469
    %v1471 = vpop.f32.mrb[0].mxu0
    %1472 = vdwg.mxu0
    %v1473 = vadd.f32 %v55, %v1467
    %v1474 = vadd.f32 %v56, %v1470
    %v1475 = vsel %vm85, %v1473, 0.0
    %1476 = vadd.xlane.f32.xlu0 %v1475
    %v1477 = vpop.xlane.xlu0 %1476
    %v1478 = vsel %vm85, %v1474, 0.0
    %1479 = vadd.xlane.f32.xlu0 %v1478
    %v1480 = vpop.xlane.xlu0 %1479
    %v1481 = vmul.f32 %v1477, %v92
    %v1482 = vmul.f32 %v1480, %v92
    %v1483 = vsub.f32 %v1473, %v1481
    %v1484 = vsub.f32 %v1474, %v1482
    %v1485 = vmul.f32 %v1483, %v1483
    %v1486 = vmul.f32 %v1484, %v1484
    %v1487 = vsel %vm85, %v1485, 0.0
    %1488 = vadd.xlane.f32.xlu0 %v1487
    %v1489 = vpop.xlane.xlu0 %1488
    %v1490 = vsel %vm85, %v1486, 0.0
    %1491 = vadd.xlane.f32.xlu0 %v1490
    %v1492 = vpop.xlane.xlu0 %1491
    %v1493 = vmul.f32 %v1489, %v92
    %v1494 = vmul.f32 %v1492, %v92
    %v1495 = vadd.f32 %v1493, 1e-05
    %v1496 = vadd.f32 %v1494, 1e-05
    %v1497 = vrsqrt.pop %v1495
    %v1498 = vrsqrt.pop %v1496
    %v1499 = vmul.f32 %v1483, %v1497
    %v1500 = vmul.f32 %v1484, %v1498
    %v1501 = vmul.f32 %v1499, %v59
    %v1502 = vmul.f32 %v1500, %v59
    %v1503 = vadd.f32 %v1501, %v60
    %v1504 = vadd.f32 %v1502, %v60
    %v1505 = vpack.c.bf16 %v1504, %v1503
    %v1510 = vunpack.c.l.b16 %v69
    %v1511 = vunpack.c.l.b16 %v70
    %v1512 = vunpack.c.l.b16 %v71
    %v1513 = vunpack.c.l.b16 %v72
    %v1514 = vpack.c.b16 %v1511, %v1510
    %v1515 = vpack.c.b16 %v1513, %v1512
    %v1519 = vsel %vm85, %v1505, 0
    %1521 = vmatprep.subr.bf16.mxu0 0
    %1522 = vmatpush1.bf16.msra.mxu0 %v1514
    %1523 = vmatprep.subr.bf16.mxu0 0
    %1524 = vmatpush1.bf16.msra.mxu0 %v1515
    %1525 = vmatprep.subr.bf16.mxu0 0
    %1526 = vmatpush1.bf16.msra.mxu0 0
    %1527 = vmatprep.subr.bf16.mxu0 0
    %1528 = vmatpush1.bf16.msra.mxu0 0
    %1529 = vmatprep.subr.bf16.mxu0 0
    %1530 = vmatpush1.bf16.msra.mxu0 0
    %1531 = vmatprep.subr.bf16.mxu0 0
    %1532 = vmatpush1.bf16.msra.mxu0 0
    %1533 = vmatprep.subr.bf16.mxu0 0
    %1534 = vmatpush1.bf16.msra.mxu0 0
    %1535 = vmatprep.subr.bf16.mxu0 0
    %1536 = vmatpush1.bf16.msra.mxu0 0
    %1537 = vmatprep.subr.bf16.mxu0 0
    %1538 = vmatpush1.bf16.msra.mxu0 0
    %1539 = vmatprep.subr.bf16.mxu0 0
    %1540 = vmatpush1.bf16.msra.mxu0 0
    %1541 = vmatprep.subr.bf16.mxu0 0
    %1542 = vmatpush1.bf16.msra.mxu0 0
    %1543 = vmatprep.subr.bf16.mxu0 0
    %1544 = vmatpush1.bf16.msra.mxu0 0
    %1545 = vmatprep.subr.bf16.mxu0 0
    %1546 = vmatpush1.bf16.msra.mxu0 0
    %1547 = vmatprep.subr.bf16.mxu0 0
    %1548 = vmatpush1.bf16.msra.mxu0 0
    %1549 = vmatprep.subr.bf16.mxu0 0
    %1550 = vmatpush1.bf16.msra.mxu0 0
    %1551 = vmatprep.subr.bf16.mxu0 0
    %1552 = vmatpush1.bf16.msra.mxu0 0
    %1553 = vmatprep.mubr.bf16.mxu0 0
    %1554 = vmatmul.mubr.bf16.gmra.mrb[0].mxu0 %v1519
    %v1555 = vpop.f32.mrb[0].mxu0
    %v1556 = vadd.f32 %v83, %v1555
    %v1557 = vpop.f32.mrb[0].mxu0
    %v1558 = vpop.f32.mrb[0].mxu0
    %v1559 = vadd.f32 %v83, %v1558
    %v1560 = vpop.f32.mrb[0].mxu0
    %1561 = vdwg.mxu0
    %v1562 = vmax.f32 %v1556, 0.0
    %v1563 = vmax.f32 %v1559, 0.0
    %v1564 = vpack.c.bf16 %v1563, %v1562
    %v1573 = vunpack.c.l.b16 %v73
    %v1574 = vunpack.c.l.b16 %v74
    %v1575 = vunpack.c.l.b16 %v75
    %v1576 = vunpack.c.l.b16 %v76
    %v1577 = vunpack.c.l.b16 %v77
    %v1578 = vunpack.c.l.b16 %v78
    %v1579 = vunpack.c.l.b16 %v79
    %v1580 = vunpack.c.l.b16 %v80
    %v1581 = vpack.c.b16 %v1574, %v1573
    %v1582 = vpack.c.b16 %v1576, %v1575
    %v1583 = vpack.c.b16 %v1578, %v1577
    %v1584 = vpack.c.b16 %v1580, %v1579
    %vm1589 = vcmask 523264
    %v1591 = vsel %vm1589, %v1564, 0
    %1593 = vmatprep.subr.bf16.mxu0 0
    %1594 = vmatpush1.bf16.msra.mxu0 %v1581
    %1595 = vmatprep.subr.bf16.mxu0 0
    %1596 = vmatpush1.bf16.msra.mxu0 %v1582
    %1597 = vmatprep.subr.bf16.mxu0 0
    %1598 = vmatpush1.bf16.msra.mxu0 %v1583
    %1599 = vmatprep.subr.bf16.mxu0 0
    %1600 = vmatpush1.bf16.msra.mxu0 %v1584
    %1601 = vmatprep.subr.bf16.mxu0 0
    %1602 = vmatpush1.bf16.msra.mxu0 0
    %1603 = vmatprep.subr.bf16.mxu0 0
    %1604 = vmatpush1.bf16.msra.mxu0 0
    %1605 = vmatprep.subr.bf16.mxu0 0
    %1606 = vmatpush1.bf16.msra.mxu0 0
    %1607 = vmatprep.subr.bf16.mxu0 0
    %1608 = vmatpush1.bf16.msra.mxu0 0
    %1609 = vmatprep.subr.bf16.mxu0 0
    %1610 = vmatpush1.bf16.msra.mxu0 0
    %1611 = vmatprep.subr.bf16.mxu0 0
    %1612 = vmatpush1.bf16.msra.mxu0 0
    %1613 = vmatprep.subr.bf16.mxu0 0
    %1614 = vmatpush1.bf16.msra.mxu0 0
    %1615 = vmatprep.subr.bf16.mxu0 0
    %1616 = vmatpush1.bf16.msra.mxu0 0
    %1617 = vmatprep.subr.bf16.mxu0 0
    %1618 = vmatpush1.bf16.msra.mxu0 0
    %1619 = vmatprep.subr.bf16.mxu0 0
    %1620 = vmatpush1.bf16.msra.mxu0 0
    %1621 = vmatprep.subr.bf16.mxu0 0
    %1622 = vmatpush1.bf16.msra.mxu0 0
    %1623 = vmatprep.subr.bf16.mxu0 0
    %1624 = vmatpush1.bf16.msra.mxu0 0
    %1625 = vmatprep.mubr.bf16.mxu0 0
    %1626 = vmatmul.mubr.bf16.gmra.mrb[0].mxu0 %v1591
    %v1627 = vpop.f32.mrb[0].mxu0
    %v1628 = vadd.f32 %v84, %v1627
    %v1629 = vpop.f32.mrb[0].mxu0
    %v1630 = vpop.f32.mrb[0].mxu0
    %v1631 = vadd.f32 %v84, %v1630
    %v1632 = vpop.f32.mrb[0].mxu0
    %1633 = vdwg.mxu0
    %v1634 = vadd.f32 %v1473, %v1628
    %v1635 = vadd.f32 %v1474, %v1631
    %s1636 = scalar_lea.vmem [#allocation5], 128
    %v1637 = vld [vmem:[%s1636] sm:$0xf]
    %v1638 = vld [vmem:[%s1636 + $0x10] sm:$0xf]
    %v1639 = vld [vmem:[%s1636 + $0x20] sm:$0xf]
    %v1640 = vld [vmem:[%s1636 + $0x30] sm:$0xf]
    %v1641 = vld [vmem:[%s1636 + $0x4] sm:$0xf]
    %v1642 = vld [vmem:[%s1636 + $0x14] sm:$0xf]
    %v1643 = vld [vmem:[%s1636 + $0x24] sm:$0xf]
    %v1644 = vld [vmem:[%s1636 + $0x34] sm:$0xf]
    %v1645 = vld [vmem:[%s1636 + $0x8] sm:$0xf]
    %v1646 = vld [vmem:[%s1636 + $0x18] sm:$0xf]
    %v1647 = vld [vmem:[%s1636 + $0x28] sm:$0xf]
    %v1648 = vld [vmem:[%s1636 + $0x38] sm:$0xf]
    %v1649 = vld [vmem:[%s1636 + $0xc] sm:$0xf]
    %v1650 = vld [vmem:[%s1636 + $0x1c] sm:$0xf]
    %v1651 = vld [vmem:[%s1636 + $0x2c] sm:$0xf]
    %v1652 = vld [vmem:[%s1636 + $0x3c] sm:$0xf]
    %v1653 = vld [vmem:[%s1636 + $0x4c] sm:$0xf]
    %v1654 = vld [vmem:[%s1636 + $0x5c] sm:$0xf]
    %v1655 = vld [vmem:[%s1636 + $0x6c] sm:$0xf]
    %v1656 = vld [vmem:[%s1636 + $0x7c] sm:$0xf]
    %v1657 = vld [vmem:[#allocation7 + $0x1] ss:$0 sm:$0xff]
    %v1658 = vld [vmem:[#allocation7 + $0x9] ss:$0 sm:$0xff]
    %v1659 = vld [vmem:[#allocation7 + $0x11] ss:$0 sm:$0xff]
    %v1660 = vld [vmem:[#allocation7 + $0x19] ss:$0 sm:$0xff]
    %v1661 = vsel %vm85, %v1634, 0.0
    %1662 = vadd.xlane.f32.xlu0 %v1661
    %v1663 = vpop.xlane.xlu0 %1662
    %v1664 = vsel %vm85, %v1635, 0.0
    %1665 = vadd.xlane.f32.xlu0 %v1664
    %v1666 = vpop.xlane.xlu0 %1665
    %v1667 = vmul.f32 %v1663, %v92
    %v1668 = vmul.f32 %v1666, %v92
    %v1669 = vsub.f32 %v1634, %v1667
    %v1670 = vsub.f32 %v1635, %v1668
    %v1671 = vmul.f32 %v1669, %v1669
    %v1672 = vmul.f32 %v1670, %v1670
    %v1673 = vsel %vm85, %v1671, 0.0
    %1674 = vadd.xlane.f32.xlu0 %v1673
    %v1675 = vpop.xlane.xlu0 %1674
    %v1676 = vsel %vm85, %v1672, 0.0
    %1677 = vadd.xlane.f32.xlu0 %v1676
    %v1678 = vpop.xlane.xlu0 %1677
    %v1679 = vmul.f32 %v1675, %v92
    %v1680 = vmul.f32 %v1678, %v92
    %v1681 = vadd.f32 %v1679, 1e-05
    %v1682 = vadd.f32 %v1680, 1e-05
    %v1683 = vrsqrt.pop %v1681
    %v1684 = vrsqrt.pop %v1682
    %v1685 = vmul.f32 %v1669, %v1683
    %v1686 = vmul.f32 %v1670, %v1684
    %v1687 = vmul.f32 %v1685, %v57
    %v1688 = vmul.f32 %v1686, %v57
    %v1689 = vadd.f32 %v1687, %v58
    %v1690 = vadd.f32 %v1688, %v58
    %v1691 = vpack.c.bf16 %v1690, %v1689
    %v1696 = vunpack.c.l.b16 %v1637
    %v1697 = vunpack.c.l.b16 %v1638
    %v1698 = vunpack.c.l.b16 %v1639
    %v1699 = vunpack.c.l.b16 %v1640
    %v1700 = vpack.c.b16 %v1697, %v1696
    %v1701 = vpack.c.b16 %v1699, %v1698
    %v1705 = vsel %vm85, %v1691, 0
    %1707 = vmatprep.subr.bf16.mxu0 0
    %1708 = vmatpush1.bf16.msra.mxu0 %v1700
    %1709 = vmatprep.subr.bf16.mxu0 0
    %1710 = vmatpush1.bf16.msra.mxu0 %v1701
    %1711 = vmatprep.subr.bf16.mxu0 0
    %1712 = vmatpush1.bf16.msra.mxu0 0
    %1713 = vmatprep.subr.bf16.mxu0 0
    %1714 = vmatpush1.bf16.msra.mxu0 0
    %1715 = vmatprep.subr.bf16.mxu0 0
    %1716 = vmatpush1.bf16.msra.mxu0 0
    %1717 = vmatprep.subr.bf16.mxu0 0
    %1718 = vmatpush1.bf16.msra.mxu0 0
    %1719 = vmatprep.subr.bf16.mxu0 0
    %1720 = vmatpush1.bf16.msra.mxu0 0
    %1721 = vmatprep.subr.bf16.mxu0 0
    %1722 = vmatpush1.bf16.msra.mxu0 0
    %1723 = vmatprep.subr.bf16.mxu0 0
    %1724 = vmatpush1.bf16.msra.mxu0 0
    %1725 = vmatprep.subr.bf16.mxu0 0
    %1726 = vmatpush1.bf16.msra.mxu0 0
    %1727 = vmatprep.subr.bf16.mxu0 0
    %1728 = vmatpush1.bf16.msra.mxu0 0
    %1729 = vmatprep.subr.bf16.mxu0 0
    %1730 = vmatpush1.bf16.msra.mxu0 0
    %1731 = vmatprep.subr.bf16.mxu0 0
    %1732 = vmatpush1.bf16.msra.mxu0 0
    %1733 = vmatprep.subr.bf16.mxu0 0
    %1734 = vmatpush1.bf16.msra.mxu0 0
    %1735 = vmatprep.subr.bf16.mxu0 0
    %1736 = vmatpush1.bf16.msra.mxu0 0
    %1737 = vmatprep.subr.bf16.mxu0 0
    %1738 = vmatpush1.bf16.msra.mxu0 0
    %1739 = vmatprep.mubr.bf16.mxu0 0
    %1740 = vmatmul.mubr.bf16.gmra.mrb[0].mxu0 %v1705
    %v1741 = vpop.f32.mrb[0].mxu0
    %v1742 = vadd.f32 %v1657, %v1741
    %v1743 = vpop.f32.mrb[0].mxu0
    %v1744 = vpop.f32.mrb[0].mxu0
    %v1745 = vadd.f32 %v1657, %v1744
    %v1746 = vpop.f32.mrb[0].mxu0
    %1747 = vdwg.mxu0
    %1748 = vxpose.xlu0.b32.start [1/16] %v1742, 128
    %1749 = vxpose.xlu0.b32.cont [2/16] 0.0, 128
    %1750 = vxpose.xlu0.b32.cont [3/16] 0.0, 128
    %1751 = vxpose.xlu0.b32.cont [4/16] 0.0, 128
    %1752 = vxpose.xlu0.b32.cont [5/16] 0.0, 128
    %1753 = vxpose.xlu0.b32.cont [6/16] 0.0, 128
    %1754 = vxpose.xlu0.b32.cont [7/16] 0.0, 128
    %1755 = vxpose.xlu0.b32.cont [8/16] 0.0, 128
    %1756 = vxpose.xlu0.b32.cont [9/16] 0.0, 128
    %1757 = vxpose.xlu0.b32.cont [10/16] 0.0, 128
    %1758 = vxpose.xlu0.b32.cont [11/16] 0.0, 128
    %1759 = vxpose.xlu0.b32.cont [12/16] 0.0, 128
    %1760 = vxpose.xlu0.b32.cont [13/16] 0.0, 128
    %1761 = vxpose.xlu0.b32.cont [14/16] 0.0, 128
    %1762 = vxpose.xlu0.b32.cont [15/16] 0.0, 128
    %1763 = vxpose.xlu0.b32.end [16/16] 0.0, 128
    %v1764 = vpop.trf.xlu0
    %v1765 = vpop.trf.xlu0
    %v1766 = vpop.trf.xlu0
    %v1767 = vpop.trf.xlu0
    %v1768 = vpop.trf.xlu0
    %v1769 = vpop.trf.xlu0
    %v1770 = vpop.trf.xlu0
    %v1771 = vpop.trf.xlu0
    %v1772 = vpop.trf.xlu0
    %v1773 = vpop.trf.xlu0
    %v1774 = vpop.trf.xlu0
    %v1775 = vpop.trf.xlu0
    %v1776 = vpop.trf.xlu0
    %v1777 = vpop.trf.xlu0
    %v1778 = vpop.trf.xlu0
    %v1779 = vpop.trf.xlu0
    %1780 = vxpose.xlu0.b32.start [1/16] %v1764, 128
    %1781 = vxpose.xlu0.b32.cont [2/16] 0.0, 128
    %1782 = vxpose.xlu0.b32.cont [3/16] 0.0, 128
    %1783 = vxpose.xlu0.b32.cont [4/16] 0.0, 128
    %1784 = vxpose.xlu0.b32.cont [5/16] 0.0, 128
    %1785 = vxpose.xlu0.b32.cont [6/16] 0.0, 128
    %1786 = vxpose.xlu0.b32.cont [7/16] 0.0, 128
    %1787 = vxpose.xlu0.b32.cont [8/16] 0.0, 128
    %1788 = vxpose.xlu0.b32.cont [9/16] 0.0, 128
    %1789 = vxpose.xlu0.b32.cont [10/16] 0.0, 128
    %1790 = vxpose.xlu0.b32.cont [11/16] 0.0, 128
    %1791 = vxpose.xlu0.b32.cont [12/16] 0.0, 128
    %1792 = vxpose.xlu0.b32.cont [13/16] 0.0, 128
    %1793 = vxpose.xlu0.b32.cont [14/16] 0.0, 128
    %1794 = vxpose.xlu0.b32.cont [15/16] 0.0, 128
    %1795 = vxpose.xlu0.b32.end [16/16] 0.0, 128
    %v1796 = vpop.trf.xlu0
    %v1797 = vpop.trf.xlu0
    %v1798 = vpop.trf.xlu0
    %v1799 = vpop.trf.xlu0
    %v1800 = vpop.trf.xlu0
    %v1801 = vpop.trf.xlu0
    %v1802 = vpop.trf.xlu0
    %v1803 = vpop.trf.xlu0
    %v1804 = vpop.trf.xlu0
    %v1805 = vpop.trf.xlu0
    %v1806 = vpop.trf.xlu0
    %v1807 = vpop.trf.xlu0
    %v1808 = vpop.trf.xlu0
    %v1809 = vpop.trf.xlu0
    %v1810 = vpop.trf.xlu0
    %v1811 = vpop.trf.xlu0
    %1812 = vxpose.xlu0.b32.start [1/16] %v1765, 128
    %1813 = vxpose.xlu0.b32.cont [2/16] 0.0, 128
    %1814 = vxpose.xlu0.b32.cont [3/16] 0.0, 128
    %1815 = vxpose.xlu0.b32.cont [4/16] 0.0, 128
    %1816 = vxpose.xlu0.b32.cont [5/16] 0.0, 128
    %1817 = vxpose.xlu0.b32.cont [6/16] 0.0, 128
    %1818 = vxpose.xlu0.b32.cont [7/16] 0.0, 128
    %1819 = vxpose.xlu0.b32.cont [8/16] 0.0, 128
    %1820 = vxpose.xlu0.b32.cont [9/16] 0.0, 128
    %1821 = vxpose.xlu0.b32.cont [10/16] 0.0, 128
    %1822 = vxpose.xlu0.b32.cont [11/16] 0.0, 128
    %1823 = vxpose.xlu0.b32.cont [12/16] 0.0, 128
    %1824 = vxpose.xlu0.b32.cont [13/16] 0.0, 128
    %1825 = vxpose.xlu0.b32.cont [14/16] 0.0, 128
    %1826 = vxpose.xlu0.b32.cont [15/16] 0.0, 128
    %1827 = vxpose.xlu0.b32.end [16/16] 0.0, 128
    %v1828 = vpop.trf.xlu0
    %v1829 = vpop.trf.xlu0
    %v1830 = vpop.trf.xlu0
    %v1831 = vpop.trf.xlu0
    %v1832 = vpop.trf.xlu0
    %v1833 = vpop.trf.xlu0
    %v1834 = vpop.trf.xlu0
    %v1835 = vpop.trf.xlu0
    %v1836 = vpop.trf.xlu0
    %v1837 = vpop.trf.xlu0
    %v1838 = vpop.trf.xlu0
    %v1839 = vpop.trf.xlu0
    %v1840 = vpop.trf.xlu0
    %v1841 = vpop.trf.xlu0
    %v1842 = vpop.trf.xlu0
    %v1843 = vpop.trf.xlu0
    %1844 = vxpose.xlu0.b32.start [1/16] %v1766, 128
    %1845 = vxpose.xlu0.b32.cont [2/16] 0.0, 128
    %1846 = vxpose.xlu0.b32.cont [3/16] 0.0, 128
    %1847 = vxpose.xlu0.b32.cont [4/16] 0.0, 128
    %1848 = vxpose.xlu0.b32.cont [5/16] 0.0, 128
    %1849 = vxpose.xlu0.b32.cont [6/16] 0.0, 128
    %1850 = vxpose.xlu0.b32.cont [7/16] 0.0, 128
    %1851 = vxpose.xlu0.b32.cont [8/16] 0.0, 128
    %1852 = vxpose.xlu0.b32.cont [9/16] 0.0, 128
    %1853 = vxpose.xlu0.b32.cont [10/16] 0.0, 128
    %1854 = vxpose.xlu0.b32.cont [11/16] 0.0, 128
    %1855 = vxpose.xlu0.b32.cont [12/16] 0.0, 128
    %1856 = vxpose.xlu0.b32.cont [13/16] 0.0, 128
    %1857 = vxpose.xlu0.b32.cont [14/16] 0.0, 128
    %1858 = vxpose.xlu0.b32.cont [15/16] 0.0, 128
    %1859 = vxpose.xlu0.b32.end [16/16] 0.0, 128
    %v1860 = vpop.trf.xlu0
    %v1861 = vpop.trf.xlu0
    %v1862 = vpop.trf.xlu0
    %v1863 = vpop.trf.xlu0
    %v1864 = vpop.trf.xlu0
    %v1865 = vpop.trf.xlu0
    %v1866 = vpop.trf.xlu0
    %v1867 = vpop.trf.xlu0
    %v1868 = vpop.trf.xlu0
    %v1869 = vpop.trf.xlu0
    %v1870 = vpop.trf.xlu0
    %v1871 = vpop.trf.xlu0
    %v1872 = vpop.trf.xlu0
    %v1873 = vpop.trf.xlu0
    %v1874 = vpop.trf.xlu0
    %v1875 = vpop.trf.xlu0
    %1876 = vxpose.xlu0.b32.start [1/16] %v1767, 128
    %1877 = vxpose.xlu0.b32.cont [2/16] 0.0, 128
    %1878 = vxpose.xlu0.b32.cont [3/16] 0.0, 128
    %1879 = vxpose.xlu0.b32.cont [4/16] 0.0, 128
    %1880 = vxpose.xlu0.b32.cont [5/16] 0.0, 128
    %1881 = vxpose.xlu0.b32.cont [6/16] 0.0, 128
    %1882 = vxpose.xlu0.b32.cont [7/16] 0.0, 128
    %1883 = vxpose.xlu0.b32.cont [8/16] 0.0, 128
    %1884 = vxpose.xlu0.b32.cont [9/16] 0.0, 128
    %1885 = vxpose.xlu0.b32.cont [10/16] 0.0, 128
    %1886 = vxpose.xlu0.b32.cont [11/16] 0.0, 128
    %1887 = vxpose.xlu0.b32.cont [12/16] 0.0, 128
    %1888 = vxpose.xlu0.b32.cont [13/16] 0.0, 128
    %1889 = vxpose.xlu0.b32.cont [14/16] 0.0, 128
    %1890 = vxpose.xlu0.b32.cont [15/16] 0.0, 128
    %1891 = vxpose.xlu0.b32.end [16/16] 0.0, 128
    %v1892 = vpop.trf.xlu0
    %v1893 = vpop.trf.xlu0
    %v1894 = vpop.trf.xlu0
    %v1895 = vpop.trf.xlu0
    %v1896 = vpop.trf.xlu0
    %v1897 = vpop.trf.xlu0
    %v1898 = vpop.trf.xlu0
    %v1899 = vpop.trf.xlu0
    %v1900 = vpop.trf.xlu0
    %v1901 = vpop.trf.xlu0
    %v1902 = vpop.trf.xlu0
    %v1903 = vpop.trf.xlu0
    %v1904 = vpop.trf.xlu0
    %v1905 = vpop.trf.xlu0
    %v1906 = vpop.trf.xlu0
    %v1907 = vpop.trf.xlu0
    %v1908 = vpack.c.bf16 %v1796, %v1796
    %v1909 = vpack.c.bf16 %v1828, %v1828
    %v1910 = vpack.c.bf16 %v1860, %v1860
    %v1911 = vpack.c.bf16 %v1892, %v1892
    %v1912 = vpack.c.bf16 %v1768, %v1768
    %v1913 = vpack.c.bf16 %v1769, %v1769
    %v1914 = vpack.c.bf16 %v1770, %v1770
    %v1915 = vpack.c.bf16 %v1771, %v1771
    %v1917 = vsel %vm342, %v1908, 0
    %v1920 = vsel %vm346, %v1912, 0
    %1922 = vmatprep.subr.bf16.mxu0 0
    %1923 = vmatpush1.bf16.msra.mxu0 %v1920
    %1924 = vmatprep.subr.bf16.mxu0 0
    %1925 = vmatpush1.bf16.msra.mxu0 0
    %1926 = vmatprep.subr.bf16.mxu0 0
    %1927 = vmatpush1.bf16.msra.mxu0 0
    %1928 = vmatprep.subr.bf16.mxu0 0
    %1929 = vmatpush1.bf16.msra.mxu0 0
    %1930 = vmatprep.subr.bf16.mxu0 0
    %1931 = vmatpush1.bf16.msra.mxu0 0
    %1932 = vmatprep.subr.bf16.mxu0 0
    %1933 = vmatpush1.bf16.msra.mxu0 0
    %1934 = vmatprep.subr.bf16.mxu0 0
    %1935 = vmatpush1.bf16.msra.mxu0 0
    %1936 = vmatprep.subr.bf16.mxu0 0
    %1937 = vmatpush1.bf16.msra.mxu0 0
    %1938 = vmatprep.subr.bf16.mxu0 0
    %1939 = vmatpush1.bf16.msra.mxu0 0
    %1940 = vmatprep.subr.bf16.mxu0 0
    %1941 = vmatpush1.bf16.msra.mxu0 0
    %1942 = vmatprep.subr.bf16.mxu0 0
    %1943 = vmatpush1.bf16.msra.mxu0 0
    %1944 = vmatprep.subr.bf16.mxu0 0
    %1945 = vmatpush1.bf16.msra.mxu0 0
    %1946 = vmatprep.subr.bf16.mxu0 0
    %1947 = vmatpush1.bf16.msra.mxu0 0
    %1948 = vmatprep.subr.bf16.mxu0 0
    %1949 = vmatpush1.bf16.msra.mxu0 0
    %1950 = vmatprep.subr.bf16.mxu0 0
    %1951 = vmatpush1.bf16.msra.mxu0 0
    %1952 = vmatprep.subr.bf16.mxu0 0
    %1953 = vmatpush1.bf16.msra.mxu0 0
    %1954 = vmatprep.mubr.bf16.mxu0 0
    %1955 = vmatmul.mubr.bf16.gmra.mrb[0].mxu0 %v1917
    %v1956 = vpop.f32.mrb[0].mxu0
    %v1957 = vadd.f32 0.0, %v1956
    %v1958 = vpop.f32.mrb[0].mxu0
    %v1959 = vpop.f32.mrb[0].mxu0
    %v1960 = vpop.f32.mrb[0].mxu0
    %1961 = vdwg.mxu0
    %v1963 = vsel %vm342, %v1909, 0
    %v1966 = vsel %vm346, %v1913, 0
    %1968 = vmatprep.subr.bf16.mxu0 0
    %1969 = vmatpush1.bf16.msra.mxu0 %v1966
    %1970 = vmatprep.subr.bf16.mxu0 0
    %1971 = vmatpush1.bf16.msra.mxu0 0
    %1972 = vmatprep.subr.bf16.mxu0 0
    %1973 = vmatpush1.bf16.msra.mxu0 0
    %1974 = vmatprep.subr.bf16.mxu0 0
    %1975 = vmatpush1.bf16.msra.mxu0 0
    %1976 = vmatprep.subr.bf16.mxu0 0
    %1977 = vmatpush1.bf16.msra.mxu0 0
    %1978 = vmatprep.subr.bf16.mxu0 0
    %1979 = vmatpush1.bf16.msra.mxu0 0
    %1980 = vmatprep.subr.bf16.mxu0 0
    %1981 = vmatpush1.bf16.msra.mxu0 0
    %1982 = vmatprep.subr.bf16.mxu0 0
    %1983 = vmatpush1.bf16.msra.mxu0 0
    %1984 = vmatprep.subr.bf16.mxu0 0
    %1985 = vmatpush1.bf16.msra.mxu0 0
    %1986 = vmatprep.subr.bf16.mxu0 0
    %1987 = vmatpush1.bf16.msra.mxu0 0
    %1988 = vmatprep.subr.bf16.mxu0 0
    %1989 = vmatpush1.bf16.msra.mxu0 0
    %1990 = vmatprep.subr.bf16.mxu0 0
    %1991 = vmatpush1.bf16.msra.mxu0 0
    %1992 = vmatprep.subr.bf16.mxu0 0
    %1993 = vmatpush1.bf16.msra.mxu0 0
    %1994 = vmatprep.subr.bf16.mxu0 0
    %1995 = vmatpush1.bf16.msra.mxu0 0
    %1996 = vmatprep.subr.bf16.mxu0 0
    %1997 = vmatpush1.bf16.msra.mxu0 0
    %1998 = vmatprep.subr.bf16.mxu0 0
    %1999 = vmatpush1.bf16.msra.mxu0 0
    %2000 = vmatprep.mubr.bf16.mxu0 0
    %2001 = vmatmul.mubr.bf16.gmra.mrb[0].mxu0 %v1963
    %v2002 = vpop.f32.mrb[0].mxu0
    %v2003 = vadd.f32 0.0, %v2002
    %v2004 = vpop.f32.mrb[0].mxu0
    %v2005 = vpop.f32.mrb[0].mxu0
    %v2006 = vpop.f32.mrb[0].mxu0
    %2007 = vdwg.mxu0
    %v2009 = vsel %vm342, %v1910, 0
    %v2012 = vsel %vm346, %v1914, 0
    %2014 = vmatprep.subr.bf16.mxu0 0
    %2015 = vmatpush1.bf16.msra.mxu0 %v2012
    %2016 = vmatprep.subr.bf16.mxu0 0
    %2017 = vmatpush1.bf16.msra.mxu0 0
    %2018 = vmatprep.subr.bf16.mxu0 0
    %2019 = vmatpush1.bf16.msra.mxu0 0
    %2020 = vmatprep.subr.bf16.mxu0 0
    %2021 = vmatpush1.bf16.msra.mxu0 0
    %2022 = vmatprep.subr.bf16.mxu0 0
    %2023 = vmatpush1.bf16.msra.mxu0 0
    %2024 = vmatprep.subr.bf16.mxu0 0
    %2025 = vmatpush1.bf16.msra.mxu0 0
    %2026 = vmatprep.subr.bf16.mxu0 0
    %2027 = vmatpush1.bf16.msra.mxu0 0
    %2028 = vmatprep.subr.bf16.mxu0 0
    %2029 = vmatpush1.bf16.msra.mxu0 0
    %2030 = vmatprep.subr.bf16.mxu0 0
    %2031 = vmatpush1.bf16.msra.mxu0 0
    %2032 = vmatprep.subr.bf16.mxu0 0
    %2033 = vmatpush1.bf16.msra.mxu0 0
    %2034 = vmatprep.subr.bf16.mxu0 0
    %2035 = vmatpush1.bf16.msra.mxu0 0
    %2036 = vmatprep.subr.bf16.mxu0 0
    %2037 = vmatpush1.bf16.msra.mxu0 0
    %2038 = vmatprep.subr.bf16.mxu0 0
    %2039 = vmatpush1.bf16.msra.mxu0 0
    %2040 = vmatprep.subr.bf16.mxu0 0
    %2041 = vmatpush1.bf16.msra.mxu0 0
    %2042 = vmatprep.subr.bf16.mxu0 0
    %2043 = vmatpush1.bf16.msra.mxu0 0
    %2044 = vmatprep.subr.bf16.mxu0 0
    %2045 = vmatpush1.bf16.msra.mxu0 0
    %2046 = vmatprep.mubr.bf16.mxu0 0
    %2047 = vmatmul.mubr.bf16.gmra.mrb[0].mxu0 %v2009
    %v2048 = vpop.f32.mrb[0].mxu0
    %v2049 = vadd.f32 0.0, %v2048
    %v2050 = vpop.f32.mrb[0].mxu0
    %v2051 = vpop.f32.mrb[0].mxu0
    %v2052 = vpop.f32.mrb[0].mxu0
    %2053 = vdwg.mxu0
    %v2055 = vsel %vm342, %v1911, 0
    %v2058 = vsel %vm346, %v1915, 0
    %2060 = vmatprep.subr.bf16.mxu0 0
    %2061 = vmatpush1.bf16.msra.mxu0 %v2058
    %2062 = vmatprep.subr.bf16.mxu0 0
    %2063 = vmatpush1.bf16.msra.mxu0 0
    %2064 = vmatprep.subr.bf16.mxu0 0
    %2065 = vmatpush1.bf16.msra.mxu0 0
    %2066 = vmatprep.subr.bf16.mxu0 0
    %2067 = vmatpush1.bf16.msra.mxu0 0
    %2068 = vmatprep.subr.bf16.mxu0 0
    %2069 = vmatpush1.bf16.msra.mxu0 0
    %2070 = vmatprep.subr.bf16.mxu0 0
    %2071 = vmatpush1.bf16.msra.mxu0 0
    %2072 = vmatprep.subr.bf16.mxu0 0
    %2073 = vmatpush1.bf16.msra.mxu0 0
    %2074 = vmatprep.subr.bf16.mxu0 0
    %2075 = vmatpush1.bf16.msra.mxu0 0
    %2076 = vmatprep.subr.bf16.mxu0 0
    %2077 = vmatpush1.bf16.msra.mxu0 0
    %2078 = vmatprep.subr.bf16.mxu0 0
    %2079 = vmatpush1.bf16.msra.mxu0 0
    %2080 = vmatprep.subr.bf16.mxu0 0
    %2081 = vmatpush1.bf16.msra.mxu0 0
    %2082 = vmatprep.subr.bf16.mxu0 0
    %2083 = vmatpush1.bf16.msra.mxu0 0
    %2084 = vmatprep.subr.bf16.mxu0 0
    %2085 = vmatpush1.bf16.msra.mxu0 0
    %2086 = vmatprep.subr.bf16.mxu0 0
    %2087 = vmatpush1.bf16.msra.mxu0 0
    %2088 = vmatprep.subr.bf16.mxu0 0
    %2089 = vmatpush1.bf16.msra.mxu0 0
    %2090 = vmatprep.subr.bf16.mxu0 0
    %2091 = vmatpush1.bf16.msra.mxu0 0
    %2092 = vmatprep.mubr.bf16.mxu0 0
    %2093 = vmatmul.mubr.bf16.gmra.mrb[0].mxu0 %v2055
    %v2094 = vpop.f32.mrb[0].mxu0
    %v2095 = vadd.f32 0.0, %v2094
    %v2096 = vpop.f32.mrb[0].mxu0
    %v2097 = vpop.f32.mrb[0].mxu0
    %v2098 = vpop.f32.mrb[0].mxu0
    %2099 = vdwg.mxu0
    %v2100 = vsel %vm342, %v1957, -inf
    %2101 = vmax.xlane.f32.xlu0 %v2100
    %v2102 = vpop.xlane.xlu0 %2101
    %v2103 = vsel %vm342, %v2003, -inf
    %2104 = vmax.xlane.f32.xlu0 %v2103
    %v2105 = vpop.xlane.xlu0 %2104
    %v2106 = vsel %vm342, %v2049, -inf
    %2107 = vmax.xlane.f32.xlu0 %v2106
    %v2108 = vpop.xlane.xlu0 %2107
    %v2109 = vsel %vm342, %v2095, -inf
    %2110 = vmax.xlane.f32.xlu0 %v2109
    %v2111 = vpop.xlane.xlu0 %2110
    %v2112 = vsub.f32 %v1957, %v2102
    %v2113 = vsub.f32 %v2003, %v2105
    %v2114 = vsub.f32 %v2049, %v2108
    %v2115 = vsub.f32 %v2095, %v2111
    %v2116 = vmul.f32 %v2112, 1.442695
    %v2117 = vpow.pop %v2116
    %v2118 = vmul.f32 %v2113, 1.442695
    %v2119 = vpow.pop %v2118
    %v2120 = vmul.f32 %v2114, 1.442695
    %v2121 = vpow.pop %v2120
    %v2122 = vmul.f32 %v2115, 1.442695
    %v2123 = vpow.pop %v2122
    %v2124 = vsel %vm342, %v2117, 0.0
    %2125 = vadd.xlane.f32.xlu0 %v2124
    %v2126 = vpop.xlane.xlu0 %2125
    %v2127 = vsel %vm342, %v2119, 0.0
    %2128 = vadd.xlane.f32.xlu0 %v2127
    %v2129 = vpop.xlane.xlu0 %2128
    %v2130 = vsel %vm342, %v2121, 0.0
    %2131 = vadd.xlane.f32.xlu0 %v2130
    %v2132 = vpop.xlane.xlu0 %2131
    %v2133 = vsel %vm342, %v2123, 0.0
    %2134 = vadd.xlane.f32.xlu0 %v2133
    %v2135 = vpop.xlane.xlu0 %2134
    %v2136 = vrcp.pop %v2126
    %v2137 = vrcp.pop %v2129
    %v2138 = vrcp.pop %v2132
    %v2139 = vrcp.pop %v2135
    %v2140 = vmul.f32 %v2117, %v2136
    %v2141 = vmul.f32 %v2119, %v2137
    %v2142 = vmul.f32 %v2121, %v2138
    %v2143 = vmul.f32 %v2123, %v2139
    %v2144 = vpack.c.bf16 %v1772, %v1772
    %v2145 = vpack.c.bf16 %v1773, %v1773
    %v2146 = vpack.c.bf16 %v1774, %v1774
    %v2147 = vpack.c.bf16 %v1775, %v1775
    %v2148 = vpack.c.bf16 %v2140, %v2140
    %v2149 = vpack.c.bf16 %v2141, %v2141
    %v2150 = vpack.c.bf16 %v2142, %v2142
    %v2151 = vpack.c.bf16 %v2143, %v2143
    %v2153 = vsel %vm342, %v2144, 0
    %v2156 = vsel %vm342, %v2148, 0
    %2158 = vmatprep.subr.bf16.mxu0 0
    %2159 = vmatpush1.bf16.xpose.msra.mxu0 %v2156
    %2160 = vmatprep.subr.bf16.mxu0 0
    %2161 = vmatpush1.bf16.xpose.msra.mxu0 0
    %2162 = vmatprep.subr.bf16.mxu0 0
    %2163 = vmatpush1.bf16.xpose.msra.mxu0 0
    %2164 = vmatprep.subr.bf16.mxu0 0
    %2165 = vmatpush1.bf16.xpose.msra.mxu0 0
    %2166 = vmatprep.subr.bf16.mxu0 0
    %2167 = vmatpush1.bf16.xpose.msra.mxu0 0
    %2168 = vmatprep.subr.bf16.mxu0 0
    %2169 = vmatpush1.bf16.xpose.msra.mxu0 0
    %2170 = vmatprep.subr.bf16.mxu0 0
    %2171 = vmatpush1.bf16.xpose.msra.mxu0 0
    %2172 = vmatprep.subr.bf16.mxu0 0
    %2173 = vmatpush1.bf16.xpose.msra.mxu0 0
    %2174 = vmatprep.subr.bf16.mxu0 0
    %2175 = vmatpush1.bf16.xpose.msra.mxu0 0
    %2176 = vmatprep.subr.bf16.mxu0 0
    %2177 = vmatpush1.bf16.xpose.msra.mxu0 0
    %2178 = vmatprep.subr.bf16.mxu0 0
    %2179 = vmatpush1.bf16.xpose.msra.mxu0 0
    %2180 = vmatprep.subr.bf16.mxu0 0
    %2181 = vmatpush1.bf16.xpose.msra.mxu0 0
    %2182 = vmatprep.subr.bf16.mxu0 0
    %2183 = vmatpush1.bf16.xpose.msra.mxu0 0
    %2184 = vmatprep.subr.bf16.mxu0 0
    %2185 = vmatpush1.bf16.xpose.msra.mxu0 0
    %2186 = vmatprep.subr.bf16.mxu0 0
    %2187 = vmatpush1.bf16.xpose.msra.mxu0 0
    %2188 = vmatprep.subr.bf16.mxu0 0
    %2189 = vmatpush1.bf16.xpose.msra.mxu0 0
    %2190 = vmatprep.mubr.bf16.mxu0 0
    %2191 = vmatmul.mubr.bf16.gmra.mrb[0].mxu0 %v2153
    %v2192 = vpop.f32.mrb[0].mxu0
    %v2193 = vadd.f32 0.0, %v2192
    %v2194 = vpop.f32.mrb[0].mxu0
    %v2195 = vpop.f32.mrb[0].mxu0
    %v2196 = vpop.f32.mrb[0].mxu0
    %2197 = vdwg.mxu0
    %v2199 = vsel %vm342, %v2145, 0
    %v2202 = vsel %vm342, %v2149, 0
    %2204 = vmatprep.subr.bf16.mxu0 0
    %2205 = vmatpush1.bf16.xpose.msra.mxu0 %v2202
    %2206 = vmatprep.subr.bf16.mxu0 0
    %2207 = vmatpush1.bf16.xpose.msra.mxu0 0
    %2208 = vmatprep.subr.bf16.mxu0 0
    %2209 = vmatpush1.bf16.xpose.msra.mxu0 0
    %2210 = vmatprep.subr.bf16.mxu0 0
    %2211 = vmatpush1.bf16.xpose.msra.mxu0 0
    %2212 = vmatprep.subr.bf16.mxu0 0
    %2213 = vmatpush1.bf16.xpose.msra.mxu0 0
    %2214 = vmatprep.subr.bf16.mxu0 0
    %2215 = vmatpush1.bf16.xpose.msra.mxu0 0
    %2216 = vmatprep.subr.bf16.mxu0 0
    %2217 = vmatpush1.bf16.xpose.msra.mxu0 0
    %2218 = vmatprep.subr.bf16.mxu0 0
    %2219 = vmatpush1.bf16.xpose.msra.mxu0 0
    %2220 = vmatprep.subr.bf16.mxu0 0
    %2221 = vmatpush1.bf16.xpose.msra.mxu0 0
    %2222 = vmatprep.subr.bf16.mxu0 0
    %2223 = vmatpush1.bf16.xpose.msra.mxu0 0
    %2224 = vmatprep.subr.bf16.mxu0 0
    %2225 = vmatpush1.bf16.xpose.msra.mxu0 0
    %2226 = vmatprep.subr.bf16.mxu0 0
    %2227 = vmatpush1.bf16.xpose.msra.mxu0 0
    %2228 = vmatprep.subr.bf16.mxu0 0
    %2229 = vmatpush1.bf16.xpose.msra.mxu0 0
    %2230 = vmatprep.subr.bf16.mxu0 0
    %2231 = vmatpush1.bf16.xpose.msra.mxu0 0
    %2232 = vmatprep.subr.bf16.mxu0 0
    %2233 = vmatpush1.bf16.xpose.msra.mxu0 0
    %2234 = vmatprep.subr.bf16.mxu0 0
    %2235 = vmatpush1.bf16.xpose.msra.mxu0 0
    %2236 = vmatprep.mubr.bf16.mxu0 0
    %2237 = vmatmul.mubr.bf16.gmra.mrb[0].mxu0 %v2199
    %v2238 = vpop.f32.mrb[0].mxu0
    %v2239 = vadd.f32 0.0, %v2238
    %v2240 = vpop.f32.mrb[0].mxu0
    %v2241 = vpop.f32.mrb[0].mxu0
    %v2242 = vpop.f32.mrb[0].mxu0
    %2243 = vdwg.mxu0
    %v2245 = vsel %vm342, %v2146, 0
    %v2248 = vsel %vm342, %v2150, 0
    %2250 = vmatprep.subr.bf16.mxu0 0
    %2251 = vmatpush1.bf16.xpose.msra.mxu0 %v2248
    %2252 = vmatprep.subr.bf16.mxu0 0
    %2253 = vmatpush1.bf16.xpose.msra.mxu0 0
    %2254 = vmatprep.subr.bf16.mxu0 0
    %2255 = vmatpush1.bf16.xpose.msra.mxu0 0
    %2256 = vmatprep.subr.bf16.mxu0 0
    %2257 = vmatpush1.bf16.xpose.msra.mxu0 0
    %2258 = vmatprep.subr.bf16.mxu0 0
    %2259 = vmatpush1.bf16.xpose.msra.mxu0 0
    %2260 = vmatprep.subr.bf16.mxu0 0
    %2261 = vmatpush1.bf16.xpose.msra.mxu0 0
    %2262 = vmatprep.subr.bf16.mxu0 0
    %2263 = vmatpush1.bf16.xpose.msra.mxu0 0
    %2264 = vmatprep.subr.bf16.mxu0 0
    %2265 = vmatpush1.bf16.xpose.msra.mxu0 0
    %2266 = vmatprep.subr.bf16.mxu0 0
    %2267 = vmatpush1.bf16.xpose.msra.mxu0 0
    %2268 = vmatprep.subr.bf16.mxu0 0
    %2269 = vmatpush1.bf16.xpose.msra.mxu0 0
    %2270 = vmatprep.subr.bf16.mxu0 0
    %2271 = vmatpush1.bf16.xpose.msra.mxu0 0
    %2272 = vmatprep.subr.bf16.mxu0 0
    %2273 = vmatpush1.bf16.xpose.msra.mxu0 0
    %2274 = vmatprep.subr.bf16.mxu0 0
    %2275 = vmatpush1.bf16.xpose.msra.mxu0 0
    %2276 = vmatprep.subr.bf16.mxu0 0
    %2277 = vmatpush1.bf16.xpose.msra.mxu0 0
    %2278 = vmatprep.subr.bf16.mxu0 0
    %2279 = vmatpush1.bf16.xpose.msra.mxu0 0
    %2280 = vmatprep.subr.bf16.mxu0 0
    %2281 = vmatpush1.bf16.xpose.msra.mxu0 0
    %2282 = vmatprep.mubr.bf16.mxu0 0
    %2283 = vmatmul.mubr.bf16.gmra.mrb[0].mxu0 %v2245
    %v2284 = vpop.f32.mrb[0].mxu0
    %v2285 = vadd.f32 0.0, %v2284
    %v2286 = vpop.f32.mrb[0].mxu0
    %v2287 = vpop.f32.mrb[0].mxu0
    %v2288 = vpop.f32.mrb[0].mxu0
    %2289 = vdwg.mxu0
    %v2291 = vsel %vm342, %v2147, 0
    %v2294 = vsel %vm342, %v2151, 0
    %2296 = vmatprep.subr.bf16.mxu0 0
    %2297 = vmatpush1.bf16.xpose.msra.mxu0 %v2294
    %2298 = vmatprep.subr.bf16.mxu0 0
    %2299 = vmatpush1.bf16.xpose.msra.mxu0 0
    %2300 = vmatprep.subr.bf16.mxu0 0
    %2301 = vmatpush1.bf16.xpose.msra.mxu0 0
    %2302 = vmatprep.subr.bf16.mxu0 0
    %2303 = vmatpush1.bf16.xpose.msra.mxu0 0
    %2304 = vmatprep.subr.bf16.mxu0 0
    %2305 = vmatpush1.bf16.xpose.msra.mxu0 0
    %2306 = vmatprep.subr.bf16.mxu0 0
    %2307 = vmatpush1.bf16.xpose.msra.mxu0 0
    %2308 = vmatprep.subr.bf16.mxu0 0
    %2309 = vmatpush1.bf16.xpose.msra.mxu0 0
    %2310 = vmatprep.subr.bf16.mxu0 0
    %2311 = vmatpush1.bf16.xpose.msra.mxu0 0
    %2312 = vmatprep.subr.bf16.mxu0 0
    %2313 = vmatpush1.bf16.xpose.msra.mxu0 0
    %2314 = vmatprep.subr.bf16.mxu0 0
    %2315 = vmatpush1.bf16.xpose.msra.mxu0 0
    %2316 = vmatprep.subr.bf16.mxu0 0
    %2317 = vmatpush1.bf16.xpose.msra.mxu0 0
    %2318 = vmatprep.subr.bf16.mxu0 0
    %2319 = vmatpush1.bf16.xpose.msra.mxu0 0
    %2320 = vmatprep.subr.bf16.mxu0 0
    %2321 = vmatpush1.bf16.xpose.msra.mxu0 0
    %2322 = vmatprep.subr.bf16.mxu0 0
    %2323 = vmatpush1.bf16.xpose.msra.mxu0 0
    %2324 = vmatprep.subr.bf16.mxu0 0
    %2325 = vmatpush1.bf16.xpose.msra.mxu0 0
    %2326 = vmatprep.subr.bf16.mxu0 0
    %2327 = vmatpush1.bf16.xpose.msra.mxu0 0
    %2328 = vmatprep.mubr.bf16.mxu0 0
    %2329 = vmatmul.mubr.bf16.gmra.mrb[0].mxu0 %v2291
    %v2330 = vpop.f32.mrb[0].mxu0
    %v2331 = vadd.f32 0.0, %v2330
    %v2332 = vpop.f32.mrb[0].mxu0
    %v2333 = vpop.f32.mrb[0].mxu0
    %v2334 = vpop.f32.mrb[0].mxu0
    %2335 = vdwg.mxu0
    %2336 = vxpose.xlu0.b32.start [1/16] %v2193, 128
    %2337 = vxpose.xlu0.b32.cont [2/16] %v2239, 128
    %2338 = vxpose.xlu0.b32.cont [3/16] %v2285, 128
    %2339 = vxpose.xlu0.b32.cont [4/16] %v2331, 128
    %2340 = vxpose.xlu0.b32.cont [5/16] 0.0, 128
    %2341 = vxpose.xlu0.b32.cont [6/16] 0.0, 128
    %2342 = vxpose.xlu0.b32.cont [7/16] 0.0, 128
    %2343 = vxpose.xlu0.b32.cont [8/16] 0.0, 128
    %2344 = vxpose.xlu0.b32.cont [9/16] 0.0, 128
    %2345 = vxpose.xlu0.b32.cont [10/16] 0.0, 128
    %2346 = vxpose.xlu0.b32.cont [11/16] 0.0, 128
    %2347 = vxpose.xlu0.b32.cont [12/16] 0.0, 128
    %2348 = vxpose.xlu0.b32.cont [13/16] 0.0, 128
    %2349 = vxpose.xlu0.b32.cont [14/16] 0.0, 128
    %2350 = vxpose.xlu0.b32.cont [15/16] 0.0, 128
    %2351 = vxpose.xlu0.b32.end [16/16] 0.0, 128
    %v2352 = vpop.trf.xlu0
    %v2353 = vpop.trf.xlu0
    %v2354 = vpop.trf.xlu0
    %v2355 = vpop.trf.xlu0
    %v2356 = vpop.trf.xlu0
    %v2357 = vpop.trf.xlu0
    %v2358 = vpop.trf.xlu0
    %v2359 = vpop.trf.xlu0
    %v2360 = vpop.trf.xlu0
    %v2361 = vpop.trf.xlu0
    %v2362 = vpop.trf.xlu0
    %v2363 = vpop.trf.xlu0
    %v2364 = vpop.trf.xlu0
    %v2365 = vpop.trf.xlu0
    %v2366 = vpop.trf.xlu0
    %v2367 = vpop.trf.xlu0
    %2368 = vxpose.xlu0.b32.start [1/16] %v1745, 128
    %2369 = vxpose.xlu0.b32.cont [2/16] 0.0, 128
    %2370 = vxpose.xlu0.b32.cont [3/16] 0.0, 128
    %2371 = vxpose.xlu0.b32.cont [4/16] 0.0, 128
    %2372 = vxpose.xlu0.b32.cont [5/16] 0.0, 128
    %2373 = vxpose.xlu0.b32.cont [6/16] 0.0, 128
    %2374 = vxpose.xlu0.b32.cont [7/16] 0.0, 128
    %2375 = vxpose.xlu0.b32.cont [8/16] 0.0, 128
    %2376 = vxpose.xlu0.b32.cont [9/16] 0.0, 128
    %2377 = vxpose.xlu0.b32.cont [10/16] 0.0, 128
    %2378 = vxpose.xlu0.b32.cont [11/16] 0.0, 128
    %2379 = vxpose.xlu0.b32.cont [12/16] 0.0, 128
    %2380 = vxpose.xlu0.b32.cont [13/16] 0.0, 128
    %2381 = vxpose.xlu0.b32.cont [14/16] 0.0, 128
    %2382 = vxpose.xlu0.b32.cont [15/16] 0.0, 128
    %2383 = vxpose.xlu0.b32.end [16/16] 0.0, 128
    %v2384 = vpop.trf.xlu0
    %v2385 = vpop.trf.xlu0
    %v2386 = vpop.trf.xlu0
    %v2387 = vpop.trf.xlu0
    %v2388 = vpop.trf.xlu0
    %v2389 = vpop.trf.xlu0
    %v2390 = vpop.trf.xlu0
    %v2391 = vpop.trf.xlu0
    %v2392 = vpop.trf.xlu0
    %v2393 = vpop.trf.xlu0
    %v2394 = vpop.trf.xlu0
    %v2395 = vpop.trf.xlu0
    %v2396 = vpop.trf.xlu0
    %v2397 = vpop.trf.xlu0
    %v2398 = vpop.trf.xlu0
    %v2399 = vpop.trf.xlu0
    %2400 = vxpose.xlu0.b32.start [1/16] %v2384, 128
    %2401 = vxpose.xlu0.b32.cont [2/16] 0.0, 128
    %2402 = vxpose.xlu0.b32.cont [3/16] 0.0, 128
    %2403 = vxpose.xlu0.b32.cont [4/16] 0.0, 128
    %2404 = vxpose.xlu0.b32.cont [5/16] 0.0, 128
    %2405 = vxpose.xlu0.b32.cont [6/16] 0.0, 128
    %2406 = vxpose.xlu0.b32.cont [7/16] 0.0, 128
    %2407 = vxpose.xlu0.b32.cont [8/16] 0.0, 128
    %2408 = vxpose.xlu0.b32.cont [9/16] 0.0, 128
    %2409 = vxpose.xlu0.b32.cont [10/16] 0.0, 128
    %2410 = vxpose.xlu0.b32.cont [11/16] 0.0, 128
    %2411 = vxpose.xlu0.b32.cont [12/16] 0.0, 128
    %2412 = vxpose.xlu0.b32.cont [13/16] 0.0, 128
    %2413 = vxpose.xlu0.b32.cont [14/16] 0.0, 128
    %2414 = vxpose.xlu0.b32.cont [15/16] 0.0, 128
    %2415 = vxpose.xlu0.b32.end [16/16] 0.0, 128
    %v2416 = vpop.trf.xlu0
    %v2417 = vpop.trf.xlu0
    %v2418 = vpop.trf.xlu0
    %v2419 = vpop.trf.xlu0
    %v2420 = vpop.trf.xlu0
    %v2421 = vpop.trf.xlu0
    %v2422 = vpop.trf.xlu0
    %v2423 = vpop.trf.xlu0
    %v2424 = vpop.trf.xlu0
    %v2425 = vpop.trf.xlu0
    %v2426 = vpop.trf.xlu0
    %v2427 = vpop.trf.xlu0
    %v2428 = vpop.trf.xlu0
    %v2429 = vpop.trf.xlu0
    %v2430 = vpop.trf.xlu0
    %v2431 = vpop.trf.xlu0
    %2432 = vxpose.xlu0.b32.start [1/16] %v2385, 128
    %2433 = vxpose.xlu0.b32.cont [2/16] 0.0, 128
    %2434 = vxpose.xlu0.b32.cont [3/16] 0.0, 128
    %2435 = vxpose.xlu0.b32.cont [4/16] 0.0, 128
    %2436 = vxpose.xlu0.b32.cont [5/16] 0.0, 128
    %2437 = vxpose.xlu0.b32.cont [6/16] 0.0, 128
    %2438 = vxpose.xlu0.b32.cont [7/16] 0.0, 128
    %2439 = vxpose.xlu0.b32.cont [8/16] 0.0, 128
    %2440 = vxpose.xlu0.b32.cont [9/16] 0.0, 128
    %2441 = vxpose.xlu0.b32.cont [10/16] 0.0, 128
    %2442 = vxpose.xlu0.b32.cont [11/16] 0.0, 128
    %2443 = vxpose.xlu0.b32.cont [12/16] 0.0, 128
    %2444 = vxpose.xlu0.b32.cont [13/16] 0.0, 128
    %2445 = vxpose.xlu0.b32.cont [14/16] 0.0, 128
    %2446 = vxpose.xlu0.b32.cont [15/16] 0.0, 128
    %2447 = vxpose.xlu0.b32.end [16/16] 0.0, 128
    %v2448 = vpop.trf.xlu0
    %v2449 = vpop.trf.xlu0
    %v2450 = vpop.trf.xlu0
    %v2451 = vpop.trf.xlu0
    %v2452 = vpop.trf.xlu0
    %v2453 = vpop.trf.xlu0
    %v2454 = vpop.trf.xlu0
    %v2455 = vpop.trf.xlu0
    %v2456 = vpop.trf.xlu0
    %v2457 = vpop.trf.xlu0
    %v2458 = vpop.trf.xlu0
    %v2459 = vpop.trf.xlu0
    %v2460 = vpop.trf.xlu0
    %v2461 = vpop.trf.xlu0
    %v2462 = vpop.trf.xlu0
    %v2463 = vpop.trf.xlu0
    %2464 = vxpose.xlu0.b32.start [1/16] %v2386, 128
    %2465 = vxpose.xlu0.b32.cont [2/16] 0.0, 128
    %2466 = vxpose.xlu0.b32.cont [3/16] 0.0, 128
    %2467 = vxpose.xlu0.b32.cont [4/16] 0.0, 128
    %2468 = vxpose.xlu0.b32.cont [5/16] 0.0, 128
    %2469 = vxpose.xlu0.b32.cont [6/16] 0.0, 128
    %2470 = vxpose.xlu0.b32.cont [7/16] 0.0, 128
    %2471 = vxpose.xlu0.b32.cont [8/16] 0.0, 128
    %2472 = vxpose.xlu0.b32.cont [9/16] 0.0, 128
    %2473 = vxpose.xlu0.b32.cont [10/16] 0.0, 128
    %2474 = vxpose.xlu0.b32.cont [11/16] 0.0, 128
    %2475 = vxpose.xlu0.b32.cont [12/16] 0.0, 128
    %2476 = vxpose.xlu0.b32.cont [13/16] 0.0, 128
    %2477 = vxpose.xlu0.b32.cont [14/16] 0.0, 128
    %2478 = vxpose.xlu0.b32.cont [15/16] 0.0, 128
    %2479 = vxpose.xlu0.b32.end [16/16] 0.0, 128
    %v2480 = vpop.trf.xlu0
    %v2481 = vpop.trf.xlu0
    %v2482 = vpop.trf.xlu0
    %v2483 = vpop.trf.xlu0
    %v2484 = vpop.trf.xlu0
    %v2485 = vpop.trf.xlu0
    %v2486 = vpop.trf.xlu0
    %v2487 = vpop.trf.xlu0
    %v2488 = vpop.trf.xlu0
    %v2489 = vpop.trf.xlu0
    %v2490 = vpop.trf.xlu0
    %v2491 = vpop.trf.xlu0
    %v2492 = vpop.trf.xlu0
    %v2493 = vpop.trf.xlu0
    %v2494 = vpop.trf.xlu0
    %v2495 = vpop.trf.xlu0
    %2496 = vxpose.xlu0.b32.start [1/16] %v2387, 128
    %2497 = vxpose.xlu0.b32.cont [2/16] 0.0, 128
    %2498 = vxpose.xlu0.b32.cont [3/16] 0.0, 128
    %2499 = vxpose.xlu0.b32.cont [4/16] 0.0, 128
    %2500 = vxpose.xlu0.b32.cont [5/16] 0.0, 128
    %2501 = vxpose.xlu0.b32.cont [6/16] 0.0, 128
    %2502 = vxpose.xlu0.b32.cont [7/16] 0.0, 128
    %2503 = vxpose.xlu0.b32.cont [8/16] 0.0, 128
    %2504 = vxpose.xlu0.b32.cont [9/16] 0.0, 128
    %2505 = vxpose.xlu0.b32.cont [10/16] 0.0, 128
    %2506 = vxpose.xlu0.b32.cont [11/16] 0.0, 128
    %2507 = vxpose.xlu0.b32.cont [12/16] 0.0, 128
    %2508 = vxpose.xlu0.b32.cont [13/16] 0.0, 128
    %2509 = vxpose.xlu0.b32.cont [14/16] 0.0, 128
    %2510 = vxpose.xlu0.b32.cont [15/16] 0.0, 128
    %2511 = vxpose.xlu0.b32.end [16/16] 0.0, 128
    %v2512 = vpop.trf.xlu0
    %v2513 = vpop.trf.xlu0
    %v2514 = vpop.trf.xlu0
    %v2515 = vpop.trf.xlu0
    %v2516 = vpop.trf.xlu0
    %v2517 = vpop.trf.xlu0
    %v2518 = vpop.trf.xlu0
    %v2519 = vpop.trf.xlu0
    %v2520 = vpop.trf.xlu0
    %v2521 = vpop.trf.xlu0
    %v2522 = vpop.trf.xlu0
    %v2523 = vpop.trf.xlu0
    %v2524 = vpop.trf.xlu0
    %v2525 = vpop.trf.xlu0
    %v2526 = vpop.trf.xlu0
    %v2527 = vpop.trf.xlu0
    %v2528 = vpack.c.bf16 %v2416, %v2416
    %v2529 = vpack.c.bf16 %v2448, %v2448
    %v2530 = vpack.c.bf16 %v2480, %v2480
    %v2531 = vpack.c.bf16 %v2512, %v2512
    %v2532 = vpack.c.bf16 %v2388, %v2388
    %v2533 = vpack.c.bf16 %v2389, %v2389
    %v2534 = vpack.c.bf16 %v2390, %v2390
    %v2535 = vpack.c.bf16 %v2391, %v2391
    %v2537 = vsel %vm342, %v2528, 0
    %v2540 = vsel %vm346, %v2532, 0
    %2542 = vmatprep.subr.bf16.mxu0 0
    %2543 = vmatpush1.bf16.msra.mxu0 %v2540
    %2544 = vmatprep.subr.bf16.mxu0 0
    %2545 = vmatpush1.bf16.msra.mxu0 0
    %2546 = vmatprep.subr.bf16.mxu0 0
    %2547 = vmatpush1.bf16.msra.mxu0 0
    %2548 = vmatprep.subr.bf16.mxu0 0
    %2549 = vmatpush1.bf16.msra.mxu0 0
    %2550 = vmatprep.subr.bf16.mxu0 0
    %2551 = vmatpush1.bf16.msra.mxu0 0
    %2552 = vmatprep.subr.bf16.mxu0 0
    %2553 = vmatpush1.bf16.msra.mxu0 0
    %2554 = vmatprep.subr.bf16.mxu0 0
    %2555 = vmatpush1.bf16.msra.mxu0 0
    %2556 = vmatprep.subr.bf16.mxu0 0
    %2557 = vmatpush1.bf16.msra.mxu0 0
    %2558 = vmatprep.subr.bf16.mxu0 0
    %2559 = vmatpush1.bf16.msra.mxu0 0
    %2560 = vmatprep.subr.bf16.mxu0 0
    %2561 = vmatpush1.bf16.msra.mxu0 0
    %2562 = vmatprep.subr.bf16.mxu0 0
    %2563 = vmatpush1.bf16.msra.mxu0 0
    %2564 = vmatprep.subr.bf16.mxu0 0
    %2565 = vmatpush1.bf16.msra.mxu0 0
    %2566 = vmatprep.subr.bf16.mxu0 0
    %2567 = vmatpush1.bf16.msra.mxu0 0
    %2568 = vmatprep.subr.bf16.mxu0 0
    %2569 = vmatpush1.bf16.msra.mxu0 0
    %2570 = vmatprep.subr.bf16.mxu0 0
    %2571 = vmatpush1.bf16.msra.mxu0 0
    %2572 = vmatprep.subr.bf16.mxu0 0
    %2573 = vmatpush1.bf16.msra.mxu0 0
    %2574 = vmatprep.mubr.bf16.mxu0 0
    %2575 = vmatmul.mubr.bf16.gmra.mrb[0].mxu0 %v2537
    %v2576 = vpop.f32.mrb[0].mxu0
    %v2577 = vadd.f32 0.0, %v2576
    %v2578 = vpop.f32.mrb[0].mxu0
    %v2579 = vpop.f32.mrb[0].mxu0
    %v2580 = vpop.f32.mrb[0].mxu0
    %2581 = vdwg.mxu0
    %v2583 = vsel %vm342, %v2529, 0
    %v2586 = vsel %vm346, %v2533, 0
    %2588 = vmatprep.subr.bf16.mxu0 0
    %2589 = vmatpush1.bf16.msra.mxu0 %v2586
    %2590 = vmatprep.subr.bf16.mxu0 0
    %2591 = vmatpush1.bf16.msra.mxu0 0
    %2592 = vmatprep.subr.bf16.mxu0 0
    %2593 = vmatpush1.bf16.msra.mxu0 0
    %2594 = vmatprep.subr.bf16.mxu0 0
    %2595 = vmatpush1.bf16.msra.mxu0 0
    %2596 = vmatprep.subr.bf16.mxu0 0
    %2597 = vmatpush1.bf16.msra.mxu0 0
    %2598 = vmatprep.subr.bf16.mxu0 0
    %2599 = vmatpush1.bf16.msra.mxu0 0
    %2600 = vmatprep.subr.bf16.mxu0 0
    %2601 = vmatpush1.bf16.msra.mxu0 0
    %2602 = vmatprep.subr.bf16.mxu0 0
    %2603 = vmatpush1.bf16.msra.mxu0 0
    %2604 = vmatprep.subr.bf16.mxu0 0
    %2605 = vmatpush1.bf16.msra.mxu0 0
    %2606 = vmatprep.subr.bf16.mxu0 0
    %2607 = vmatpush1.bf16.msra.mxu0 0
    %2608 = vmatprep.subr.bf16.mxu0 0
    %2609 = vmatpush1.bf16.msra.mxu0 0
    %2610 = vmatprep.subr.bf16.mxu0 0
    %2611 = vmatpush1.bf16.msra.mxu0 0
    %2612 = vmatprep.subr.bf16.mxu0 0
    %2613 = vmatpush1.bf16.msra.mxu0 0
    %2614 = vmatprep.subr.bf16.mxu0 0
    %2615 = vmatpush1.bf16.msra.mxu0 0
    %2616 = vmatprep.subr.bf16.mxu0 0
    %2617 = vmatpush1.bf16.msra.mxu0 0
    %2618 = vmatprep.subr.bf16.mxu0 0
    %2619 = vmatpush1.bf16.msra.mxu0 0
    %2620 = vmatprep.mubr.bf16.mxu0 0
    %2621 = vmatmul.mubr.bf16.gmra.mrb[0].mxu0 %v2583
    %v2622 = vpop.f32.mrb[0].mxu0
    %v2623 = vadd.f32 0.0, %v2622
    %v2624 = vpop.f32.mrb[0].mxu0
    %v2625 = vpop.f32.mrb[0].mxu0
    %v2626 = vpop.f32.mrb[0].mxu0
    %2627 = vdwg.mxu0
    %v2629 = vsel %vm342, %v2530, 0
    %v2632 = vsel %vm346, %v2534, 0
    %2634 = vmatprep.subr.bf16.mxu0 0
    %2635 = vmatpush1.bf16.msra.mxu0 %v2632
    %2636 = vmatprep.subr.bf16.mxu0 0
    %2637 = vmatpush1.bf16.msra.mxu0 0
    %2638 = vmatprep.subr.bf16.mxu0 0
    %2639 = vmatpush1.bf16.msra.mxu0 0
    %2640 = vmatprep.subr.bf16.mxu0 0
    %2641 = vmatpush1.bf16.msra.mxu0 0
    %2642 = vmatprep.subr.bf16.mxu0 0
    %2643 = vmatpush1.bf16.msra.mxu0 0
    %2644 = vmatprep.subr.bf16.mxu0 0
    %2645 = vmatpush1.bf16.msra.mxu0 0
    %2646 = vmatprep.subr.bf16.mxu0 0
    %2647 = vmatpush1.bf16.msra.mxu0 0
    %2648 = vmatprep.subr.bf16.mxu0 0
    %2649 = vmatpush1.bf16.msra.mxu0 0
    %2650 = vmatprep.subr.bf16.mxu0 0
    %2651 = vmatpush1.bf16.msra.mxu0 0
    %2652 = vmatprep.subr.bf16.mxu0 0
    %2653 = vmatpush1.bf16.msra.mxu0 0
    %2654 = vmatprep.subr.bf16.mxu0 0
    %2655 = vmatpush1.bf16.msra.mxu0 0
    %2656 = vmatprep.subr.bf16.mxu0 0
    %2657 = vmatpush1.bf16.msra.mxu0 0
    %2658 = vmatprep.subr.bf16.mxu0 0
    %2659 = vmatpush1.bf16.msra.mxu0 0
    %2660 = vmatprep.subr.bf16.mxu0 0
    %2661 = vmatpush1.bf16.msra.mxu0 0
    %2662 = vmatprep.subr.bf16.mxu0 0
    %2663 = vmatpush1.bf16.msra.mxu0 0
    %2664 = vmatprep.subr.bf16.mxu0 0
    %2665 = vmatpush1.bf16.msra.mxu0 0
    %2666 = vmatprep.mubr.bf16.mxu0 0
    %2667 = vmatmul.mubr.bf16.gmra.mrb[0].mxu0 %v2629
    %v2668 = vpop.f32.mrb[0].mxu0
    %v2669 = vadd.f32 0.0, %v2668
    %v2670 = vpop.f32.mrb[0].mxu0
    %v2671 = vpop.f32.mrb[0].mxu0
    %v2672 = vpop.f32.mrb[0].mxu0
    %2673 = vdwg.mxu0
    %v2675 = vsel %vm342, %v2531, 0
    %v2678 = vsel %vm346, %v2535, 0
    %2680 = vmatprep.subr.bf16.mxu0 0
    %2681 = vmatpush1.bf16.msra.mxu0 %v2678
    %2682 = vmatprep.subr.bf16.mxu0 0
    %2683 = vmatpush1.bf16.msra.mxu0 0
    %2684 = vmatprep.subr.bf16.mxu0 0
    %2685 = vmatpush1.bf16.msra.mxu0 0
    %2686 = vmatprep.subr.bf16.mxu0 0
    %2687 = vmatpush1.bf16.msra.mxu0 0
    %2688 = vmatprep.subr.bf16.mxu0 0
    %2689 = vmatpush1.bf16.msra.mxu0 0
    %2690 = vmatprep.subr.bf16.mxu0 0
    %2691 = vmatpush1.bf16.msra.mxu0 0
    %2692 = vmatprep.subr.bf16.mxu0 0
    %2693 = vmatpush1.bf16.msra.mxu0 0
    %2694 = vmatprep.subr.bf16.mxu0 0
    %2695 = vmatpush1.bf16.msra.mxu0 0
    %2696 = vmatprep.subr.bf16.mxu0 0
    %2697 = vmatpush1.bf16.msra.mxu0 0
    %2698 = vmatprep.subr.bf16.mxu0 0
    %2699 = vmatpush1.bf16.msra.mxu0 0
    %2700 = vmatprep.subr.bf16.mxu0 0
    %2701 = vmatpush1.bf16.msra.mxu0 0
    %2702 = vmatprep.subr.bf16.mxu0 0
    %2703 = vmatpush1.bf16.msra.mxu0 0
    %2704 = vmatprep.subr.bf16.mxu0 0
    %2705 = vmatpush1.bf16.msra.mxu0 0
    %2706 = vmatprep.subr.bf16.mxu0 0
    %2707 = vmatpush1.bf16.msra.mxu0 0
    %2708 = vmatprep.subr.bf16.mxu0 0
    %2709 = vmatpush1.bf16.msra.mxu0 0
    %2710 = vmatprep.subr.bf16.mxu0 0
    %2711 = vmatpush1.bf16.msra.mxu0 0
    %2712 = vmatprep.mubr.bf16.mxu0 0
    %2713 = vmatmul.mubr.bf16.gmra.mrb[0].mxu0 %v2675
    %v2714 = vpop.f32.mrb[0].mxu0
    %v2715 = vadd.f32 0.0, %v2714
    %v2716 = vpop.f32.mrb[0].mxu0
    %v2717 = vpop.f32.mrb[0].mxu0
    %v2718 = vpop.f32.mrb[0].mxu0
    %2719 = vdwg.mxu0
    %v2720 = vsel %vm342, %v2577, -inf
    %2721 = vmax.xlane.f32.xlu0 %v2720
    %v2722 = vpop.xlane.xlu0 %2721
    %v2723 = vsel %vm342, %v2623, -inf
    %2724 = vmax.xlane.f32.xlu0 %v2723
    %v2725 = vpop.xlane.xlu0 %2724
    %v2726 = vsel %vm342, %v2669, -inf
    %2727 = vmax.xlane.f32.xlu0 %v2726
    %v2728 = vpop.xlane.xlu0 %2727
    %v2729 = vsel %vm342, %v2715, -inf
    %2730 = vmax.xlane.f32.xlu0 %v2729
    %v2731 = vpop.xlane.xlu0 %2730
    %v2732 = vsub.f32 %v2577, %v2722
    %v2733 = vsub.f32 %v2623, %v2725
    %v2734 = vsub.f32 %v2669, %v2728
    %v2735 = vsub.f32 %v2715, %v2731
    %v2736 = vmul.f32 %v2732, 1.442695
    %v2737 = vpow.pop %v2736
    %v2738 = vmul.f32 %v2733, 1.442695
    %v2739 = vpow.pop %v2738
    %v2740 = vmul.f32 %v2734, 1.442695
    %v2741 = vpow.pop %v2740
    %v2742 = vmul.f32 %v2735, 1.442695
    %v2743 = vpow.pop %v2742
    %v2744 = vsel %vm342, %v2737, 0.0
    %2745 = vadd.xlane.f32.xlu0 %v2744
    %v2746 = vpop.xlane.xlu0 %2745
    %v2747 = vsel %vm342, %v2739, 0.0
    %2748 = vadd.xlane.f32.xlu0 %v2747
    %v2749 = vpop.xlane.xlu0 %2748
    %v2750 = vsel %vm342, %v2741, 0.0
    %2751 = vadd.xlane.f32.xlu0 %v2750
    %v2752 = vpop.xlane.xlu0 %2751
    %v2753 = vsel %vm342, %v2743, 0.0
    %2754 = vadd.xlane.f32.xlu0 %v2753
    %v2755 = vpop.xlane.xlu0 %2754
    %v2756 = vrcp.pop %v2746
    %v2757 = vrcp.pop %v2749
    %v2758 = vrcp.pop %v2752
    %v2759 = vrcp.pop %v2755
    %v2760 = vmul.f32 %v2737, %v2756
    %v2761 = vmul.f32 %v2739, %v2757
    %v2762 = vmul.f32 %v2741, %v2758
    %v2763 = vmul.f32 %v2743, %v2759
    %v2764 = vpack.c.bf16 %v2392, %v2392
    %v2765 = vpack.c.bf16 %v2393, %v2393
    %v2766 = vpack.c.bf16 %v2394, %v2394
    %v2767 = vpack.c.bf16 %v2395, %v2395
    %v2768 = vpack.c.bf16 %v2760, %v2760
    %v2769 = vpack.c.bf16 %v2761, %v2761
    %v2770 = vpack.c.bf16 %v2762, %v2762
    %v2771 = vpack.c.bf16 %v2763, %v2763
    %v2773 = vsel %vm342, %v2764, 0
    %v2776 = vsel %vm342, %v2768, 0
    %2778 = vmatprep.subr.bf16.mxu0 0
    %2779 = vmatpush1.bf16.xpose.msra.mxu0 %v2776
    %2780 = vmatprep.subr.bf16.mxu0 0
    %2781 = vmatpush1.bf16.xpose.msra.mxu0 0
    %2782 = vmatprep.subr.bf16.mxu0 0
    %2783 = vmatpush1.bf16.xpose.msra.mxu0 0
    %2784 = vmatprep.subr.bf16.mxu0 0
    %2785 = vmatpush1.bf16.xpose.msra.mxu0 0
    %2786 = vmatprep.subr.bf16.mxu0 0
    %2787 = vmatpush1.bf16.xpose.msra.mxu0 0
    %2788 = vmatprep.subr.bf16.mxu0 0
    %2789 = vmatpush1.bf16.xpose.msra.mxu0 0
    %2790 = vmatprep.subr.bf16.mxu0 0
    %2791 = vmatpush1.bf16.xpose.msra.mxu0 0
    %2792 = vmatprep.subr.bf16.mxu0 0
    %2793 = vmatpush1.bf16.xpose.msra.mxu0 0
    %2794 = vmatprep.subr.bf16.mxu0 0
    %2795 = vmatpush1.bf16.xpose.msra.mxu0 0
    %2796 = vmatprep.subr.bf16.mxu0 0
    %2797 = vmatpush1.bf16.xpose.msra.mxu0 0
    %2798 = vmatprep.subr.bf16.mxu0 0
    %2799 = vmatpush1.bf16.xpose.msra.mxu0 0
    %2800 = vmatprep.subr.bf16.mxu0 0
    %2801 = vmatpush1.bf16.xpose.msra.mxu0 0
    %2802 = vmatprep.subr.bf16.mxu0 0
    %2803 = vmatpush1.bf16.xpose.msra.mxu0 0
    %2804 = vmatprep.subr.bf16.mxu0 0
    %2805 = vmatpush1.bf16.xpose.msra.mxu0 0
    %2806 = vmatprep.subr.bf16.mxu0 0
    %2807 = vmatpush1.bf16.xpose.msra.mxu0 0
    %2808 = vmatprep.subr.bf16.mxu0 0
    %2809 = vmatpush1.bf16.xpose.msra.mxu0 0
    %2810 = vmatprep.mubr.bf16.mxu0 0
    %2811 = vmatmul.mubr.bf16.gmra.mrb[0].mxu0 %v2773
    %v2812 = vpop.f32.mrb[0].mxu0
    %v2813 = vadd.f32 0.0, %v2812
    %v2814 = vpop.f32.mrb[0].mxu0
    %v2815 = vpop.f32.mrb[0].mxu0
    %v2816 = vpop.f32.mrb[0].mxu0
    %2817 = vdwg.mxu0
    %v2819 = vsel %vm342, %v2765, 0
    %v2822 = vsel %vm342, %v2769, 0
    %2824 = vmatprep.subr.bf16.mxu0 0
    %2825 = vmatpush1.bf16.xpose.msra.mxu0 %v2822
    %2826 = vmatprep.subr.bf16.mxu0 0
    %2827 = vmatpush1.bf16.xpose.msra.mxu0 0
    %2828 = vmatprep.subr.bf16.mxu0 0
    %2829 = vmatpush1.bf16.xpose.msra.mxu0 0
    %2830 = vmatprep.subr.bf16.mxu0 0
    %2831 = vmatpush1.bf16.xpose.msra.mxu0 0
    %2832 = vmatprep.subr.bf16.mxu0 0
    %2833 = vmatpush1.bf16.xpose.msra.mxu0 0
    %2834 = vmatprep.subr.bf16.mxu0 0
    %2835 = vmatpush1.bf16.xpose.msra.mxu0 0
    %2836 = vmatprep.subr.bf16.mxu0 0
    %2837 = vmatpush1.bf16.xpose.msra.mxu0 0
    %2838 = vmatprep.subr.bf16.mxu0 0
    %2839 = vmatpush1.bf16.xpose.msra.mxu0 0
    %2840 = vmatprep.subr.bf16.mxu0 0
    %2841 = vmatpush1.bf16.xpose.msra.mxu0 0
    %2842 = vmatprep.subr.bf16.mxu0 0
    %2843 = vmatpush1.bf16.xpose.msra.mxu0 0
    %2844 = vmatprep.subr.bf16.mxu0 0
    %2845 = vmatpush1.bf16.xpose.msra.mxu0 0
    %2846 = vmatprep.subr.bf16.mxu0 0
    %2847 = vmatpush1.bf16.xpose.msra.mxu0 0
    %2848 = vmatprep.subr.bf16.mxu0 0
    %2849 = vmatpush1.bf16.xpose.msra.mxu0 0
    %2850 = vmatprep.subr.bf16.mxu0 0
    %2851 = vmatpush1.bf16.xpose.msra.mxu0 0
    %2852 = vmatprep.subr.bf16.mxu0 0
    %2853 = vmatpush1.bf16.xpose.msra.mxu0 0
    %2854 = vmatprep.subr.bf16.mxu0 0
    %2855 = vmatpush1.bf16.xpose.msra.mxu0 0
    %2856 = vmatprep.mubr.bf16.mxu0 0
    %2857 = vmatmul.mubr.bf16.gmra.mrb[0].mxu0 %v2819
    %v2858 = vpop.f32.mrb[0].mxu0
    %v2859 = vadd.f32 0.0, %v2858
    %v2860 = vpop.f32.mrb[0].mxu0
    %v2861 = vpop.f32.mrb[0].mxu0
    %v2862 = vpop.f32.mrb[0].mxu0
    %2863 = vdwg.mxu0
    %v2865 = vsel %vm342, %v2766, 0
    %v2868 = vsel %vm342, %v2770, 0
    %2870 = vmatprep.subr.bf16.mxu0 0
    %2871 = vmatpush1.bf16.xpose.msra.mxu0 %v2868
    %2872 = vmatprep.subr.bf16.mxu0 0
    %2873 = vmatpush1.bf16.xpose.msra.mxu0 0
    %2874 = vmatprep.subr.bf16.mxu0 0
    %2875 = vmatpush1.bf16.xpose.msra.mxu0 0
    %2876 = vmatprep.subr.bf16.mxu0 0
    %2877 = vmatpush1.bf16.xpose.msra.mxu0 0
    %2878 = vmatprep.subr.bf16.mxu0 0
    %2879 = vmatpush1.bf16.xpose.msra.mxu0 0
    %2880 = vmatprep.subr.bf16.mxu0 0
    %2881 = vmatpush1.bf16.xpose.msra.mxu0 0
    %2882 = vmatprep.subr.bf16.mxu0 0
    %2883 = vmatpush1.bf16.xpose.msra.mxu0 0
    %2884 = vmatprep.subr.bf16.mxu0 0
    %2885 = vmatpush1.bf16.xpose.msra.mxu0 0
    %2886 = vmatprep.subr.bf16.mxu0 0
    %2887 = vmatpush1.bf16.xpose.msra.mxu0 0
    %2888 = vmatprep.subr.bf16.mxu0 0
    %2889 = vmatpush1.bf16.xpose.msra.mxu0 0
    %2890 = vmatprep.subr.bf16.mxu0 0
    %2891 = vmatpush1.bf16.xpose.msra.mxu0 0
    %2892 = vmatprep.subr.bf16.mxu0 0
    %2893 = vmatpush1.bf16.xpose.msra.mxu0 0
    %2894 = vmatprep.subr.bf16.mxu0 0
    %2895 = vmatpush1.bf16.xpose.msra.mxu0 0
    %2896 = vmatprep.subr.bf16.mxu0 0
    %2897 = vmatpush1.bf16.xpose.msra.mxu0 0
    %2898 = vmatprep.subr.bf16.mxu0 0
    %2899 = vmatpush1.bf16.xpose.msra.mxu0 0
    %2900 = vmatprep.subr.bf16.mxu0 0
    %2901 = vmatpush1.bf16.xpose.msra.mxu0 0
    %2902 = vmatprep.mubr.bf16.mxu0 0
    %2903 = vmatmul.mubr.bf16.gmra.mrb[0].mxu0 %v2865
    %v2904 = vpop.f32.mrb[0].mxu0
    %v2905 = vadd.f32 0.0, %v2904
    %v2906 = vpop.f32.mrb[0].mxu0
    %v2907 = vpop.f32.mrb[0].mxu0
    %v2908 = vpop.f32.mrb[0].mxu0
    %2909 = vdwg.mxu0
    %v2911 = vsel %vm342, %v2767, 0
    %v2914 = vsel %vm342, %v2771, 0
    %2916 = vmatprep.subr.bf16.mxu0 0
    %2917 = vmatpush1.bf16.xpose.msra.mxu0 %v2914
    %2918 = vmatprep.subr.bf16.mxu0 0
    %2919 = vmatpush1.bf16.xpose.msra.mxu0 0
    %2920 = vmatprep.subr.bf16.mxu0 0
    %2921 = vmatpush1.bf16.xpose.msra.mxu0 0
    %2922 = vmatprep.subr.bf16.mxu0 0
    %2923 = vmatpush1.bf16.xpose.msra.mxu0 0
    %2924 = vmatprep.subr.bf16.mxu0 0
    %2925 = vmatpush1.bf16.xpose.msra.mxu0 0
    %2926 = vmatprep.subr.bf16.mxu0 0
    %2927 = vmatpush1.bf16.xpose.msra.mxu0 0
    %2928 = vmatprep.subr.bf16.mxu0 0
    %2929 = vmatpush1.bf16.xpose.msra.mxu0 0
    %2930 = vmatprep.subr.bf16.mxu0 0
    %2931 = vmatpush1.bf16.xpose.msra.mxu0 0
    %2932 = vmatprep.subr.bf16.mxu0 0
    %2933 = vmatpush1.bf16.xpose.msra.mxu0 0
    %2934 = vmatprep.subr.bf16.mxu0 0
    %2935 = vmatpush1.bf16.xpose.msra.mxu0 0
    %2936 = vmatprep.subr.bf16.mxu0 0
    %2937 = vmatpush1.bf16.xpose.msra.mxu0 0
    %2938 = vmatprep.subr.bf16.mxu0 0
    %2939 = vmatpush1.bf16.xpose.msra.mxu0 0
    %2940 = vmatprep.subr.bf16.mxu0 0
    %2941 = vmatpush1.bf16.xpose.msra.mxu0 0
    %2942 = vmatprep.subr.bf16.mxu0 0
    %2943 = vmatpush1.bf16.xpose.msra.mxu0 0
    %2944 = vmatprep.subr.bf16.mxu0 0
    %2945 = vmatpush1.bf16.xpose.msra.mxu0 0
    %2946 = vmatprep.subr.bf16.mxu0 0
    %2947 = vmatpush1.bf16.xpose.msra.mxu0 0
    %2948 = vmatprep.mubr.bf16.mxu0 0
    %2949 = vmatmul.mubr.bf16.gmra.mrb[0].mxu0 %v2911
    %v2950 = vpop.f32.mrb[0].mxu0
    %v2951 = vadd.f32 0.0, %v2950
    %v2952 = vpop.f32.mrb[0].mxu0
    %v2953 = vpop.f32.mrb[0].mxu0
    %v2954 = vpop.f32.mrb[0].mxu0
    %2955 = vdwg.mxu0
    %2956 = vxpose.xlu0.b32.start [1/16] %v2813, 128
    %2957 = vxpose.xlu0.b32.cont [2/16] %v2859, 128
    %2958 = vxpose.xlu0.b32.cont [3/16] %v2905, 128
    %2959 = vxpose.xlu0.b32.cont [4/16] %v2951, 128
    %2960 = vxpose.xlu0.b32.cont [5/16] 0.0, 128
    %2961 = vxpose.xlu0.b32.cont [6/16] 0.0, 128
    %2962 = vxpose.xlu0.b32.cont [7/16] 0.0, 128
    %2963 = vxpose.xlu0.b32.cont [8/16] 0.0, 128
    %2964 = vxpose.xlu0.b32.cont [9/16] 0.0, 128
    %2965 = vxpose.xlu0.b32.cont [10/16] 0.0, 128
    %2966 = vxpose.xlu0.b32.cont [11/16] 0.0, 128
    %2967 = vxpose.xlu0.b32.cont [12/16] 0.0, 128
    %2968 = vxpose.xlu0.b32.cont [13/16] 0.0, 128
    %2969 = vxpose.xlu0.b32.cont [14/16] 0.0, 128
    %2970 = vxpose.xlu0.b32.cont [15/16] 0.0, 128
    %2971 = vxpose.xlu0.b32.end [16/16] 0.0, 128
    %v2972 = vpop.trf.xlu0
    %v2973 = vpop.trf.xlu0
    %v2974 = vpop.trf.xlu0
    %v2975 = vpop.trf.xlu0
    %v2976 = vpop.trf.xlu0
    %v2977 = vpop.trf.xlu0
    %v2978 = vpop.trf.xlu0
    %v2979 = vpop.trf.xlu0
    %v2980 = vpop.trf.xlu0
    %v2981 = vpop.trf.xlu0
    %v2982 = vpop.trf.xlu0
    %v2983 = vpop.trf.xlu0
    %v2984 = vpop.trf.xlu0
    %v2985 = vpop.trf.xlu0
    %v2986 = vpop.trf.xlu0
    %v2987 = vpop.trf.xlu0
    %v2988 = vpack.c.bf16 %v2972, %v2352
    %v2993 = vunpack.c.l.b16 %v1641
    %v2994 = vunpack.c.l.b16 %v1642
    %v2995 = vunpack.c.l.b16 %v1643
    %v2996 = vunpack.c.l.b16 %v1644
    %v2997 = vpack.c.b16 %v2994, %v2993
    %v2998 = vpack.c.b16 %v2996, %v2995
    %v3002 = vsel %vm85, %v2988, 0
    %3004 = vmatprep.subr.bf16.mxu0 0
    %3005 = vmatpush1.bf16.msra.mxu0 %v2997
    %3006 = vmatprep.subr.bf16.mxu0 0
    %3007 = vmatpush1.bf16.msra.mxu0 %v2998
    %3008 = vmatprep.subr.bf16.mxu0 0
    %3009 = vmatpush1.bf16.msra.mxu0 0
    %3010 = vmatprep.subr.bf16.mxu0 0
    %3011 = vmatpush1.bf16.msra.mxu0 0
    %3012 = vmatprep.subr.bf16.mxu0 0
    %3013 = vmatpush1.bf16.msra.mxu0 0
    %3014 = vmatprep.subr.bf16.mxu0 0
    %3015 = vmatpush1.bf16.msra.mxu0 0
    %3016 = vmatprep.subr.bf16.mxu0 0
    %3017 = vmatpush1.bf16.msra.mxu0 0
    %3018 = vmatprep.subr.bf16.mxu0 0
    %3019 = vmatpush1.bf16.msra.mxu0 0
    %3020 = vmatprep.subr.bf16.mxu0 0
    %3021 = vmatpush1.bf16.msra.mxu0 0
    %3022 = vmatprep.subr.bf16.mxu0 0
    %3023 = vmatpush1.bf16.msra.mxu0 0
    %3024 = vmatprep.subr.bf16.mxu0 0
    %3025 = vmatpush1.bf16.msra.mxu0 0
    %3026 = vmatprep.subr.bf16.mxu0 0
    %3027 = vmatpush1.bf16.msra.mxu0 0
    %3028 = vmatprep.subr.bf16.mxu0 0
    %3029 = vmatpush1.bf16.msra.mxu0 0
    %3030 = vmatprep.subr.bf16.mxu0 0
    %3031 = vmatpush1.bf16.msra.mxu0 0
    %3032 = vmatprep.subr.bf16.mxu0 0
    %3033 = vmatpush1.bf16.msra.mxu0 0
    %3034 = vmatprep.subr.bf16.mxu0 0
    %3035 = vmatpush1.bf16.msra.mxu0 0
    %3036 = vmatprep.mubr.bf16.mxu0 0
    %3037 = vmatmul.mubr.bf16.gmra.mrb[0].mxu0 %v3002
    %v3038 = vpop.f32.mrb[0].mxu0
    %v3039 = vadd.f32 %v1658, %v3038
    %v3040 = vpop.f32.mrb[0].mxu0
    %v3041 = vpop.f32.mrb[0].mxu0
    %v3042 = vadd.f32 %v1658, %v3041
    %v3043 = vpop.f32.mrb[0].mxu0
    %3044 = vdwg.mxu0
    %v3045 = vadd.f32 %v1634, %v3039
    %v3046 = vadd.f32 %v1635, %v3042
    %v3047 = vsel %vm85, %v3045, 0.0
    %3048 = vadd.xlane.f32.xlu0 %v3047
    %v3049 = vpop.xlane.xlu0 %3048
    %v3050 = vsel %vm85, %v3046, 0.0
    %3051 = vadd.xlane.f32.xlu0 %v3050
    %v3052 = vpop.xlane.xlu0 %3051
    %v3053 = vmul.f32 %v3049, %v92
    %v3054 = vmul.f32 %v3052, %v92
    %v3055 = vsub.f32 %v3045, %v3053
    %v3056 = vsub.f32 %v3046, %v3054
    %v3057 = vmul.f32 %v3055, %v3055
    %v3058 = vmul.f32 %v3056, %v3056
    %v3059 = vsel %vm85, %v3057, 0.0
    %3060 = vadd.xlane.f32.xlu0 %v3059
    %v3061 = vpop.xlane.xlu0 %3060
    %v3062 = vsel %vm85, %v3058, 0.0
    %3063 = vadd.xlane.f32.xlu0 %v3062
    %v3064 = vpop.xlane.xlu0 %3063
    %v3065 = vmul.f32 %v3061, %v92
    %v3066 = vmul.f32 %v3064, %v92
    %v3067 = vadd.f32 %v3065, 1e-05
    %v3068 = vadd.f32 %v3066, 1e-05
    %v3069 = vrsqrt.pop %v3067
    %v3070 = vrsqrt.pop %v3068
    %v3071 = vmul.f32 %v3055, %v3069
    %v3072 = vmul.f32 %v3056, %v3070
    %v3073 = vmul.f32 %v3071, %v59
    %v3074 = vmul.f32 %v3072, %v59
    %v3075 = vadd.f32 %v3073, %v60
    %v3076 = vadd.f32 %v3074, %v60
    %v3077 = vpack.c.bf16 %v3076, %v3075
    %v3082 = vunpack.c.l.b16 %v1645
    %v3083 = vunpack.c.l.b16 %v1646
    %v3084 = vunpack.c.l.b16 %v1647
    %v3085 = vunpack.c.l.b16 %v1648
    %v3086 = vpack.c.b16 %v3083, %v3082
    %v3087 = vpack.c.b16 %v3085, %v3084
    %v3091 = vsel %vm85, %v3077, 0
    %3093 = vmatprep.subr.bf16.mxu0 0
    %3094 = vmatpush1.bf16.msra.mxu0 %v3086
    %3095 = vmatprep.subr.bf16.mxu0 0
    %3096 = vmatpush1.bf16.msra.mxu0 %v3087
    %3097 = vmatprep.subr.bf16.mxu0 0
    %3098 = vmatpush1.bf16.msra.mxu0 0
    %3099 = vmatprep.subr.bf16.mxu0 0
    %3100 = vmatpush1.bf16.msra.mxu0 0
    %3101 = vmatprep.subr.bf16.mxu0 0
    %3102 = vmatpush1.bf16.msra.mxu0 0
    %3103 = vmatprep.subr.bf16.mxu0 0
    %3104 = vmatpush1.bf16.msra.mxu0 0
    %3105 = vmatprep.subr.bf16.mxu0 0
    %3106 = vmatpush1.bf16.msra.mxu0 0
    %3107 = vmatprep.subr.bf16.mxu0 0
    %3108 = vmatpush1.bf16.msra.mxu0 0
    %3109 = vmatprep.subr.bf16.mxu0 0
    %3110 = vmatpush1.bf16.msra.mxu0 0
    %3111 = vmatprep.subr.bf16.mxu0 0
    %3112 = vmatpush1.bf16.msra.mxu0 0
    %3113 = vmatprep.subr.bf16.mxu0 0
    %3114 = vmatpush1.bf16.msra.mxu0 0
    %3115 = vmatprep.subr.bf16.mxu0 0
    %3116 = vmatpush1.bf16.msra.mxu0 0
    %3117 = vmatprep.subr.bf16.mxu0 0
    %3118 = vmatpush1.bf16.msra.mxu0 0
    %3119 = vmatprep.subr.bf16.mxu0 0
    %3120 = vmatpush1.bf16.msra.mxu0 0
    %3121 = vmatprep.subr.bf16.mxu0 0
    %3122 = vmatpush1.bf16.msra.mxu0 0
    %3123 = vmatprep.subr.bf16.mxu0 0
    %3124 = vmatpush1.bf16.msra.mxu0 0
    %3125 = vmatprep.mubr.bf16.mxu0 0
    %3126 = vmatmul.mubr.bf16.gmra.mrb[0].mxu0 %v3091
    %v3127 = vpop.f32.mrb[0].mxu0
    %v3128 = vadd.f32 %v1659, %v3127
    %v3129 = vpop.f32.mrb[0].mxu0
    %v3130 = vpop.f32.mrb[0].mxu0
    %v3131 = vadd.f32 %v1659, %v3130
    %v3132 = vpop.f32.mrb[0].mxu0
    %3133 = vdwg.mxu0
    %v3134 = vmax.f32 %v3128, 0.0
    %v3135 = vmax.f32 %v3131, 0.0
    %v3136 = vpack.c.bf16 %v3135, %v3134
    %v3145 = vunpack.c.l.b16 %v1649
    %v3146 = vunpack.c.l.b16 %v1650
    %v3147 = vunpack.c.l.b16 %v1651
    %v3148 = vunpack.c.l.b16 %v1652
    %v3149 = vunpack.c.l.b16 %v1653
    %v3150 = vunpack.c.l.b16 %v1654
    %v3151 = vunpack.c.l.b16 %v1655
    %v3152 = vunpack.c.l.b16 %v1656
    %v3153 = vpack.c.b16 %v3146, %v3145
    %v3154 = vpack.c.b16 %v3148, %v3147
    %v3155 = vpack.c.b16 %v3150, %v3149
    %v3156 = vpack.c.b16 %v3152, %v3151
    %v3162 = vsel %vm1589, %v3136, 0
    %3164 = vmatprep.subr.bf16.mxu0 0
    %3165 = vmatpush1.bf16.msra.mxu0 %v3153
    %3166 = vmatprep.subr.bf16.mxu0 0
    %3167 = vmatpush1.bf16.msra.mxu0 %v3154
    %3168 = vmatprep.subr.bf16.mxu0 0
    %3169 = vmatpush1.bf16.msra.mxu0 %v3155
    %3170 = vmatprep.subr.bf16.mxu0 0
    %3171 = vmatpush1.bf16.msra.mxu0 %v3156
    %3172 = vmatprep.subr.bf16.mxu0 0
    %3173 = vmatpush1.bf16.msra.mxu0 0
    %3174 = vmatprep.subr.bf16.mxu0 0
    %3175 = vmatpush1.bf16.msra.mxu0 0
    %3176 = vmatprep.subr.bf16.mxu0 0
    %3177 = vmatpush1.bf16.msra.mxu0 0
    %3178 = vmatprep.subr.bf16.mxu0 0
    %3179 = vmatpush1.bf16.msra.mxu0 0
    %3180 = vmatprep.subr.bf16.mxu0 0
    %3181 = vmatpush1.bf16.msra.mxu0 0
    %3182 = vmatprep.subr.bf16.mxu0 0
    %3183 = vmatpush1.bf16.msra.mxu0 0
    %3184 = vmatprep.subr.bf16.mxu0 0
    %3185 = vmatpush1.bf16.msra.mxu0 0
    %3186 = vmatprep.subr.bf16.mxu0 0
    %3187 = vmatpush1.bf16.msra.mxu0 0
    %3188 = vmatprep.subr.bf16.mxu0 0
    %3189 = vmatpush1.bf16.msra.mxu0 0
    %3190 = vmatprep.subr.bf16.mxu0 0
    %3191 = vmatpush1.bf16.msra.mxu0 0
    %3192 = vmatprep.subr.bf16.mxu0 0
    %3193 = vmatpush1.bf16.msra.mxu0 0
    %3194 = vmatprep.subr.bf16.mxu0 0
    %3195 = vmatpush1.bf16.msra.mxu0 0
    %3196 = vmatprep.mubr.bf16.mxu0 0
    %3197 = vmatmul.mubr.bf16.gmra.mrb[0].mxu0 %v3162
    %v3198 = vpop.f32.mrb[0].mxu0
    %v3199 = vadd.f32 %v1660, %v3198
    %v3200 = vpop.f32.mrb[0].mxu0
    %v3201 = vpop.f32.mrb[0].mxu0
    %v3202 = vadd.f32 %v1660, %v3201
    %v3203 = vpop.f32.mrb[0].mxu0
    %3204 = vdwg.mxu0
    %v3205 = vadd.f32 %v3045, %v3199
    %v3206 = vadd.f32 %v3046, %v3202
    %3207 = vst.msk [vmem:[#allocation8] sm:$0xff] %vm85, %v3205
    %3208 = vst.msk [vmem:[#allocation8 + $0x8] sm:$0xff] %vm85, %v3206
    // Predicated region
    $region26: #{tpu_custom_call.1} parent=1 // pred_check
      _
    $region27: #{tpu_custom_call.1} parent=1 // pred_check_branch
      %3210 = sbr.rel (0) target = $region29
    $region28: #{tpu_custom_call.1} parent=1 // pred_region
      %s3212 = ssub.s32 256, 256
      %3213 = vsyncadd [#allocation4], %s3212
      %s3214 = sshll.u32 [#allocation8], 4
      %s3215 = int_to_ptr.vmem [resolvable:$true] %s3214
      %3220 = dma.vmem_to_hbm [thread:$0]  %s3215, 256, %s3, [#allocation4], 128, 128, 8
    $region29: #{tpu_custom_call.1} parent=1 // pred_fallthru
      _
    // Predicated region
    $region30: #{tpu_custom_call.1} parent=1 // pred_check
      _
    $region31: #{tpu_custom_call.1} parent=1 // pred_check_branch
      %3222 = sbr.rel (0) target = $region33
    $region32: #{tpu_custom_call.1} parent=1 // pred_region
      %3223 = dma.done [#allocation4], 256
    $region33: #{tpu_custom_call.1} parent=1 // pred_fallthru
      _
    %3224 = vsyncpa [#allocation3], 1
    %3225 = vsyncpa [#allocation6], 1
    %3226 = vsyncpa [#allocation4], 1

</llo_original>
